<compile_context>
chip_gen: v7x
topology: tpu7x:2x2x1
jax: 0.10.0
libtpu: 0.0.40
codegen_flags: <defaults>
</compile_context>

<pallas_src>
import functools

import jax
import jax.numpy as jnp
from jax.experimental import pallas as pl
from jax.experimental.pallas import tpu as pltpu


# --------------------------------------------------------------------------- #
# geometry
# --------------------------------------------------------------------------- #

def _geometry(params, length, batch):
    C1, _, K1 = params["w_c1"].shape
    C2, _, K2 = params["w_c2"].shape
    C3, _, KH, KW = params["w_c3"].shape
    H1 = params["w_l2"].shape[0]
    H2 = params["w_l2"].shape[1]
    OUT = params["w_l3"].shape[1]
    assert KW == 3 and KH % 2 == 1, "head conv assumes kw=3 and odd kh ('same')"

    T1C = length - K1 + 1            # conv1 output length
    T1 = T1C // 4                    # MaxPool1d(4), floor (torch default)
    T2C = T1 - K2 + 1                # conv2 output length
    T2 = T2C // 4                    # MaxPool1d(4)
    HP = T2 // 8                     # MaxPool2d((8,2)) along H
    lin_in = params["w_l1"].shape[0]
    if lin_in != C3 * HP:
        raise ValueError(
            f"Linear-1 expects in_features={lin_in}, but the conv/pool stack "
            f"produces {C3}*{HP}={C3 * HP}; check `length`.")

    U = -(-T1 // 4)                  # stage-1 rows per signal (t1 = 4*u + p)
    NBLK1 = -(-(K1 + 15) // 16)      # 16-wide raw-signal blocks per stage-1 row
    L16 = 16 * (U - 1 + NBLK1)       # padded/truncated signal length
    M2 = K2 + 3                      # stage-2 patch taps (pool phase + kernel)
    T2H = 8 * HP                     # head rows actually pooled
    SIGS = -(-(T2 + KH - 1) // 8) * 8   # per-signal row stride in padded sig buf

    # batch tile: whole batch unless it splits into 8-row parallel tiles
    BT = 8 if (batch > 8 and batch % 8 == 0) else batch

    g = dict(B=batch, BT=BT, R=2 * BT, N3=3 * BT, L=length, L16=L16,
             N16=L16 // 16, K1=K1, C1=C1, K2=K2, C2=C2, KH=KH, C3=C3,
             T1=T1, T2=T2, U=U, NBLK1=NBLK1, M2=M2, HP=HP, T2H=T2H,
             SIGS=SIGS, H1=H1, H2=H2, OUT=OUT)
    # sig row feeding each head row (n = head*BT + b); sides follow torch:
    # output1 = forward_(in1, in2), output2 = (in1, in1), output3 = (in2, in2);
    # raw-signal rows are r = 2*b + s (s=0 -> input1, s=1 -> input2).
    s_a, s_b = (0, 0, 1), (1, 0, 1)
    g["src_a"] = tuple(2 * b + s_a[h] for h in range(3) for b in range(BT))
    g["src_b"] = tuple(2 * b + s_b[h] for h in range(3) for b in range(BT))
    return g


# --------------------------------------------------------------------------- #
# weight packing (constant-folded under jit) -> one slab, 2 input DMAs total
# --------------------------------------------------------------------------- #

def _pack_weights(params, g):
    f32 = jnp.float32
    C1, C2, C3 = g["C1"], g["C2"], g["C3"]
    K1, K2, KH = g["K1"], g["K2"], g["KH"]
    NBLK1, M2, HP = g["NBLK1"], g["M2"], g["HP"]
    H1, H2, OUT = g["H1"], g["H2"], g["OUT"]

    # stage 1: cols = j*(4*C1) + p*C1 + c1 ; value = W1[c1, mm - (4p + j)]
    w1 = params["w_c1"].astype(f32).reshape(C1, K1).T                  # (K1, C1)
    w1w = jnp.concatenate(
        [jnp.pad(w1, ((4 * p + j, 16 * NBLK1 - K1 - (4 * p + j)), (0, 0)))
         for j in range(4) for p in range(4)], axis=1)                 # (16*NBLK1, 16*C1)

    # stage 2: rows = m*C1 + c1 ; cols = j*C2 + c2 ; value = W2[c2, c1, m - j]
    w2 = jnp.transpose(params["w_c2"].astype(f32), (2, 1, 0)).reshape(K2 * C1, C2)
    w2e = jnp.concatenate(
        [jnp.pad(w2, ((j * C1, (M2 - K2 - j) * C1), (0, 0))) for j in range(4)],
        axis=1)                                                        # (M2*C1, 4*C2)

    # head conv2d: rows = (side*KH + dh)*C2 + c2 ; cols = w*C3 + c3.
    # Output width position w=0 uses kw-taps (a<-dw=1, b<-dw=2); w=1 uses
    # (a<-dw=0, b<-dw=1); dw hitting the width padding contributes nothing.
    w3 = jnp.transpose(params["w_c3"].astype(f32), (2, 1, 3, 0))       # (KH, C2, 3, C3)
    blk = [w3[:, :, dw, :].reshape(KH * C2, C3) for dw in range(3)]
    k3 = jnp.concatenate(
        [jnp.concatenate([blk[1], blk[2]], axis=0),
         jnp.concatenate([blk[0], blk[1]], axis=0)], axis=1)           # (2*KH*C2, 2*C3)

    # Linear-1: torch flatten order is (c3, hp); regroup rows hp-major so the
    # kernel's [pooled_hp0 | pooled_hp1] feature layout matches.
    wl1 = params["w_l1"].astype(f32).reshape(C3, HP, H1)
    wl1 = jnp.transpose(wl1, (1, 0, 2)).reshape(HP * C3, H1)
    wl2 = params["w_l2"].astype(f32)
    wl3 = params["w_l3"].astype(f32)

    biases = [jnp.tile(params["b_c1"].astype(f32), 4)[None, :],        # per-p copy
              params["b_c2"].astype(f32)[None, :],
              params["b_c3"].astype(f32)[None, :],
              params["b_l1"].astype(f32)[None, :],
              params["b_l2"].astype(f32)[None, :],
              params["b_l3"].astype(f32)[None, :]]

    pieces = [("w1w", w1w), ("w2e", w2e), ("k3", k3),
              ("wl1", wl1), ("wl2", wl2), ("wl3", wl3)]
    off, row = {}, 0
    for name, arr in pieces:
        off[name] = row
        row += -(-arr.shape[0] // 8) * 8
    off["bias"] = row
    row += 8
    width = max([a.shape[1] for _, a in pieces] + [b.shape[1] for b in biases])
    width = -(-width // 128) * 128
    slab = jnp.zeros((-(-row // 8) * 8, width), f32)
    for name, arr in pieces:
        slab = slab.at[off[name]:off[name] + arr.shape[0], :arr.shape[1]].set(arr)
    for i, b in enumerate(biases):
        slab = slab.at[off["bias"] + i, :b.shape[1]].set(b[0])
    return slab, off


# --------------------------------------------------------------------------- #
# the fused Pallas kernel
# --------------------------------------------------------------------------- #

def _reactify_kernel(x16_ref, slab_ref, out_ref,
                     p1pat, p1buf, p2pat, sigp, p3, *, g, off):
    f32 = jnp.float32
    R, U, NBLK1 = g["R"], g["U"], g["NBLK1"]
    C1, C2, C3 = g["C1"], g["C2"], g["C3"]
    T2, M2, KH = g["T2"], g["M2"], g["KH"]
    HP, T2H, SIGS = g["HP"], g["T2H"], g["SIGS"]
    BT, N3 = g["BT"], g["N3"]
    H1, H2, OUT = g["H1"], g["H2"], g["OUT"]

    dot = functools.partial(jnp.dot, preferred_element_type=f32)

    # ---- weights / biases: static slices of the packed slab ---------------- #
    w1w = slab_ref[off["w1w"]:off["w1w"] + 16 * NBLK1, :16 * C1]
    w2e = slab_ref[off["w2e"]:off["w2e"] + M2 * C1, :4 * C2]
    k3 = slab_ref[off["k3"]:off["k3"] + 2 * KH * C2, :2 * C3]
    wl1 = slab_ref[off["wl1"]:off["wl1"] + HP * C3, :H1]
    wl2 = slab_ref[off["wl2"]:off["wl2"] + H1, :H2]
    wl3 = slab_ref[off["wl3"]:off["wl3"] + H2, :OUT]
    br = off["bias"]
    b1 = slab_ref[br + 0:br + 1, :4 * C1]
    b2 = slab_ref[br + 1:br + 2, :C2]
    b3 = slab_ref[br + 2:br + 3, :C3]
    bl1 = slab_ref[br + 3:br + 4, :H1]
    bl2 = slab_ref[br + 4:br + 5, :H2]
    bl3 = slab_ref[br + 5:br + 6, :OUT]

    # ---- stage 1: Conv1d(1->C1, K1) + MaxPool1d(4) -------------------------- #
    # Patch rows are (signal r, u) with pooled time t1 = 4*u + p; column mm
    # holds the raw sample x[r, 16*u + mm].  One matmul computes all 16 (p, j)
    # conv positions of each row; the 4 pool phases (j) land in 4 column slabs.
    for r in range(R):
        for a in range(NBLK1):
            p1pat[r * U:(r + 1) * U, 16 * a:16 * (a + 1)] = x16_ref[r, a:a + U, :]
    z1 = dot(p1pat[...], w1w)                             # (R*U, 16*C1), cols (j, p, c1)
    c1w = 4 * C1
    p1 = jnp.maximum(jnp.maximum(z1[:, :c1w], z1[:, c1w:2 * c1w]),
                     jnp.maximum(z1[:, 2 * c1w:3 * c1w], z1[:, 3 * c1w:])) + b1
    p1buf[...] = p1                                       # (R*U, 4*C1), cols (p, c1)

    # ---- stage 2: Conv1d(C1->C2, K2) + MaxPool1d(4) -------------------------- #
    # Patch rows are (r, t2); column block m holds pooled1[r, 4*t2 + m, :]
    # = p1buf[(r, u = t2 + m//4), p = m%4, :].
    for r in range(R):
        for m in range(M2):
            p2pat[r * T2:(r + 1) * T2, C1 * m:C1 * (m + 1)] = p1buf[
                r * U + m // 4: r * U + m // 4 + T2,
                C1 * (m % 4): C1 * (m % 4 + 1)]
    z2 = dot(p2pat[...], w2e)                             # (R*T2, 4*C2), cols (j, c2)
    sig = jnp.maximum(jnp.maximum(z2[:, :C2], z2[:, C2:2 * C2]),
                      jnp.maximum(z2[:, 2 * C2:3 * C2], z2[:, 3 * C2:])) + b2

    # ---- stage 3: Conv2d(C2->C3, (KH,3), 'same') + MaxPool2d((8,2)) ---------- #
    # sigp holds each signal's (time, channel) map padded with KH//2 zero rows.
    sigp[...] = jnp.zeros(sigp.shape, f32)
    pad = KH // 2
    for r in range(R):
        sigp[r * SIGS + pad:r * SIGS + pad + T2, :] = sig[r * T2:(r + 1) * T2, :]

    # One head-patch matrix for all (pairing, batch, h) rows:
    #   rows = n*T2H + h   (n = head*BT + b),  cols = (side, dh, c2).
    # Both conv2d width positions come out of the single matmul as the two
    # column halves of k3.
    for n in range(N3):
        for side, src in ((0, g["src_a"][n]), (1, g["src_b"][n])):
            for dh in range(KH):
                p3[n * T2H:(n + 1) * T2H,
                   C2 * (side * KH + dh):C2 * (side * KH + dh + 1)] = sigp[
                    src * SIGS + dh: src * SIGS + dh + T2H, :]
    z3 = dot(p3[...], k3)                                 # (N3*T2H, 2*C3)
    wmax = jnp.maximum(z3[:, :C3], z3[:, C3:])            # max over width (w=0,1)

    # max over the 8 h positions of each (n, hp) pool window, then conv bias.
    feats = []
    for hp in range(HP):
        rows = [jnp.max(wmax[n * T2H + 8 * hp:n * T2H + 8 * hp + 8, :],
                        axis=0, keepdims=True) for n in range(N3)]
        feats.append(jnp.concatenate(rows, axis=0) + b3)  # (N3, C3)
    feats = jnp.concatenate(feats, axis=1)                # (N3, HP*C3), hp-major

    # ---- final MLP (dropouts are inference-mode identities) ------------------ #
    h1 = jnp.maximum(dot(feats, wl1) + bl1, 0.0)
    h2 = jnp.maximum(dot(h1, wl2) + bl2, 0.0)
    res = dot(h2, wl3) + bl3                              # (N3, OUT)
    for head in range(3):
        out_ref[head, :, :] = res[head * BT:(head + 1) * BT, :]


# --------------------------------------------------------------------------- #
# wrapper
# --------------------------------------------------------------------------- #

def reactify_forward(params, inputs):
    """inputs: (B, 2, L) float32 -> [out1, out2, out3], each (B, out_dim)."""
    bsz, two, length = inputs.shape
    assert two == 2
    g = _geometry(params, length, bsz)
    slab, off = _pack_weights(params, g)

    # host-side input massage: pad + reshape of the tiny raw signal only;
    # all patch building / conv / pool / MLP work happens inside ONE kernel.
    x2 = inputs.reshape(2 * bsz, length).astype(jnp.float32)    # rows r = 2*b + s
    L16 = g["L16"]
    x2 = x2[:, :L16] if length >= L16 else jnp.pad(x2, ((0, 0), (0, L16 - length)))
    x16 = x2.reshape(2 * bsz, g["N16"], 16)

    BT, OUT = g["BT"], g["OUT"]
    grid = (bsz // BT,)
    R, U, NBLK1, C1 = g["R"], g["U"], g["NBLK1"], g["C1"]
    T2, M2, C2, KH, C3 = g["T2"], g["M2"], g["C2"], g["KH"], g["C3"]
    N3, T2H, SIGS, HP = g["N3"], g["T2H"], g["SIGS"], g["HP"]
    H1, H2 = g["H1"], g["H2"]

    flops = 2 * grid[0] * (
        R * U * (16 * NBLK1) * (16 * C1)
        + R * T2 * (M2 * C1) * (4 * C2)
        + N3 * T2H * (2 * KH * C2) * (2 * C3)
        + N3 * (HP * C3 * H1 + H1 * H2 + H2 * OUT))
    bytes_accessed = 4 * (int(x16.size) + int(slab.size) + 3 * bsz * OUT)

    kernel = functools.partial(_reactify_kernel, g=g, off=off)
    out = pl.pallas_call(
        kernel,
        out_shape=jax.ShapeDtypeStruct((3, bsz, OUT), jnp.float32),
        grid=grid,
        in_specs=[
            pl.BlockSpec((2 * BT, g["N16"], 16), lambda i: (i, 0, 0)),
            pl.BlockSpec(slab.shape, lambda i: (0, 0)),
        ],
        out_specs=pl.BlockSpec((3, BT, OUT), lambda i: (0, i, 0)),
        scratch_shapes=[
            pltpu.VMEM((R * U, 16 * NBLK1), jnp.float32),      # stage-1 patches
            pltpu.VMEM((R * U, 4 * C1), jnp.float32),          # pooled stage-1 out
            pltpu.VMEM((R * T2, M2 * C1), jnp.float32),        # stage-2 patches
            pltpu.VMEM((R * SIGS, C2), jnp.float32),           # H-padded stage-2 out
            pltpu.VMEM((N3 * T2H, 2 * KH * C2), jnp.float32),  # head patches
        ],
        compiler_params=pltpu.CompilerParams(
            dimension_semantics=("parallel",)),
        cost_estimate=pl.CostEstimate(flops=flops, transcendentals=0,
                                      bytes_accessed=bytes_accessed),
    )(x16, slab)
    return [out[0], out[1], out[2]]


# --------------------------------------------------------------------------- #
# params / main
# --------------------------------------------------------------------------- #

def init_params(key, out_dim=4, n_filters_1=8, n_filters_2=16, n_filters_3=8,
                filter_shape_1=64, filter_shape_2=8, filter_shape_3=(7, 3),
                lin_in=16):
    ks = jax.random.split(key, 12)

    def nrm(k, shape, fan_in):
        return jax.random.normal(k, shape, jnp.float32) / jnp.sqrt(float(fan_in))

    kh, kw = filter_shape_3
    return {
        # PyTorch layouts: Conv1d (Cout, Cin, K); Conv2d (Cout, Cin, kh, kw).
        "w_c1": nrm(ks[0], (n_filters_1, 1, filter_shape_1), filter_shape_1),
        "b_c1": nrm(ks[1], (n_filters_1,), filter_shape_1),
        "w_c2": nrm(ks[2], (n_filters_2, n_filters_1, filter_shape_2),
                    n_filters_1 * filter_shape_2),
        "b_c2": nrm(ks[3], (n_filters_2,), n_filters_1 * filter_shape_2),
        "w_c3": nrm(ks[4], (n_filters_3, n_filters_2, kh, kw),
                    n_filters_2 * kh * kw),
        "b_c3": nrm(ks[5], (n_filters_3,), n_filters_2 * kh * kw),
        # Linear weights stored in (in, out) matmul form; w_l1 rows follow the
        # torch NCHW-flatten feature order (c3 * HP + hp).
        "w_l1": nrm(ks[6], (lin_in, 8), lin_in),
        "b_l1": nrm(ks[7], (8,), lin_in),
        "w_l2": nrm(ks[8], (8, 8), 8),
        "b_l2": nrm(ks[9], (8,), 8),
        "w_l3": nrm(ks[10], (8, out_dim), 8),
        "b_l3": nrm(ks[11], (out_dim,), 8),
    }


if __name__ == "__main__":
    LENGTH = 347        # every pool divides exactly; T2 = 16 -> lin_in = 16
    BATCH = 2
    OUT_DIM = 4

    key = jax.random.PRNGKey(0)
    k_in, k_p = jax.random.split(key)
    inputs = jax.random.normal(k_in, (BATCH, 2, LENGTH), jnp.float32)

    lin_in = 8 * ((LENGTH + 8 - (64 + 4 * 8)) // 128)   # module formula -> 16
    params = init_params(k_p, out_dim=OUT_DIM, lin_in=lin_in)

    fwd = jax.jit(functools.partial(reactify_forward, params))
    outs = jax.block_until_ready(fwd(inputs))

    assert len(outs) == 3
    for o in outs:
        assert o.shape == (BATCH, OUT_DIM), o.shape
        assert bool(jnp.all(jnp.isfinite(o)))

    print("KERNEL_OK")
</pallas_src>

<mosaic_0001>
module attributes {stable_mosaic.version = 11 : i64} {
  func.func @_reactify_kernel(%arg0: i32, %arg1: memref<4x22x16xf32, #tpu.memory_space<vmem>>, %arg2: memref<432x128xf32, #tpu.memory_space<vmem>>, %arg3: memref<3x2x4xf32, #tpu.memory_space<vmem>>, %arg4: memref<72x80xf32, #tpu.memory_space<vmem>>, %arg5: memref<72x32xf32, #tpu.memory_space<vmem>>, %arg6: memref<64x88xf32, #tpu.memory_space<vmem>>, %arg7: memref<96x16xf32, #tpu.memory_space<vmem>>, %arg8: memref<96x224xf32, #tpu.memory_space<vmem>>) attributes {dimension_semantics = [#tpu.dimension_semantics<parallel>], iteration_bounds = array<i64: 1>, scalar_prefetch = 0 : i64, scratch_operands = 5 : i64, tpu.core_type = #tpu.core_type<tc>, window_params = [{transform_indices = @transform_0, window_bounds = array<i64: 4, 22, 16>}, {pipeline_mode = #tpu.pipeline_mode<synchronous>, transform_indices = @transform_1, window_bounds = array<i64: 432, 128>}, {transform_indices = @transform_2, window_bounds = array<i64: 3, 2, 4>}]} {
    %c0 = arith.constant 0 : index
    %c0_0 = arith.constant 0 : index
    %0 = vector.load %arg2[%c0, %c0_0] : memref<432x128xf32, #tpu.memory_space<vmem>>, vector<80x128xf32>
    %c80 = arith.constant 80 : index
    %c0_1 = arith.constant 0 : index
    %1 = vector.load %arg2[%c80, %c0_1] : memref<432x128xf32, #tpu.memory_space<vmem>>, vector<88x64xf32>
    %c168 = arith.constant 168 : index
    %c0_2 = arith.constant 0 : index
    %2 = vector.load %arg2[%c168, %c0_2] : memref<432x128xf32, #tpu.memory_space<vmem>>, vector<224x16xf32>
    %c392 = arith.constant 392 : index
    %c0_3 = arith.constant 0 : index
    %3 = vector.load %arg2[%c392, %c0_3] : memref<432x128xf32, #tpu.memory_space<vmem>>, vector<16x8xf32>
    %c408 = arith.constant 408 : index
    %c0_4 = arith.constant 0 : index
    %4 = vector.load %arg2[%c408, %c0_4] : memref<432x128xf32, #tpu.memory_space<vmem>>, vector<8x8xf32>
    %c416 = arith.constant 416 : index
    %c0_5 = arith.constant 0 : index
    %5 = vector.load %arg2[%c416, %c0_5] : memref<432x128xf32, #tpu.memory_space<vmem>>, vector<8x4xf32>
    %c424 = arith.constant 424 : index
    %c0_6 = arith.constant 0 : index
    %6 = vector.load %arg2[%c424, %c0_6] : memref<432x128xf32, #tpu.memory_space<vmem>>, vector<1x32xf32>
    %c425 = arith.constant 425 : index
    %c0_7 = arith.constant 0 : index
    %7 = vector.load %arg2[%c425, %c0_7] : memref<432x128xf32, #tpu.memory_space<vmem>>, vector<1x16xf32>
    %c426 = arith.constant 426 : index
    %c0_8 = arith.constant 0 : index
    %8 = vector.load %arg2[%c426, %c0_8] : memref<432x128xf32, #tpu.memory_space<vmem>>, vector<1x8xf32>
    %c427 = arith.constant 427 : index
    %c0_9 = arith.constant 0 : index
    %9 = vector.load %arg2[%c427, %c0_9] : memref<432x128xf32, #tpu.memory_space<vmem>>, vector<1x8xf32>
    %c428 = arith.constant 428 : index
    %c0_10 = arith.constant 0 : index
    %10 = vector.load %arg2[%c428, %c0_10] : memref<432x128xf32, #tpu.memory_space<vmem>>, vector<1x8xf32>
    %c429 = arith.constant 429 : index
    %c0_11 = arith.constant 0 : index
    %11 = vector.load %arg2[%c429, %c0_11] : memref<432x128xf32, #tpu.memory_space<vmem>>, vector<1x4xf32>
    %c0_12 = arith.constant 0 : index
    %c0_13 = arith.constant 0 : index
    %c0_14 = arith.constant 0 : index
    %12 = vector.load %arg1[%c0_12, %c0_13, %c0_14] : memref<4x22x16xf32, #tpu.memory_space<vmem>>, vector<1x18x16xf32>
    %13 = vector.shape_cast %12 : vector<1x18x16xf32> to vector<18x16xf32>
    %c0_15 = arith.constant 0 : index
    %c0_16 = arith.constant 0 : index
    %14 = vector.load %arg4[%c0_15, %c0_16] : memref<72x80xf32, #tpu.memory_space<vmem>>, vector<18x16xf32>
    tpu.vector_store %arg4[%c0_15, %c0_16], %13 {strides = array<i32>} : memref<72x80xf32, #tpu.memory_space<vmem>>, vector<18x16xf32>,
    %c0_17 = arith.constant 0 : index
    %c1 = arith.constant 1 : index
    %c0_18 = arith.constant 0 : index
    %15 = vector.load %arg1[%c0_17, %c1, %c0_18] : memref<4x22x16xf32, #tpu.memory_space<vmem>>, vector<1x18x16xf32>
    %16 = vector.shape_cast %15 : vector<1x18x16xf32> to vector<18x16xf32>
    %c0_19 = arith.constant 0 : index
    %c16 = arith.constant 16 : index
    %17 = vector.load %arg4[%c0_19, %c16] : memref<72x80xf32, #tpu.memory_space<vmem>>, vector<18x16xf32>
    tpu.vector_store %arg4[%c0_19, %c16], %16 {strides = array<i32>} : memref<72x80xf32, #tpu.memory_space<vmem>>, vector<18x16xf32>,
    %c0_20 = arith.constant 0 : index
    %c2 = arith.constant 2 : index
    %c0_21 = arith.constant 0 : index
    %18 = vector.load %arg1[%c0_20, %c2, %c0_21] : memref<4x22x16xf32, #tpu.memory_space<vmem>>, vector<1x18x16xf32>
    %19 = vector.shape_cast %18 : vector<1x18x16xf32> to vector<18x16xf32>
    %c0_22 = arith.constant 0 : index
    %c32 = arith.constant 32 : index
    %20 = vector.load %arg4[%c0_22, %c32] : memref<72x80xf32, #tpu.memory_space<vmem>>, vector<18x16xf32>
    tpu.vector_store %arg4[%c0_22, %c32], %19 {strides = array<i32>} : memref<72x80xf32, #tpu.memory_space<vmem>>, vector<18x16xf32>,
    %c0_23 = arith.constant 0 : index
    %c3 = arith.constant 3 : index
    %c0_24 = arith.constant 0 : index
    %21 = vector.load %arg1[%c0_23, %c3, %c0_24] : memref<4x22x16xf32, #tpu.memory_space<vmem>>, vector<1x18x16xf32>
    %22 = vector.shape_cast %21 : vector<1x18x16xf32> to vector<18x16xf32>
    %c0_25 = arith.constant 0 : index
    %c48 = arith.constant 48 : index
    %23 = vector.load %arg4[%c0_25, %c48] : memref<72x80xf32, #tpu.memory_space<vmem>>, vector<18x16xf32>
    tpu.vector_store %arg4[%c0_25, %c48], %22 {strides = array<i32>} : memref<72x80xf32, #tpu.memory_space<vmem>>, vector<18x16xf32>,
    %c0_26 = arith.constant 0 : index
    %c4 = arith.constant 4 : index
    %c0_27 = arith.constant 0 : index
    %24 = vector.load %arg1[%c0_26, %c4, %c0_27] : memref<4x22x16xf32, #tpu.memory_space<vmem>>, vector<1x18x16xf32>
    %25 = vector.shape_cast %24 : vector<1x18x16xf32> to vector<18x16xf32>
    %c0_28 = arith.constant 0 : index
    %c64 = arith.constant 64 : index
    %26 = vector.load %arg4[%c0_28, %c64] : memref<72x80xf32, #tpu.memory_space<vmem>>, vector<18x16xf32>
    tpu.vector_store %arg4[%c0_28, %c64], %25 {strides = array<i32>} : memref<72x80xf32, #tpu.memory_space<vmem>>, vector<18x16xf32>,
    %c1_29 = arith.constant 1 : index
    %c0_30 = arith.constant 0 : index
    %c0_31 = arith.constant 0 : index
    %27 = vector.load %arg1[%c1_29, %c0_30, %c0_31] : memref<4x22x16xf32, #tpu.memory_space<vmem>>, vector<1x18x16xf32>
    %28 = vector.shape_cast %27 : vector<1x18x16xf32> to vector<18x16xf32>
    %c18 = arith.constant 18 : index
    %c0_32 = arith.constant 0 : index
    %29 = vector.load %arg4[%c18, %c0_32] : memref<72x80xf32, #tpu.memory_space<vmem>>, vector<18x16xf32>
    tpu.vector_store %arg4[%c18, %c0_32], %28 {strides = array<i32>} : memref<72x80xf32, #tpu.memory_space<vmem>>, vector<18x16xf32>,
    %c1_33 = arith.constant 1 : index
    %c1_34 = arith.constant 1 : index
    %c0_35 = arith.constant 0 : index
    %30 = vector.load %arg1[%c1_33, %c1_34, %c0_35] : memref<4x22x16xf32, #tpu.memory_space<vmem>>, vector<1x18x16xf32>
    %31 = vector.shape_cast %30 : vector<1x18x16xf32> to vector<18x16xf32>
    %c18_36 = arith.constant 18 : index
    %c16_37 = arith.constant 16 : index
    %32 = vector.load %arg4[%c18_36, %c16_37] : memref<72x80xf32, #tpu.memory_space<vmem>>, vector<18x16xf32>
    tpu.vector_store %arg4[%c18_36, %c16_37], %31 {strides = array<i32>} : memref<72x80xf32, #tpu.memory_space<vmem>>, vector<18x16xf32>,
    %c1_38 = arith.constant 1 : index
    %c2_39 = arith.constant 2 : index
    %c0_40 = arith.constant 0 : index
    %33 = vector.load %arg1[%c1_38, %c2_39, %c0_40] : memref<4x22x16xf32, #tpu.memory_space<vmem>>, vector<1x18x16xf32>
    %34 = vector.shape_cast %33 : vector<1x18x16xf32> to vector<18x16xf32>
    %c18_41 = arith.constant 18 : index
    %c32_42 = arith.constant 32 : index
    %35 = vector.load %arg4[%c18_41, %c32_42] : memref<72x80xf32, #tpu.memory_space<vmem>>, vector<18x16xf32>
    tpu.vector_store %arg4[%c18_41, %c32_42], %34 {strides = array<i32>} : memref<72x80xf32, #tpu.memory_space<vmem>>, vector<18x16xf32>,
    %c1_43 = arith.constant 1 : index
    %c3_44 = arith.constant 3 : index
    %c0_45 = arith.constant 0 : index
    %36 = vector.load %arg1[%c1_43, %c3_44, %c0_45] : memref<4x22x16xf32, #tpu.memory_space<vmem>>, vector<1x18x16xf32>
    %37 = vector.shape_cast %36 : vector<1x18x16xf32> to vector<18x16xf32>
    %c18_46 = arith.constant 18 : index
    %c48_47 = arith.constant 48 : index
    %38 = vector.load %arg4[%c18_46, %c48_47] : memref<72x80xf32, #tpu.memory_space<vmem>>, vector<18x16xf32>
    tpu.vector_store %arg4[%c18_46, %c48_47], %37 {strides = array<i32>} : memref<72x80xf32, #tpu.memory_space<vmem>>, vector<18x16xf32>,
    %c1_48 = arith.constant 1 : index
    %c4_49 = arith.constant 4 : index
    %c0_50 = arith.constant 0 : index
    %39 = vector.load %arg1[%c1_48, %c4_49, %c0_50] : memref<4x22x16xf32, #tpu.memory_space<vmem>>, vector<1x18x16xf32>
    %40 = vector.shape_cast %39 : vector<1x18x16xf32> to vector<18x16xf32>
    %c18_51 = arith.constant 18 : index
    %c64_52 = arith.constant 64 : index
    %41 = vector.load %arg4[%c18_51, %c64_52] : memref<72x80xf32, #tpu.memory_space<vmem>>, vector<18x16xf32>
    tpu.vector_store %arg4[%c18_51, %c64_52], %40 {strides = array<i32>} : memref<72x80xf32, #tpu.memory_space<vmem>>, vector<18x16xf32>,
    %c2_53 = arith.constant 2 : index
    %c0_54 = arith.constant 0 : index
    %c0_55 = arith.constant 0 : index
    %42 = vector.load %arg1[%c2_53, %c0_54, %c0_55] : memref<4x22x16xf32, #tpu.memory_space<vmem>>, vector<1x18x16xf32>
    %43 = vector.shape_cast %42 : vector<1x18x16xf32> to vector<18x16xf32>
    %c36 = arith.constant 36 : index
    %c0_56 = arith.constant 0 : index
    %44 = vector.load %arg4[%c36, %c0_56] : memref<72x80xf32, #tpu.memory_space<vmem>>, vector<18x16xf32>
    tpu.vector_store %arg4[%c36, %c0_56], %43 {strides = array<i32>} : memref<72x80xf32, #tpu.memory_space<vmem>>, vector<18x16xf32>,
    %c2_57 = arith.constant 2 : index
    %c1_58 = arith.constant 1 : index
    %c0_59 = arith.constant 0 : index
    %45 = vector.load %arg1[%c2_57, %c1_58, %c0_59] : memref<4x22x16xf32, #tpu.memory_space<vmem>>, vector<1x18x16xf32>
    %46 = vector.shape_cast %45 : vector<1x18x16xf32> to vector<18x16xf32>
    %c36_60 = arith.constant 36 : index
    %c16_61 = arith.constant 16 : index
    %47 = vector.load %arg4[%c36_60, %c16_61] : memref<72x80xf32, #tpu.memory_space<vmem>>, vector<18x16xf32>
    tpu.vector_store %arg4[%c36_60, %c16_61], %46 {strides = array<i32>} : memref<72x80xf32, #tpu.memory_space<vmem>>, vector<18x16xf32>,
    %c2_62 = arith.constant 2 : index
    %c2_63 = arith.constant 2 : index
    %c0_64 = arith.constant 0 : index
    %48 = vector.load %arg1[%c2_62, %c2_63, %c0_64] : memref<4x22x16xf32, #tpu.memory_space<vmem>>, vector<1x18x16xf32>
    %49 = vector.shape_cast %48 : vector<1x18x16xf32> to vector<18x16xf32>
    %c36_65 = arith.constant 36 : index
    %c32_66 = arith.constant 32 : index
    %50 = vector.load %arg4[%c36_65, %c32_66] : memref<72x80xf32, #tpu.memory_space<vmem>>, vector<18x16xf32>
    tpu.vector_store %arg4[%c36_65, %c32_66], %49 {strides = array<i32>} : memref<72x80xf32, #tpu.memory_space<vmem>>, vector<18x16xf32>,
    %c2_67 = arith.constant 2 : index
    %c3_68 = arith.constant 3 : index
    %c0_69 = arith.constant 0 : index
    %51 = vector.load %arg1[%c2_67, %c3_68, %c0_69] : memref<4x22x16xf32, #tpu.memory_space<vmem>>, vector<1x18x16xf32>
    %52 = vector.shape_cast %51 : vector<1x18x16xf32> to vector<18x16xf32>
    %c36_70 = arith.constant 36 : index
    %c48_71 = arith.constant 48 : index
    %53 = vector.load %arg4[%c36_70, %c48_71] : memref<72x80xf32, #tpu.memory_space<vmem>>, vector<18x16xf32>
    tpu.vector_store %arg4[%c36_70, %c48_71], %52 {strides = array<i32>} : memref<72x80xf32, #tpu.memory_space<vmem>>, vector<18x16xf32>,
    %c2_72 = arith.constant 2 : index
    %c4_73 = arith.constant 4 : index
    %c0_74 = arith.constant 0 : index
    %54 = vector.load %arg1[%c2_72, %c4_73, %c0_74] : memref<4x22x16xf32, #tpu.memory_space<vmem>>, vector<1x18x16xf32>
    %55 = vector.shape_cast %54 : vector<1x18x16xf32> to vector<18x16xf32>
    %c36_75 = arith.constant 36 : index
    %c64_76 = arith.constant 64 : index
    %56 = vector.load %arg4[%c36_75, %c64_76] : memref<72x80xf32, #tpu.memory_space<vmem>>, vector<18x16xf32>
    tpu.vector_store %arg4[%c36_75, %c64_76], %55 {strides = array<i32>} : memref<72x80xf32, #tpu.memory_space<vmem>>, vector<18x16xf32>,
    %c3_77 = arith.constant 3 : index
    %c0_78 = arith.constant 0 : index
    %c0_79 = arith.constant 0 : index
    %57 = vector.load %arg1[%c3_77, %c0_78, %c0_79] : memref<4x22x16xf32, #tpu.memory_space<vmem>>, vector<1x18x16xf32>
    %58 = vector.shape_cast %57 : vector<1x18x16xf32> to vector<18x16xf32>
    %c54 = arith.constant 54 : index
    %c0_80 = arith.constant 0 : index
    %59 = vector.load %arg4[%c54, %c0_80] : memref<72x80xf32, #tpu.memory_space<vmem>>, vector<18x16xf32>
    tpu.vector_store %arg4[%c54, %c0_80], %58 {strides = array<i32>} : memref<72x80xf32, #tpu.memory_space<vmem>>, vector<18x16xf32>,
    %c3_81 = arith.constant 3 : index
    %c1_82 = arith.constant 1 : index
    %c0_83 = arith.constant 0 : index
    %60 = vector.load %arg1[%c3_81, %c1_82, %c0_83] : memref<4x22x16xf32, #tpu.memory_space<vmem>>, vector<1x18x16xf32>
    %61 = vector.shape_cast %60 : vector<1x18x16xf32> to vector<18x16xf32>
    %c54_84 = arith.constant 54 : index
    %c16_85 = arith.constant 16 : index
    %62 = vector.load %arg4[%c54_84, %c16_85] : memref<72x80xf32, #tpu.memory_space<vmem>>, vector<18x16xf32>
    tpu.vector_store %arg4[%c54_84, %c16_85], %61 {strides = array<i32>} : memref<72x80xf32, #tpu.memory_space<vmem>>, vector<18x16xf32>,
    %c3_86 = arith.constant 3 : index
    %c2_87 = arith.constant 2 : index
    %c0_88 = arith.constant 0 : index
    %63 = vector.load %arg1[%c3_86, %c2_87, %c0_88] : memref<4x22x16xf32, #tpu.memory_space<vmem>>, vector<1x18x16xf32>
    %64 = vector.shape_cast %63 : vector<1x18x16xf32> to vector<18x16xf32>
    %c54_89 = arith.constant 54 : index
    %c32_90 = arith.constant 32 : index
    %65 = vector.load %arg4[%c54_89, %c32_90] : memref<72x80xf32, #tpu.memory_space<vmem>>, vector<18x16xf32>
    tpu.vector_store %arg4[%c54_89, %c32_90], %64 {strides = array<i32>} : memref<72x80xf32, #tpu.memory_space<vmem>>, vector<18x16xf32>,
    %c3_91 = arith.constant 3 : index
    %c3_92 = arith.constant 3 : index
    %c0_93 = arith.constant 0 : index
    %66 = vector.load %arg1[%c3_91, %c3_92, %c0_93] : memref<4x22x16xf32, #tpu.memory_space<vmem>>, vector<1x18x16xf32>
    %67 = vector.shape_cast %66 : vector<1x18x16xf32> to vector<18x16xf32>
    %c54_94 = arith.constant 54 : index
    %c48_95 = arith.constant 48 : index
    %68 = vector.load %arg4[%c54_94, %c48_95] : memref<72x80xf32, #tpu.memory_space<vmem>>, vector<18x16xf32>
    tpu.vector_store %arg4[%c54_94, %c48_95], %67 {strides = array<i32>} : memref<72x80xf32, #tpu.memory_space<vmem>>, vector<18x16xf32>,
    %c3_96 = arith.constant 3 : index
    %c4_97 = arith.constant 4 : index
    %c0_98 = arith.constant 0 : index
    %69 = vector.load %arg1[%c3_96, %c4_97, %c0_98] : memref<4x22x16xf32, #tpu.memory_space<vmem>>, vector<1x18x16xf32>
    %70 = vector.shape_cast %69 : vector<1x18x16xf32> to vector<18x16xf32>
    %c54_99 = arith.constant 54 : index
    %c64_100 = arith.constant 64 : index
    %71 = vector.load %arg4[%c54_99, %c64_100] : memref<72x80xf32, #tpu.memory_space<vmem>>, vector<18x16xf32>
    tpu.vector_store %arg4[%c54_99, %c64_100], %70 {strides = array<i32>} : memref<72x80xf32, #tpu.memory_space<vmem>>, vector<18x16xf32>,
    %c0_101 = arith.constant 0 : index
    %c0_102 = arith.constant 0 : index
    %72 = vector.load %arg4[%c0_101, %c0_102] : memref<72x80xf32, #tpu.memory_space<vmem>>, vector<72x80xf32>
    %cst = arith.constant dense<0.000000e+00> : vector<72x128xf32>
    %73 = tpu.matmul %72, %0, %cst {dimension_numbers = #tpu.dot_dimension_numbers<[1], [0], [0], [1], [0, 0, 1, 1], [], []>} : vector<72x80xf32>, vector<80x128xf32>, vector<72x128xf32> -> vector<72x128xf32>
    %74 = vector.extract_strided_slice %73 {offsets = [0, 0], sizes = [72, 32], strides = [1, 1]} : vector<72x128xf32> to vector<72x32xf32>
    %75 = vector.extract_strided_slice %73 {offsets = [0, 32], sizes = [72, 32], strides = [1, 1]} : vector<72x128xf32> to vector<72x32xf32>
    %76 = arith.maximumf %74, %75 : vector<72x32xf32>
    %77 = vector.extract_strided_slice %73 {offsets = [0, 64], sizes = [72, 32], strides = [1, 1]} : vector<72x128xf32> to vector<72x32xf32>
    %78 = vector.extract_strided_slice %73 {offsets = [0, 96], sizes = [72, 32], strides = [1, 1]} : vector<72x128xf32> to vector<72x32xf32>
    %79 = arith.maximumf %77, %78 : vector<72x32xf32>
    %80 = arith.maximumf %76, %79 : vector<72x32xf32>
    %81 = vector.broadcast %6 : vector<1x32xf32> to vector<72x32xf32>
    %82 = arith.addf %80, %81 : vector<72x32xf32>
    %c0_103 = arith.constant 0 : index
    %c0_104 = arith.constant 0 : index
    %83 = vector.load %arg5[%c0_103, %c0_104] : memref<72x32xf32, #tpu.memory_space<vmem>>, vector<72x32xf32>
    tpu.vector_store %arg5[%c0_103, %c0_104], %82 {strides = array<i32>} : memref<72x32xf32, #tpu.memory_space<vmem>>, vector<72x32xf32>,
    %c0_105 = arith.constant 0 : index
    %c0_106 = arith.constant 0 : index
    %84 = vector.load %arg5[%c0_105, %c0_106] : memref<72x32xf32, #tpu.memory_space<vmem>>, vector<16x8xf32>
    %c0_107 = arith.constant 0 : index
    %c0_108 = arith.constant 0 : index
    %85 = vector.load %arg6[%c0_107, %c0_108] : memref<64x88xf32, #tpu.memory_space<vmem>>, vector<16x8xf32>
    tpu.vector_store %arg6[%c0_107, %c0_108], %84 {strides = array<i32>} : memref<64x88xf32, #tpu.memory_space<vmem>>, vector<16x8xf32>,
    %c0_109 = arith.constant 0 : index
    %c8 = arith.constant 8 : index
    %86 = vector.load %arg5[%c0_109, %c8] : memref<72x32xf32, #tpu.memory_space<vmem>>, vector<16x8xf32>
    %c0_110 = arith.constant 0 : index
    %c8_111 = arith.constant 8 : index
    %87 = vector.load %arg6[%c0_110, %c8_111] : memref<64x88xf32, #tpu.memory_space<vmem>>, vector<16x8xf32>
    tpu.vector_store %arg6[%c0_110, %c8_111], %86 {strides = array<i32>} : memref<64x88xf32, #tpu.memory_space<vmem>>, vector<16x8xf32>,
    %c0_112 = arith.constant 0 : index
    %c16_113 = arith.constant 16 : index
    %88 = vector.load %arg5[%c0_112, %c16_113] : memref<72x32xf32, #tpu.memory_space<vmem>>, vector<16x8xf32>
    %c0_114 = arith.constant 0 : index
    %c16_115 = arith.constant 16 : index
    %89 = vector.load %arg6[%c0_114, %c16_115] : memref<64x88xf32, #tpu.memory_space<vmem>>, vector<16x8xf32>
    tpu.vector_store %arg6[%c0_114, %c16_115], %88 {strides = array<i32>} : memref<64x88xf32, #tpu.memory_space<vmem>>, vector<16x8xf32>,
    %c0_116 = arith.constant 0 : index
    %c24 = arith.constant 24 : index
    %90 = vector.load %arg5[%c0_116, %c24] : memref<72x32xf32, #tpu.memory_space<vmem>>, vector<16x8xf32>
    %c0_117 = arith.constant 0 : index
    %c24_118 = arith.constant 24 : index
    %91 = vector.load %arg6[%c0_117, %c24_118] : memref<64x88xf32, #tpu.memory_space<vmem>>, vector<16x8xf32>
    tpu.vector_store %arg6[%c0_117, %c24_118], %90 {strides = array<i32>} : memref<64x88xf32, #tpu.memory_space<vmem>>, vector<16x8xf32>,
    %c1_119 = arith.constant 1 : index
    %c0_120 = arith.constant 0 : index
    %92 = vector.load %arg5[%c1_119, %c0_120] : memref<72x32xf32, #tpu.memory_space<vmem>>, vector<16x8xf32>
    %c0_121 = arith.constant 0 : index
    %c32_122 = arith.constant 32 : index
    %93 = vector.load %arg6[%c0_121, %c32_122] : memref<64x88xf32, #tpu.memory_space<vmem>>, vector<16x8xf32>
    tpu.vector_store %arg6[%c0_121, %c32_122], %92 {strides = array<i32>} : memref<64x88xf32, #tpu.memory_space<vmem>>, vector<16x8xf32>,
    %c1_123 = arith.constant 1 : index
    %c8_124 = arith.constant 8 : index
    %94 = vector.load %arg5[%c1_123, %c8_124] : memref<72x32xf32, #tpu.memory_space<vmem>>, vector<16x8xf32>
    %c0_125 = arith.constant 0 : index
    %c40 = arith.constant 40 : index
    %95 = vector.load %arg6[%c0_125, %c40] : memref<64x88xf32, #tpu.memory_space<vmem>>, vector<16x8xf32>
    tpu.vector_store %arg6[%c0_125, %c40], %94 {strides = array<i32>} : memref<64x88xf32, #tpu.memory_space<vmem>>, vector<16x8xf32>,
    %c1_126 = arith.constant 1 : index
    %c16_127 = arith.constant 16 : index
    %96 = vector.load %arg5[%c1_126, %c16_127] : memref<72x32xf32, #tpu.memory_space<vmem>>, vector<16x8xf32>
    %c0_128 = arith.constant 0 : index
    %c48_129 = arith.constant 48 : index
    %97 = vector.load %arg6[%c0_128, %c48_129] : memref<64x88xf32, #tpu.memory_space<vmem>>, vector<16x8xf32>
    tpu.vector_store %arg6[%c0_128, %c48_129], %96 {strides = array<i32>} : memref<64x88xf32, #tpu.memory_space<vmem>>, vector<16x8xf32>,
    %c1_130 = arith.constant 1 : index
    %c24_131 = arith.constant 24 : index
    %98 = vector.load %arg5[%c1_130, %c24_131] : memref<72x32xf32, #tpu.memory_space<vmem>>, vector<16x8xf32>
    %c0_132 = arith.constant 0 : index
    %c56 = arith.constant 56 : index
    %99 = vector.load %arg6[%c0_132, %c56] : memref<64x88xf32, #tpu.memory_space<vmem>>, vector<16x8xf32>
    tpu.vector_store %arg6[%c0_132, %c56], %98 {strides = array<i32>} : memref<64x88xf32, #tpu.memory_space<vmem>>, vector<16x8xf32>,
    %c2_133 = arith.constant 2 : index
    %c0_134 = arith.constant 0 : index
    %100 = vector.load %arg5[%c2_133, %c0_134] : memref<72x32xf32, #tpu.memory_space<vmem>>, vector<16x8xf32>
    %c0_135 = arith.constant 0 : index
    %c64_136 = arith.constant 64 : index
    %101 = vector.load %arg6[%c0_135, %c64_136] : memref<64x88xf32, #tpu.memory_space<vmem>>, vector<16x8xf32>
    tpu.vector_store %arg6[%c0_135, %c64_136], %100 {strides = array<i32>} : memref<64x88xf32, #tpu.memory_space<vmem>>, vector<16x8xf32>,
    %c2_137 = arith.constant 2 : index
    %c8_138 = arith.constant 8 : index
    %102 = vector.load %arg5[%c2_137, %c8_138] : memref<72x32xf32, #tpu.memory_space<vmem>>, vector<16x8xf32>
    %c0_139 = arith.constant 0 : index
    %c72 = arith.constant 72 : index
    %103 = vector.load %arg6[%c0_139, %c72] : memref<64x88xf32, #tpu.memory_space<vmem>>, vector<16x8xf32>
    tpu.vector_store %arg6[%c0_139, %c72], %102 {strides = array<i32>} : memref<64x88xf32, #tpu.memory_space<vmem>>, vector<16x8xf32>,
    %c2_140 = arith.constant 2 : index
    %c16_141 = arith.constant 16 : index
    %104 = vector.load %arg5[%c2_140, %c16_141] : memref<72x32xf32, #tpu.memory_space<vmem>>, vector<16x8xf32>
    %c0_142 = arith.constant 0 : index
    %c80_143 = arith.constant 80 : index
    %105 = vector.load %arg6[%c0_142, %c80_143] : memref<64x88xf32, #tpu.memory_space<vmem>>, vector<16x8xf32>
    tpu.vector_store %arg6[%c0_142, %c80_143], %104 {strides = array<i32>} : memref<64x88xf32, #tpu.memory_space<vmem>>, vector<16x8xf32>,
    %c18_144 = arith.constant 18 : index
    %c0_145 = arith.constant 0 : index
    %106 = vector.load %arg5[%c18_144, %c0_145] : memref<72x32xf32, #tpu.memory_space<vmem>>, vector<16x8xf32>
    %c16_146 = arith.constant 16 : index
    %c0_147 = arith.constant 0 : index
    %107 = vector.load %arg6[%c16_146, %c0_147] : memref<64x88xf32, #tpu.memory_space<vmem>>, vector<16x8xf32>
    tpu.vector_store %arg6[%c16_146, %c0_147], %106 {strides = array<i32>} : memref<64x88xf32, #tpu.memory_space<vmem>>, vector<16x8xf32>,
    %c18_148 = arith.constant 18 : index
    %c8_149 = arith.constant 8 : index
    %108 = vector.load %arg5[%c18_148, %c8_149] : memref<72x32xf32, #tpu.memory_space<vmem>>, vector<16x8xf32>
    %c16_150 = arith.constant 16 : index
    %c8_151 = arith.constant 8 : index
    %109 = vector.load %arg6[%c16_150, %c8_151] : memref<64x88xf32, #tpu.memory_space<vmem>>, vector<16x8xf32>
    tpu.vector_store %arg6[%c16_150, %c8_151], %108 {strides = array<i32>} : memref<64x88xf32, #tpu.memory_space<vmem>>, vector<16x8xf32>,
    %c18_152 = arith.constant 18 : index
    %c16_153 = arith.constant 16 : index
    %110 = vector.load %arg5[%c18_152, %c16_153] : memref<72x32xf32, #tpu.memory_space<vmem>>, vector<16x8xf32>
    %c16_154 = arith.constant 16 : index
    %c16_155 = arith.constant 16 : index
    %111 = vector.load %arg6[%c16_154, %c16_155] : memref<64x88xf32, #tpu.memory_space<vmem>>, vector<16x8xf32>
    tpu.vector_store %arg6[%c16_154, %c16_155], %110 {strides = array<i32>} : memref<64x88xf32, #tpu.memory_space<vmem>>, vector<16x8xf32>,
    %c18_156 = arith.constant 18 : index
    %c24_157 = arith.constant 24 : index
    %112 = vector.load %arg5[%c18_156, %c24_157] : memref<72x32xf32, #tpu.memory_space<vmem>>, vector<16x8xf32>
    %c16_158 = arith.constant 16 : index
    %c24_159 = arith.constant 24 : index
    %113 = vector.load %arg6[%c16_158, %c24_159] : memref<64x88xf32, #tpu.memory_space<vmem>>, vector<16x8xf32>
    tpu.vector_store %arg6[%c16_158, %c24_159], %112 {strides = array<i32>} : memref<64x88xf32, #tpu.memory_space<vmem>>, vector<16x8xf32>,
    %c19 = arith.constant 19 : index
    %c0_160 = arith.constant 0 : index
    %114 = vector.load %arg5[%c19, %c0_160] : memref<72x32xf32, #tpu.memory_space<vmem>>, vector<16x8xf32>
    %c16_161 = arith.constant 16 : index
    %c32_162 = arith.constant 32 : index
    %115 = vector.load %arg6[%c16_161, %c32_162] : memref<64x88xf32, #tpu.memory_space<vmem>>, vector<16x8xf32>
    tpu.vector_store %arg6[%c16_161, %c32_162], %114 {strides = array<i32>} : memref<64x88xf32, #tpu.memory_space<vmem>>, vector<16x8xf32>,
    %c19_163 = arith.constant 19 : index
    %c8_164 = arith.constant 8 : index
    %116 = vector.load %arg5[%c19_163, %c8_164] : memref<72x32xf32, #tpu.memory_space<vmem>>, vector<16x8xf32>
    %c16_165 = arith.constant 16 : index
    %c40_166 = arith.constant 40 : index
    %117 = vector.load %arg6[%c16_165, %c40_166] : memref<64x88xf32, #tpu.memory_space<vmem>>, vector<16x8xf32>
    tpu.vector_store %arg6[%c16_165, %c40_166], %116 {strides = array<i32>} : memref<64x88xf32, #tpu.memory_space<vmem>>, vector<16x8xf32>,
    %c19_167 = arith.constant 19 : index
    %c16_168 = arith.constant 16 : index
    %118 = vector.load %arg5[%c19_167, %c16_168] : memref<72x32xf32, #tpu.memory_space<vmem>>, vector<16x8xf32>
    %c16_169 = arith.constant 16 : index
    %c48_170 = arith.constant 48 : index
    %119 = vector.load %arg6[%c16_169, %c48_170] : memref<64x88xf32, #tpu.memory_space<vmem>>, vector<16x8xf32>
    tpu.vector_store %arg6[%c16_169, %c48_170], %118 {strides = array<i32>} : memref<64x88xf32, #tpu.memory_space<vmem>>, vector<16x8xf32>,
    %c19_171 = arith.constant 19 : index
    %c24_172 = arith.constant 24 : index
    %120 = vector.load %arg5[%c19_171, %c24_172] : memref<72x32xf32, #tpu.memory_space<vmem>>, vector<16x8xf32>
    %c16_173 = arith.constant 16 : index
    %c56_174 = arith.constant 56 : index
    %121 = vector.load %arg6[%c16_173, %c56_174] : memref<64x88xf32, #tpu.memory_space<vmem>>, vector<16x8xf32>
    tpu.vector_store %arg6[%c16_173, %c56_174], %120 {strides = array<i32>} : memref<64x88xf32, #tpu.memory_space<vmem>>, vector<16x8xf32>,
    %c20 = arith.constant 20 : index
    %c0_175 = arith.constant 0 : index
    %122 = vector.load %arg5[%c20, %c0_175] : memref<72x32xf32, #tpu.memory_space<vmem>>, vector<16x8xf32>
    %c16_176 = arith.constant 16 : index
    %c64_177 = arith.constant 64 : index
    %123 = vector.load %arg6[%c16_176, %c64_177] : memref<64x88xf32, #tpu.memory_space<vmem>>, vector<16x8xf32>
    tpu.vector_store %arg6[%c16_176, %c64_177], %122 {strides = array<i32>} : memref<64x88xf32, #tpu.memory_space<vmem>>, vector<16x8xf32>,
    %c20_178 = arith.constant 20 : index
    %c8_179 = arith.constant 8 : index
    %124 = vector.load %arg5[%c20_178, %c8_179] : memref<72x32xf32, #tpu.memory_space<vmem>>, vector<16x8xf32>
    %c16_180 = arith.constant 16 : index
    %c72_181 = arith.constant 72 : index
    %125 = vector.load %arg6[%c16_180, %c72_181] : memref<64x88xf32, #tpu.memory_space<vmem>>, vector<16x8xf32>
    tpu.vector_store %arg6[%c16_180, %c72_181], %124 {strides = array<i32>} : memref<64x88xf32, #tpu.memory_space<vmem>>, vector<16x8xf32>,
    %c20_182 = arith.constant 20 : index
    %c16_183 = arith.constant 16 : index
    %126 = vector.load %arg5[%c20_182, %c16_183] : memref<72x32xf32, #tpu.memory_space<vmem>>, vector<16x8xf32>
    %c16_184 = arith.constant 16 : index
    %c80_185 = arith.constant 80 : index
    %127 = vector.load %arg6[%c16_184, %c80_185] : memref<64x88xf32, #tpu.memory_space<vmem>>, vector<16x8xf32>
    tpu.vector_store %arg6[%c16_184, %c80_185], %126 {strides = array<i32>} : memref<64x88xf32, #tpu.memory_space<vmem>>, vector<16x8xf32>,
    %c36_186 = arith.constant 36 : index
    %c0_187 = arith.constant 0 : index
    %128 = vector.load %arg5[%c36_186, %c0_187] : memref<72x32xf32, #tpu.memory_space<vmem>>, vector<16x8xf32>
    %c32_188 = arith.constant 32 : index
    %c0_189 = arith.constant 0 : index
    %129 = vector.load %arg6[%c32_188, %c0_189] : memref<64x88xf32, #tpu.memory_space<vmem>>, vector<16x8xf32>
    tpu.vector_store %arg6[%c32_188, %c0_189], %128 {strides = array<i32>} : memref<64x88xf32, #tpu.memory_space<vmem>>, vector<16x8xf32>,
    %c36_190 = arith.constant 36 : index
    %c8_191 = arith.constant 8 : index
    %130 = vector.load %arg5[%c36_190, %c8_191] : memref<72x32xf32, #tpu.memory_space<vmem>>, vector<16x8xf32>
    %c32_192 = arith.constant 32 : index
    %c8_193 = arith.constant 8 : index
    %131 = vector.load %arg6[%c32_192, %c8_193] : memref<64x88xf32, #tpu.memory_space<vmem>>, vector<16x8xf32>
    tpu.vector_store %arg6[%c32_192, %c8_193], %130 {strides = array<i32>} : memref<64x88xf32, #tpu.memory_space<vmem>>, vector<16x8xf32>,
    %c36_194 = arith.constant 36 : index
    %c16_195 = arith.constant 16 : index
    %132 = vector.load %arg5[%c36_194, %c16_195] : memref<72x32xf32, #tpu.memory_space<vmem>>, vector<16x8xf32>
    %c32_196 = arith.constant 32 : index
    %c16_197 = arith.constant 16 : index
    %133 = vector.load %arg6[%c32_196, %c16_197] : memref<64x88xf32, #tpu.memory_space<vmem>>, vector<16x8xf32>
    tpu.vector_store %arg6[%c32_196, %c16_197], %132 {strides = array<i32>} : memref<64x88xf32, #tpu.memory_space<vmem>>, vector<16x8xf32>,
    %c36_198 = arith.constant 36 : index
    %c24_199 = arith.constant 24 : index
    %134 = vector.load %arg5[%c36_198, %c24_199] : memref<72x32xf32, #tpu.memory_space<vmem>>, vector<16x8xf32>
    %c32_200 = arith.constant 32 : index
    %c24_201 = arith.constant 24 : index
    %135 = vector.load %arg6[%c32_200, %c24_201] : memref<64x88xf32, #tpu.memory_space<vmem>>, vector<16x8xf32>
    tpu.vector_store %arg6[%c32_200, %c24_201], %134 {strides = array<i32>} : memref<64x88xf32, #tpu.memory_space<vmem>>, vector<16x8xf32>,
    %c37 = arith.constant 37 : index
    %c0_202 = arith.constant 0 : index
    %136 = vector.load %arg5[%c37, %c0_202] : memref<72x32xf32, #tpu.memory_space<vmem>>, vector<16x8xf32>
    %c32_203 = arith.constant 32 : index
    %c32_204 = arith.constant 32 : index
    %137 = vector.load %arg6[%c32_203, %c32_204] : memref<64x88xf32, #tpu.memory_space<vmem>>, vector<16x8xf32>
    tpu.vector_store %arg6[%c32_203, %c32_204], %136 {strides = array<i32>} : memref<64x88xf32, #tpu.memory_space<vmem>>, vector<16x8xf32>,
    %c37_205 = arith.constant 37 : index
    %c8_206 = arith.constant 8 : index
    %138 = vector.load %arg5[%c37_205, %c8_206] : memref<72x32xf32, #tpu.memory_space<vmem>>, vector<16x8xf32>
    %c32_207 = arith.constant 32 : index
    %c40_208 = arith.constant 40 : index
    %139 = vector.load %arg6[%c32_207, %c40_208] : memref<64x88xf32, #tpu.memory_space<vmem>>, vector<16x8xf32>
    tpu.vector_store %arg6[%c32_207, %c40_208], %138 {strides = array<i32>} : memref<64x88xf32, #tpu.memory_space<vmem>>, vector<16x8xf32>,
    %c37_209 = arith.constant 37 : index
    %c16_210 = arith.constant 16 : index
    %140 = vector.load %arg5[%c37_209, %c16_210] : memref<72x32xf32, #tpu.memory_space<vmem>>, vector<16x8xf32>
    %c32_211 = arith.constant 32 : index
    %c48_212 = arith.constant 48 : index
    %141 = vector.load %arg6[%c32_211, %c48_212] : memref<64x88xf32, #tpu.memory_space<vmem>>, vector<16x8xf32>
    tpu.vector_store %arg6[%c32_211, %c48_212], %140 {strides = array<i32>} : memref<64x88xf32, #tpu.memory_space<vmem>>, vector<16x8xf32>,
    %c37_213 = arith.constant 37 : index
    %c24_214 = arith.constant 24 : index
    %142 = vector.load %arg5[%c37_213, %c24_214] : memref<72x32xf32, #tpu.memory_space<vmem>>, vector<16x8xf32>
    %c32_215 = arith.constant 32 : index
    %c56_216 = arith.constant 56 : index
    %143 = vector.load %arg6[%c32_215, %c56_216] : memref<64x88xf32, #tpu.memory_space<vmem>>, vector<16x8xf32>
    tpu.vector_store %arg6[%c32_215, %c56_216], %142 {strides = array<i32>} : memref<64x88xf32, #tpu.memory_space<vmem>>, vector<16x8xf32>,
    %c38 = arith.constant 38 : index
    %c0_217 = arith.constant 0 : index
    %144 = vector.load %arg5[%c38, %c0_217] : memref<72x32xf32, #tpu.memory_space<vmem>>, vector<16x8xf32>
    %c32_218 = arith.constant 32 : index
    %c64_219 = arith.constant 64 : index
    %145 = vector.load %arg6[%c32_218, %c64_219] : memref<64x88xf32, #tpu.memory_space<vmem>>, vector<16x8xf32>
    tpu.vector_store %arg6[%c32_218, %c64_219], %144 {strides = array<i32>} : memref<64x88xf32, #tpu.memory_space<vmem>>, vector<16x8xf32>,
    %c38_220 = arith.constant 38 : index
    %c8_221 = arith.constant 8 : index
    %146 = vector.load %arg5[%c38_220, %c8_221] : memref<72x32xf32, #tpu.memory_space<vmem>>, vector<16x8xf32>
    %c32_222 = arith.constant 32 : index
    %c72_223 = arith.constant 72 : index
    %147 = vector.load %arg6[%c32_222, %c72_223] : memref<64x88xf32, #tpu.memory_space<vmem>>, vector<16x8xf32>
    tpu.vector_store %arg6[%c32_222, %c72_223], %146 {strides = array<i32>} : memref<64x88xf32, #tpu.memory_space<vmem>>, vector<16x8xf32>,
    %c38_224 = arith.constant 38 : index
    %c16_225 = arith.constant 16 : index
    %148 = vector.load %arg5[%c38_224, %c16_225] : memref<72x32xf32, #tpu.memory_space<vmem>>, vector<16x8xf32>
    %c32_226 = arith.constant 32 : index
    %c80_227 = arith.constant 80 : index
    %149 = vector.load %arg6[%c32_226, %c80_227] : memref<64x88xf32, #tpu.memory_space<vmem>>, vector<16x8xf32>
    tpu.vector_store %arg6[%c32_226, %c80_227], %148 {strides = array<i32>} : memref<64x88xf32, #tpu.memory_space<vmem>>, vector<16x8xf32>,
    %c54_228 = arith.constant 54 : index
    %c0_229 = arith.constant 0 : index
    %150 = vector.load %arg5[%c54_228, %c0_229] : memref<72x32xf32, #tpu.memory_space<vmem>>, vector<16x8xf32>
    %c48_230 = arith.constant 48 : index
    %c0_231 = arith.constant 0 : index
    %151 = vector.load %arg6[%c48_230, %c0_231] : memref<64x88xf32, #tpu.memory_space<vmem>>, vector<16x8xf32>
    tpu.vector_store %arg6[%c48_230, %c0_231], %150 {strides = array<i32>} : memref<64x88xf32, #tpu.memory_space<vmem>>, vector<16x8xf32>,
    %c54_232 = arith.constant 54 : index
    %c8_233 = arith.constant 8 : index
    %152 = vector.load %arg5[%c54_232, %c8_233] : memref<72x32xf32, #tpu.memory_space<vmem>>, vector<16x8xf32>
    %c48_234 = arith.constant 48 : index
    %c8_235 = arith.constant 8 : index
    %153 = vector.load %arg6[%c48_234, %c8_235] : memref<64x88xf32, #tpu.memory_space<vmem>>, vector<16x8xf32>
    tpu.vector_store %arg6[%c48_234, %c8_235], %152 {strides = array<i32>} : memref<64x88xf32, #tpu.memory_space<vmem>>, vector<16x8xf32>,
    %c54_236 = arith.constant 54 : index
    %c16_237 = arith.constant 16 : index
    %154 = vector.load %arg5[%c54_236, %c16_237] : memref<72x32xf32, #tpu.memory_space<vmem>>, vector<16x8xf32>
    %c48_238 = arith.constant 48 : index
    %c16_239 = arith.constant 16 : index
    %155 = vector.load %arg6[%c48_238, %c16_239] : memref<64x88xf32, #tpu.memory_space<vmem>>, vector<16x8xf32>
    tpu.vector_store %arg6[%c48_238, %c16_239], %154 {strides = array<i32>} : memref<64x88xf32, #tpu.memory_space<vmem>>, vector<16x8xf32>,
    %c54_240 = arith.constant 54 : index
    %c24_241 = arith.constant 24 : index
    %156 = vector.load %arg5[%c54_240, %c24_241] : memref<72x32xf32, #tpu.memory_space<vmem>>, vector<16x8xf32>
    %c48_242 = arith.constant 48 : index
    %c24_243 = arith.constant 24 : index
    %157 = vector.load %arg6[%c48_242, %c24_243] : memref<64x88xf32, #tpu.memory_space<vmem>>, vector<16x8xf32>
    tpu.vector_store %arg6[%c48_242, %c24_243], %156 {strides = array<i32>} : memref<64x88xf32, #tpu.memory_space<vmem>>, vector<16x8xf32>,
    %c55 = arith.constant 55 : index
    %c0_244 = arith.constant 0 : index
    %158 = vector.load %arg5[%c55, %c0_244] : memref<72x32xf32, #tpu.memory_space<vmem>>, vector<16x8xf32>
    %c48_245 = arith.constant 48 : index
    %c32_246 = arith.constant 32 : index
    %159 = vector.load %arg6[%c48_245, %c32_246] : memref<64x88xf32, #tpu.memory_space<vmem>>, vector<16x8xf32>
    tpu.vector_store %arg6[%c48_245, %c32_246], %158 {strides = array<i32>} : memref<64x88xf32, #tpu.memory_space<vmem>>, vector<16x8xf32>,
    %c55_247 = arith.constant 55 : index
    %c8_248 = arith.constant 8 : index
    %160 = vector.load %arg5[%c55_247, %c8_248] : memref<72x32xf32, #tpu.memory_space<vmem>>, vector<16x8xf32>
    %c48_249 = arith.constant 48 : index
    %c40_250 = arith.constant 40 : index
    %161 = vector.load %arg6[%c48_249, %c40_250] : memref<64x88xf32, #tpu.memory_space<vmem>>, vector<16x8xf32>
    tpu.vector_store %arg6[%c48_249, %c40_250], %160 {strides = array<i32>} : memref<64x88xf32, #tpu.memory_space<vmem>>, vector<16x8xf32>,
    %c55_251 = arith.constant 55 : index
    %c16_252 = arith.constant 16 : index
    %162 = vector.load %arg5[%c55_251, %c16_252] : memref<72x32xf32, #tpu.memory_space<vmem>>, vector<16x8xf32>
    %c48_253 = arith.constant 48 : index
    %c48_254 = arith.constant 48 : index
    %163 = vector.load %arg6[%c48_253, %c48_254] : memref<64x88xf32, #tpu.memory_space<vmem>>, vector<16x8xf32>
    tpu.vector_store %arg6[%c48_253, %c48_254], %162 {strides = array<i32>} : memref<64x88xf32, #tpu.memory_space<vmem>>, vector<16x8xf32>,
    %c55_255 = arith.constant 55 : index
    %c24_256 = arith.constant 24 : index
    %164 = vector.load %arg5[%c55_255, %c24_256] : memref<72x32xf32, #tpu.memory_space<vmem>>, vector<16x8xf32>
    %c48_257 = arith.constant 48 : index
    %c56_258 = arith.constant 56 : index
    %165 = vector.load %arg6[%c48_257, %c56_258] : memref<64x88xf32, #tpu.memory_space<vmem>>, vector<16x8xf32>
    tpu.vector_store %arg6[%c48_257, %c56_258], %164 {strides = array<i32>} : memref<64x88xf32, #tpu.memory_space<vmem>>, vector<16x8xf32>,
    %c56_259 = arith.constant 56 : index
    %c0_260 = arith.constant 0 : index
    %166 = vector.load %arg5[%c56_259, %c0_260] : memref<72x32xf32, #tpu.memory_space<vmem>>, vector<16x8xf32>
    %c48_261 = arith.constant 48 : index
    %c64_262 = arith.constant 64 : index
    %167 = vector.load %arg6[%c48_261, %c64_262] : memref<64x88xf32, #tpu.memory_space<vmem>>, vector<16x8xf32>
    tpu.vector_store %arg6[%c48_261, %c64_262], %166 {strides = array<i32>} : memref<64x88xf32, #tpu.memory_space<vmem>>, vector<16x8xf32>,
    %c56_263 = arith.constant 56 : index
    %c8_264 = arith.constant 8 : index
    %168 = vector.load %arg5[%c56_263, %c8_264] : memref<72x32xf32, #tpu.memory_space<vmem>>, vector<16x8xf32>
    %c48_265 = arith.constant 48 : index
    %c72_266 = arith.constant 72 : index
    %169 = vector.load %arg6[%c48_265, %c72_266] : memref<64x88xf32, #tpu.memory_space<vmem>>, vector<16x8xf32>
    tpu.vector_store %arg6[%c48_265, %c72_266], %168 {strides = array<i32>} : memref<64x88xf32, #tpu.memory_space<vmem>>, vector<16x8xf32>,
    %c56_267 = arith.constant 56 : index
    %c16_268 = arith.constant 16 : index
    %170 = vector.load %arg5[%c56_267, %c16_268] : memref<72x32xf32, #tpu.memory_space<vmem>>, vector<16x8xf32>
    %c48_269 = arith.constant 48 : index
    %c80_270 = arith.constant 80 : index
    %171 = vector.load %arg6[%c48_269, %c80_270] : memref<64x88xf32, #tpu.memory_space<vmem>>, vector<16x8xf32>
    tpu.vector_store %arg6[%c48_269, %c80_270], %170 {strides = array<i32>} : memref<64x88xf32, #tpu.memory_space<vmem>>, vector<16x8xf32>,
    %c0_271 = arith.constant 0 : index
    %c0_272 = arith.constant 0 : index
    %172 = vector.load %arg6[%c0_271, %c0_272] : memref<64x88xf32, #tpu.memory_space<vmem>>, vector<64x88xf32>
    %cst_273 = arith.constant dense<0.000000e+00> : vector<64x64xf32>
    %173 = tpu.matmul %172, %1, %cst_273 {dimension_numbers = #tpu.dot_dimension_numbers<[1], [0], [0], [1], [0, 0, 1, 1], [], []>} : vector<64x88xf32>, vector<88x64xf32>, vector<64x64xf32> -> vector<64x64xf32>
    %174 = vector.extract_strided_slice %173 {offsets = [0, 0], sizes = [64, 16], strides = [1, 1]} : vector<64x64xf32> to vector<64x16xf32>
    %175 = vector.extract_strided_slice %173 {offsets = [0, 16], sizes = [64, 16], strides = [1, 1]} : vector<64x64xf32> to vector<64x16xf32>
    %176 = arith.maximumf %174, %175 : vector<64x16xf32>
    %177 = vector.extract_strided_slice %173 {offsets = [0, 32], sizes = [64, 16], strides = [1, 1]} : vector<64x64xf32> to vector<64x16xf32>
    %178 = vector.extract_strided_slice %173 {offsets = [0, 48], sizes = [64, 16], strides = [1, 1]} : vector<64x64xf32> to vector<64x16xf32>
    %179 = arith.maximumf %177, %178 : vector<64x16xf32>
    %180 = arith.maximumf %176, %179 : vector<64x16xf32>
    %181 = vector.broadcast %7 : vector<1x16xf32> to vector<64x16xf32>
    %182 = arith.addf %180, %181 : vector<64x16xf32>
    %cst_274 = arith.constant 0.000000e+00 : f32
    %183 = vector.broadcast %cst_274 : f32 to vector<96x16xf32>
    %c0_275 = arith.constant 0 : index
    %c0_276 = arith.constant 0 : index
    %184 = vector.load %arg7[%c0_275, %c0_276] : memref<96x16xf32, #tpu.memory_space<vmem>>, vector<96x16xf32>
    tpu.vector_store %arg7[%c0_275, %c0_276], %183 {strides = array<i32>} : memref<96x16xf32, #tpu.memory_space<vmem>>, vector<96x16xf32>,
    %185 = vector.extract_strided_slice %182 {offsets = [0, 0], sizes = [16, 16], strides = [1, 1]} : vector<64x16xf32> to vector<16x16xf32>
    %c3_277 = arith.constant 3 : index
    %c0_278 = arith.constant 0 : index
    %186 = vector.load %arg7[%c3_277, %c0_278] : memref<96x16xf32, #tpu.memory_space<vmem>>, vector<16x16xf32>
    tpu.vector_store %arg7[%c3_277, %c0_278], %185 {strides = array<i32>} : memref<96x16xf32, #tpu.memory_space<vmem>>, vector<16x16xf32>,
    %187 = vector.extract_strided_slice %182 {offsets = [16, 0], sizes = [16, 16], strides = [1, 1]} : vector<64x16xf32> to vector<16x16xf32>
    %c27 = arith.constant 27 : index
    %c0_279 = arith.constant 0 : index
    %188 = vector.load %arg7[%c27, %c0_279] : memref<96x16xf32, #tpu.memory_space<vmem>>, vector<16x16xf32>
    tpu.vector_store %arg7[%c27, %c0_279], %187 {strides = array<i32>} : memref<96x16xf32, #tpu.memory_space<vmem>>, vector<16x16xf32>,
    %189 = vector.extract_strided_slice %182 {offsets = [32, 0], sizes = [16, 16], strides = [1, 1]} : vector<64x16xf32> to vector<16x16xf32>
    %c51 = arith.constant 51 : index
    %c0_280 = arith.constant 0 : index
    %190 = vector.load %arg7[%c51, %c0_280] : memref<96x16xf32, #tpu.memory_space<vmem>>, vector<16x16xf32>
    tpu.vector_store %arg7[%c51, %c0_280], %189 {strides = array<i32>} : memref<96x16xf32, #tpu.memory_space<vmem>>, vector<16x16xf32>,
    %191 = vector.extract_strided_slice %182 {offsets = [48, 0], sizes = [16, 16], strides = [1, 1]} : vector<64x16xf32> to vector<16x16xf32>
    %c75 = arith.constant 75 : index
    %c0_281 = arith.constant 0 : index
    %192 = vector.load %arg7[%c75, %c0_281] : memref<96x16xf32, #tpu.memory_space<vmem>>, vector<16x16xf32>
    tpu.vector_store %arg7[%c75, %c0_281], %191 {strides = array<i32>} : memref<96x16xf32, #tpu.memory_space<vmem>>, vector<16x16xf32>,
    %c0_282 = arith.constant 0 : index
    %c0_283 = arith.constant 0 : index
    %193 = vector.load %arg7[%c0_282, %c0_283] : memref<96x16xf32, #tpu.memory_space<vmem>>, vector<16x16xf32>
    %c0_284 = arith.constant 0 : index
    %c0_285 = arith.constant 0 : index
    %194 = vector.load %arg8[%c0_284, %c0_285] : memref<96x224xf32, #tpu.memory_space<vmem>>, vector<16x16xf32>
    tpu.vector_store %arg8[%c0_284, %c0_285], %193 {strides = array<i32>} : memref<96x224xf32, #tpu.memory_space<vmem>>, vector<16x16xf32>,
    %c1_286 = arith.constant 1 : index
    %c0_287 = arith.constant 0 : index
    %195 = vector.load %arg7[%c1_286, %c0_287] : memref<96x16xf32, #tpu.memory_space<vmem>>, vector<16x16xf32>
    %c0_288 = arith.constant 0 : index
    %c16_289 = arith.constant 16 : index
    %196 = vector.load %arg8[%c0_288, %c16_289] : memref<96x224xf32, #tpu.memory_space<vmem>>, vector<16x16xf32>
    tpu.vector_store %arg8[%c0_288, %c16_289], %195 {strides = array<i32>} : memref<96x224xf32, #tpu.memory_space<vmem>>, vector<16x16xf32>,
    %c2_290 = arith.constant 2 : index
    %c0_291 = arith.constant 0 : index
    %197 = vector.load %arg7[%c2_290, %c0_291] : memref<96x16xf32, #tpu.memory_space<vmem>>, vector<16x16xf32>
    %c0_292 = arith.constant 0 : index
    %c32_293 = arith.constant 32 : index
    %198 = vector.load %arg8[%c0_292, %c32_293] : memref<96x224xf32, #tpu.memory_space<vmem>>, vector<16x16xf32>
    tpu.vector_store %arg8[%c0_292, %c32_293], %197 {strides = array<i32>} : memref<96x224xf32, #tpu.memory_space<vmem>>, vector<16x16xf32>,
    %c3_294 = arith.constant 3 : index
    %c0_295 = arith.constant 0 : index
    %199 = vector.load %arg7[%c3_294, %c0_295] : memref<96x16xf32, #tpu.memory_space<vmem>>, vector<16x16xf32>
    %c0_296 = arith.constant 0 : index
    %c48_297 = arith.constant 48 : index
    %200 = vector.load %arg8[%c0_296, %c48_297] : memref<96x224xf32, #tpu.memory_space<vmem>>, vector<16x16xf32>
    tpu.vector_store %arg8[%c0_296, %c48_297], %199 {strides = array<i32>} : memref<96x224xf32, #tpu.memory_space<vmem>>, vector<16x16xf32>,
    %c4_298 = arith.constant 4 : index
    %c0_299 = arith.constant 0 : index
    %201 = vector.load %arg7[%c4_298, %c0_299] : memref<96x16xf32, #tpu.memory_space<vmem>>, vector<16x16xf32>
    %c0_300 = arith.constant 0 : index
    %c64_301 = arith.constant 64 : index
    %202 = vector.load %arg8[%c0_300, %c64_301] : memref<96x224xf32, #tpu.memory_space<vmem>>, vector<16x16xf32>
    tpu.vector_store %arg8[%c0_300, %c64_301], %201 {strides = array<i32>} : memref<96x224xf32, #tpu.memory_space<vmem>>, vector<16x16xf32>,
    %c5 = arith.constant 5 : index
    %c0_302 = arith.constant 0 : index
    %203 = vector.load %arg7[%c5, %c0_302] : memref<96x16xf32, #tpu.memory_space<vmem>>, vector<16x16xf32>
    %c0_303 = arith.constant 0 : index
    %c80_304 = arith.constant 80 : index
    %204 = vector.load %arg8[%c0_303, %c80_304] : memref<96x224xf32, #tpu.memory_space<vmem>>, vector<16x16xf32>
    tpu.vector_store %arg8[%c0_303, %c80_304], %203 {strides = array<i32>} : memref<96x224xf32, #tpu.memory_space<vmem>>, vector<16x16xf32>,
    %c6 = arith.constant 6 : index
    %c0_305 = arith.constant 0 : index
    %205 = vector.load %arg7[%c6, %c0_305] : memref<96x16xf32, #tpu.memory_space<vmem>>, vector<16x16xf32>
    %c0_306 = arith.constant 0 : index
    %c96 = arith.constant 96 : index
    %206 = vector.load %arg8[%c0_306, %c96] : memref<96x224xf32, #tpu.memory_space<vmem>>, vector<16x16xf32>
    tpu.vector_store %arg8[%c0_306, %c96], %205 {strides = array<i32>} : memref<96x224xf32, #tpu.memory_space<vmem>>, vector<16x16xf32>,
    %c24_307 = arith.constant 24 : index
    %c0_308 = arith.constant 0 : index
    %207 = vector.load %arg7[%c24_307, %c0_308] : memref<96x16xf32, #tpu.memory_space<vmem>>, vector<16x16xf32>
    %c0_309 = arith.constant 0 : index
    %c112 = arith.constant 112 : index
    %208 = vector.load %arg8[%c0_309, %c112] : memref<96x224xf32, #tpu.memory_space<vmem>>, vector<16x16xf32>
    tpu.vector_store %arg8[%c0_309, %c112], %207 {strides = array<i32>} : memref<96x224xf32, #tpu.memory_space<vmem>>, vector<16x16xf32>,
    %c25 = arith.constant 25 : index
    %c0_310 = arith.constant 0 : index
    %209 = vector.load %arg7[%c25, %c0_310] : memref<96x16xf32, #tpu.memory_space<vmem>>, vector<16x16xf32>
    %c0_311 = arith.constant 0 : index
    %c128 = arith.constant 128 : index
    %210 = vector.load %arg8[%c0_311, %c128] : memref<96x224xf32, #tpu.memory_space<vmem>>, vector<16x16xf32>
    tpu.vector_store %arg8[%c0_311, %c128], %209 {strides = array<i32>} : memref<96x224xf32, #tpu.memory_space<vmem>>, vector<16x16xf32>,
    %c26 = arith.constant 26 : index
    %c0_312 = arith.constant 0 : index
    %211 = vector.load %arg7[%c26, %c0_312] : memref<96x16xf32, #tpu.memory_space<vmem>>, vector<16x16xf32>
    %c0_313 = arith.constant 0 : index
    %c144 = arith.constant 144 : index
    %212 = vector.load %arg8[%c0_313, %c144] : memref<96x224xf32, #tpu.memory_space<vmem>>, vector<16x16xf32>
    tpu.vector_store %arg8[%c0_313, %c144], %211 {strides = array<i32>} : memref<96x224xf32, #tpu.memory_space<vmem>>, vector<16x16xf32>,
    %c27_314 = arith.constant 27 : index
    %c0_315 = arith.constant 0 : index
    %213 = vector.load %arg7[%c27_314, %c0_315] : memref<96x16xf32, #tpu.memory_space<vmem>>, vector<16x16xf32>
    %c0_316 = arith.constant 0 : index
    %c160 = arith.constant 160 : index
    %214 = vector.load %arg8[%c0_316, %c160] : memref<96x224xf32, #tpu.memory_space<vmem>>, vector<16x16xf32>
    tpu.vector_store %arg8[%c0_316, %c160], %213 {strides = array<i32>} : memref<96x224xf32, #tpu.memory_space<vmem>>, vector<16x16xf32>,
    %c28 = arith.constant 28 : index
    %c0_317 = arith.constant 0 : index
    %215 = vector.load %arg7[%c28, %c0_317] : memref<96x16xf32, #tpu.memory_space<vmem>>, vector<16x16xf32>
    %c0_318 = arith.constant 0 : index
    %c176 = arith.constant 176 : index
    %216 = vector.load %arg8[%c0_318, %c176] : memref<96x224xf32, #tpu.memory_space<vmem>>, vector<16x16xf32>
    tpu.vector_store %arg8[%c0_318, %c176], %215 {strides = array<i32>} : memref<96x224xf32, #tpu.memory_space<vmem>>, vector<16x16xf32>,
    %c29 = arith.constant 29 : index
    %c0_319 = arith.constant 0 : index
    %217 = vector.load %arg7[%c29, %c0_319] : memref<96x16xf32, #tpu.memory_space<vmem>>, vector<16x16xf32>
    %c0_320 = arith.constant 0 : index
    %c192 = arith.constant 192 : index
    %218 = vector.load %arg8[%c0_320, %c192] : memref<96x224xf32, #tpu.memory_space<vmem>>, vector<16x16xf32>
    tpu.vector_store %arg8[%c0_320, %c192], %217 {strides = array<i32>} : memref<96x224xf32, #tpu.memory_space<vmem>>, vector<16x16xf32>,
    %c30 = arith.constant 30 : index
    %c0_321 = arith.constant 0 : index
    %219 = vector.load %arg7[%c30, %c0_321] : memref<96x16xf32, #tpu.memory_space<vmem>>, vector<16x16xf32>
    %c0_322 = arith.constant 0 : index
    %c208 = arith.constant 208 : index
    %220 = vector.load %arg8[%c0_322, %c208] : memref<96x224xf32, #tpu.memory_space<vmem>>, vector<16x16xf32>
    tpu.vector_store %arg8[%c0_322, %c208], %219 {strides = array<i32>} : memref<96x224xf32, #tpu.memory_space<vmem>>, vector<16x16xf32>,
    %c48_323 = arith.constant 48 : index
    %c0_324 = arith.constant 0 : index
    %221 = vector.load %arg7[%c48_323, %c0_324] : memref<96x16xf32, #tpu.memory_space<vmem>>, vector<16x16xf32>
    %c16_325 = arith.constant 16 : index
    %c0_326 = arith.constant 0 : index
    %222 = vector.load %arg8[%c16_325, %c0_326] : memref<96x224xf32, #tpu.memory_space<vmem>>, vector<16x16xf32>
    tpu.vector_store %arg8[%c16_325, %c0_326], %221 {strides = array<i32>} : memref<96x224xf32, #tpu.memory_space<vmem>>, vector<16x16xf32>,
    %c49 = arith.constant 49 : index
    %c0_327 = arith.constant 0 : index
    %223 = vector.load %arg7[%c49, %c0_327] : memref<96x16xf32, #tpu.memory_space<vmem>>, vector<16x16xf32>
    %c16_328 = arith.constant 16 : index
    %c16_329 = arith.constant 16 : index
    %224 = vector.load %arg8[%c16_328, %c16_329] : memref<96x224xf32, #tpu.memory_space<vmem>>, vector<16x16xf32>
    tpu.vector_store %arg8[%c16_328, %c16_329], %223 {strides = array<i32>} : memref<96x224xf32, #tpu.memory_space<vmem>>, vector<16x16xf32>,
    %c50 = arith.constant 50 : index
    %c0_330 = arith.constant 0 : index
    %225 = vector.load %arg7[%c50, %c0_330] : memref<96x16xf32, #tpu.memory_space<vmem>>, vector<16x16xf32>
    %c16_331 = arith.constant 16 : index
    %c32_332 = arith.constant 32 : index
    %226 = vector.load %arg8[%c16_331, %c32_332] : memref<96x224xf32, #tpu.memory_space<vmem>>, vector<16x16xf32>
    tpu.vector_store %arg8[%c16_331, %c32_332], %225 {strides = array<i32>} : memref<96x224xf32, #tpu.memory_space<vmem>>, vector<16x16xf32>,
    %c51_333 = arith.constant 51 : index
    %c0_334 = arith.constant 0 : index
    %227 = vector.load %arg7[%c51_333, %c0_334] : memref<96x16xf32, #tpu.memory_space<vmem>>, vector<16x16xf32>
    %c16_335 = arith.constant 16 : index
    %c48_336 = arith.constant 48 : index
    %228 = vector.load %arg8[%c16_335, %c48_336] : memref<96x224xf32, #tpu.memory_space<vmem>>, vector<16x16xf32>
    tpu.vector_store %arg8[%c16_335, %c48_336], %227 {strides = array<i32>} : memref<96x224xf32, #tpu.memory_space<vmem>>, vector<16x16xf32>,
    %c52 = arith.constant 52 : index
    %c0_337 = arith.constant 0 : index
    %229 = vector.load %arg7[%c52, %c0_337] : memref<96x16xf32, #tpu.memory_space<vmem>>, vector<16x16xf32>
    %c16_338 = arith.constant 16 : index
    %c64_339 = arith.constant 64 : index
    %230 = vector.load %arg8[%c16_338, %c64_339] : memref<96x224xf32, #tpu.memory_space<vmem>>, vector<16x16xf32>
    tpu.vector_store %arg8[%c16_338, %c64_339], %229 {strides = array<i32>} : memref<96x224xf32, #tpu.memory_space<vmem>>, vector<16x16xf32>,
    %c53 = arith.constant 53 : index
    %c0_340 = arith.constant 0 : index
    %231 = vector.load %arg7[%c53, %c0_340] : memref<96x16xf32, #tpu.memory_space<vmem>>, vector<16x16xf32>
    %c16_341 = arith.constant 16 : index
    %c80_342 = arith.constant 80 : index
    %232 = vector.load %arg8[%c16_341, %c80_342] : memref<96x224xf32, #tpu.memory_space<vmem>>, vector<16x16xf32>
    tpu.vector_store %arg8[%c16_341, %c80_342], %231 {strides = array<i32>} : memref<96x224xf32, #tpu.memory_space<vmem>>, vector<16x16xf32>,
    %c54_343 = arith.constant 54 : index
    %c0_344 = arith.constant 0 : index
    %233 = vector.load %arg7[%c54_343, %c0_344] : memref<96x16xf32, #tpu.memory_space<vmem>>, vector<16x16xf32>
    %c16_345 = arith.constant 16 : index
    %c96_346 = arith.constant 96 : index
    %234 = vector.load %arg8[%c16_345, %c96_346] : memref<96x224xf32, #tpu.memory_space<vmem>>, vector<16x16xf32>
    tpu.vector_store %arg8[%c16_345, %c96_346], %233 {strides = array<i32>} : memref<96x224xf32, #tpu.memory_space<vmem>>, vector<16x16xf32>,
    %c72_347 = arith.constant 72 : index
    %c0_348 = arith.constant 0 : index
    %235 = vector.load %arg7[%c72_347, %c0_348] : memref<96x16xf32, #tpu.memory_space<vmem>>, vector<16x16xf32>
    %c16_349 = arith.constant 16 : index
    %c112_350 = arith.constant 112 : index
    %236 = vector.load %arg8[%c16_349, %c112_350] : memref<96x224xf32, #tpu.memory_space<vmem>>, vector<16x16xf32>
    tpu.vector_store %arg8[%c16_349, %c112_350], %235 {strides = array<i32>} : memref<96x224xf32, #tpu.memory_space<vmem>>, vector<16x16xf32>,
    %c73 = arith.constant 73 : index
    %c0_351 = arith.constant 0 : index
    %237 = vector.load %arg7[%c73, %c0_351] : memref<96x16xf32, #tpu.memory_space<vmem>>, vector<16x16xf32>
    %c16_352 = arith.constant 16 : index
    %c128_353 = arith.constant 128 : index
    %238 = vector.load %arg8[%c16_352, %c128_353] : memref<96x224xf32, #tpu.memory_space<vmem>>, vector<16x16xf32>
    tpu.vector_store %arg8[%c16_352, %c128_353], %237 {strides = array<i32>} : memref<96x224xf32, #tpu.memory_space<vmem>>, vector<16x16xf32>,
    %c74 = arith.constant 74 : index
    %c0_354 = arith.constant 0 : index
    %239 = vector.load %arg7[%c74, %c0_354] : memref<96x16xf32, #tpu.memory_space<vmem>>, vector<16x16xf32>
    %c16_355 = arith.constant 16 : index
    %c144_356 = arith.constant 144 : index
    %240 = vector.load %arg8[%c16_355, %c144_356] : memref<96x224xf32, #tpu.memory_space<vmem>>, vector<16x16xf32>
    tpu.vector_store %arg8[%c16_355, %c144_356], %239 {strides = array<i32>} : memref<96x224xf32, #tpu.memory_space<vmem>>, vector<16x16xf32>,
    %c75_357 = arith.constant 75 : index
    %c0_358 = arith.constant 0 : index
    %241 = vector.load %arg7[%c75_357, %c0_358] : memref<96x16xf32, #tpu.memory_space<vmem>>, vector<16x16xf32>
    %c16_359 = arith.constant 16 : index
    %c160_360 = arith.constant 160 : index
    %242 = vector.load %arg8[%c16_359, %c160_360] : memref<96x224xf32, #tpu.memory_space<vmem>>, vector<16x16xf32>
    tpu.vector_store %arg8[%c16_359, %c160_360], %241 {strides = array<i32>} : memref<96x224xf32, #tpu.memory_space<vmem>>, vector<16x16xf32>,
    %c76 = arith.constant 76 : index
    %c0_361 = arith.constant 0 : index
    %243 = vector.load %arg7[%c76, %c0_361] : memref<96x16xf32, #tpu.memory_space<vmem>>, vector<16x16xf32>
    %c16_362 = arith.constant 16 : index
    %c176_363 = arith.constant 176 : index
    %244 = vector.load %arg8[%c16_362, %c176_363] : memref<96x224xf32, #tpu.memory_space<vmem>>, vector<16x16xf32>
    tpu.vector_store %arg8[%c16_362, %c176_363], %243 {strides = array<i32>} : memref<96x224xf32, #tpu.memory_space<vmem>>, vector<16x16xf32>,
    %c77 = arith.constant 77 : index
    %c0_364 = arith.constant 0 : index
    %245 = vector.load %arg7[%c77, %c0_364] : memref<96x16xf32, #tpu.memory_space<vmem>>, vector<16x16xf32>
    %c16_365 = arith.constant 16 : index
    %c192_366 = arith.constant 192 : index
    %246 = vector.load %arg8[%c16_365, %c192_366] : memref<96x224xf32, #tpu.memory_space<vmem>>, vector<16x16xf32>
    tpu.vector_store %arg8[%c16_365, %c192_366], %245 {strides = array<i32>} : memref<96x224xf32, #tpu.memory_space<vmem>>, vector<16x16xf32>,
    %c78 = arith.constant 78 : index
    %c0_367 = arith.constant 0 : index
    %247 = vector.load %arg7[%c78, %c0_367] : memref<96x16xf32, #tpu.memory_space<vmem>>, vector<16x16xf32>
    %c16_368 = arith.constant 16 : index
    %c208_369 = arith.constant 208 : index
    %248 = vector.load %arg8[%c16_368, %c208_369] : memref<96x224xf32, #tpu.memory_space<vmem>>, vector<16x16xf32>
    tpu.vector_store %arg8[%c16_368, %c208_369], %247 {strides = array<i32>} : memref<96x224xf32, #tpu.memory_space<vmem>>, vector<16x16xf32>,
    %c0_370 = arith.constant 0 : index
    %c0_371 = arith.constant 0 : index
    %249 = vector.load %arg7[%c0_370, %c0_371] : memref<96x16xf32, #tpu.memory_space<vmem>>, vector<16x16xf32>
    %c32_372 = arith.constant 32 : index
    %c0_373 = arith.constant 0 : index
    %250 = vector.load %arg8[%c32_372, %c0_373] : memref<96x224xf32, #tpu.memory_space<vmem>>, vector<16x16xf32>
    tpu.vector_store %arg8[%c32_372, %c0_373], %249 {strides = array<i32>} : memref<96x224xf32, #tpu.memory_space<vmem>>, vector<16x16xf32>,
    %c1_374 = arith.constant 1 : index
    %c0_375 = arith.constant 0 : index
    %251 = vector.load %arg7[%c1_374, %c0_375] : memref<96x16xf32, #tpu.memory_space<vmem>>, vector<16x16xf32>
    %c32_376 = arith.constant 32 : index
    %c16_377 = arith.constant 16 : index
    %252 = vector.load %arg8[%c32_376, %c16_377] : memref<96x224xf32, #tpu.memory_space<vmem>>, vector<16x16xf32>
    tpu.vector_store %arg8[%c32_376, %c16_377], %251 {strides = array<i32>} : memref<96x224xf32, #tpu.memory_space<vmem>>, vector<16x16xf32>,
    %c2_378 = arith.constant 2 : index
    %c0_379 = arith.constant 0 : index
    %253 = vector.load %arg7[%c2_378, %c0_379] : memref<96x16xf32, #tpu.memory_space<vmem>>, vector<16x16xf32>
    %c32_380 = arith.constant 32 : index
    %c32_381 = arith.constant 32 : index
    %254 = vector.load %arg8[%c32_380, %c32_381] : memref<96x224xf32, #tpu.memory_space<vmem>>, vector<16x16xf32>
    tpu.vector_store %arg8[%c32_380, %c32_381], %253 {strides = array<i32>} : memref<96x224xf32, #tpu.memory_space<vmem>>, vector<16x16xf32>,
    %c3_382 = arith.constant 3 : index
    %c0_383 = arith.constant 0 : index
    %255 = vector.load %arg7[%c3_382, %c0_383] : memref<96x16xf32, #tpu.memory_space<vmem>>, vector<16x16xf32>
    %c32_384 = arith.constant 32 : index
    %c48_385 = arith.constant 48 : index
    %256 = vector.load %arg8[%c32_384, %c48_385] : memref<96x224xf32, #tpu.memory_space<vmem>>, vector<16x16xf32>
    tpu.vector_store %arg8[%c32_384, %c48_385], %255 {strides = array<i32>} : memref<96x224xf32, #tpu.memory_space<vmem>>, vector<16x16xf32>,
    %c4_386 = arith.constant 4 : index
    %c0_387 = arith.constant 0 : index
    %257 = vector.load %arg7[%c4_386, %c0_387] : memref<96x16xf32, #tpu.memory_space<vmem>>, vector<16x16xf32>
    %c32_388 = arith.constant 32 : index
    %c64_389 = arith.constant 64 : index
    %258 = vector.load %arg8[%c32_388, %c64_389] : memref<96x224xf32, #tpu.memory_space<vmem>>, vector<16x16xf32>
    tpu.vector_store %arg8[%c32_388, %c64_389], %257 {strides = array<i32>} : memref<96x224xf32, #tpu.memory_space<vmem>>, vector<16x16xf32>,
    %c5_390 = arith.constant 5 : index
    %c0_391 = arith.constant 0 : index
    %259 = vector.load %arg7[%c5_390, %c0_391] : memref<96x16xf32, #tpu.memory_space<vmem>>, vector<16x16xf32>
    %c32_392 = arith.constant 32 : index
    %c80_393 = arith.constant 80 : index
    %260 = vector.load %arg8[%c32_392, %c80_393] : memref<96x224xf32, #tpu.memory_space<vmem>>, vector<16x16xf32>
    tpu.vector_store %arg8[%c32_392, %c80_393], %259 {strides = array<i32>} : memref<96x224xf32, #tpu.memory_space<vmem>>, vector<16x16xf32>,
    %c6_394 = arith.constant 6 : index
    %c0_395 = arith.constant 0 : index
    %261 = vector.load %arg7[%c6_394, %c0_395] : memref<96x16xf32, #tpu.memory_space<vmem>>, vector<16x16xf32>
    %c32_396 = arith.constant 32 : index
    %c96_397 = arith.constant 96 : index
    %262 = vector.load %arg8[%c32_396, %c96_397] : memref<96x224xf32, #tpu.memory_space<vmem>>, vector<16x16xf32>
    tpu.vector_store %arg8[%c32_396, %c96_397], %261 {strides = array<i32>} : memref<96x224xf32, #tpu.memory_space<vmem>>, vector<16x16xf32>,
    %c0_398 = arith.constant 0 : index
    %c0_399 = arith.constant 0 : index
    %263 = vector.load %arg7[%c0_398, %c0_399] : memref<96x16xf32, #tpu.memory_space<vmem>>, vector<16x16xf32>
    %c32_400 = arith.constant 32 : index
    %c112_401 = arith.constant 112 : index
    %264 = vector.load %arg8[%c32_400, %c112_401] : memref<96x224xf32, #tpu.memory_space<vmem>>, vector<16x16xf32>
    tpu.vector_store %arg8[%c32_400, %c112_401], %263 {strides = array<i32>} : memref<96x224xf32, #tpu.memory_space<vmem>>, vector<16x16xf32>,
    %c1_402 = arith.constant 1 : index
    %c0_403 = arith.constant 0 : index
    %265 = vector.load %arg7[%c1_402, %c0_403] : memref<96x16xf32, #tpu.memory_space<vmem>>, vector<16x16xf32>
    %c32_404 = arith.constant 32 : index
    %c128_405 = arith.constant 128 : index
    %266 = vector.load %arg8[%c32_404, %c128_405] : memref<96x224xf32, #tpu.memory_space<vmem>>, vector<16x16xf32>
    tpu.vector_store %arg8[%c32_404, %c128_405], %265 {strides = array<i32>} : memref<96x224xf32, #tpu.memory_space<vmem>>, vector<16x16xf32>,
    %c2_406 = arith.constant 2 : index
    %c0_407 = arith.constant 0 : index
    %267 = vector.load %arg7[%c2_406, %c0_407] : memref<96x16xf32, #tpu.memory_space<vmem>>, vector<16x16xf32>
    %c32_408 = arith.constant 32 : index
    %c144_409 = arith.constant 144 : index
    %268 = vector.load %arg8[%c32_408, %c144_409] : memref<96x224xf32, #tpu.memory_space<vmem>>, vector<16x16xf32>
    tpu.vector_store %arg8[%c32_408, %c144_409], %267 {strides = array<i32>} : memref<96x224xf32, #tpu.memory_space<vmem>>, vector<16x16xf32>,
    %c3_410 = arith.constant 3 : index
    %c0_411 = arith.constant 0 : index
    %269 = vector.load %arg7[%c3_410, %c0_411] : memref<96x16xf32, #tpu.memory_space<vmem>>, vector<16x16xf32>
    %c32_412 = arith.constant 32 : index
    %c160_413 = arith.constant 160 : index
    %270 = vector.load %arg8[%c32_412, %c160_413] : memref<96x224xf32, #tpu.memory_space<vmem>>, vector<16x16xf32>
    tpu.vector_store %arg8[%c32_412, %c160_413], %269 {strides = array<i32>} : memref<96x224xf32, #tpu.memory_space<vmem>>, vector<16x16xf32>,
    %c4_414 = arith.constant 4 : index
    %c0_415 = arith.constant 0 : index
    %271 = vector.load %arg7[%c4_414, %c0_415] : memref<96x16xf32, #tpu.memory_space<vmem>>, vector<16x16xf32>
    %c32_416 = arith.constant 32 : index
    %c176_417 = arith.constant 176 : index
    %272 = vector.load %arg8[%c32_416, %c176_417] : memref<96x224xf32, #tpu.memory_space<vmem>>, vector<16x16xf32>
    tpu.vector_store %arg8[%c32_416, %c176_417], %271 {strides = array<i32>} : memref<96x224xf32, #tpu.memory_space<vmem>>, vector<16x16xf32>,
    %c5_418 = arith.constant 5 : index
    %c0_419 = arith.constant 0 : index
    %273 = vector.load %arg7[%c5_418, %c0_419] : memref<96x16xf32, #tpu.memory_space<vmem>>, vector<16x16xf32>
    %c32_420 = arith.constant 32 : index
    %c192_421 = arith.constant 192 : index
    %274 = vector.load %arg8[%c32_420, %c192_421] : memref<96x224xf32, #tpu.memory_space<vmem>>, vector<16x16xf32>
    tpu.vector_store %arg8[%c32_420, %c192_421], %273 {strides = array<i32>} : memref<96x224xf32, #tpu.memory_space<vmem>>, vector<16x16xf32>,
    %c6_422 = arith.constant 6 : index
    %c0_423 = arith.constant 0 : index
    %275 = vector.load %arg7[%c6_422, %c0_423] : memref<96x16xf32, #tpu.memory_space<vmem>>, vector<16x16xf32>
    %c32_424 = arith.constant 32 : index
    %c208_425 = arith.constant 208 : index
    %276 = vector.load %arg8[%c32_424, %c208_425] : memref<96x224xf32, #tpu.memory_space<vmem>>, vector<16x16xf32>
    tpu.vector_store %arg8[%c32_424, %c208_425], %275 {strides = array<i32>} : memref<96x224xf32, #tpu.memory_space<vmem>>, vector<16x16xf32>,
    %c48_426 = arith.constant 48 : index
    %c0_427 = arith.constant 0 : index
    %277 = vector.load %arg7[%c48_426, %c0_427] : memref<96x16xf32, #tpu.memory_space<vmem>>, vector<16x16xf32>
    %c48_428 = arith.constant 48 : index
    %c0_429 = arith.constant 0 : index
    %278 = vector.load %arg8[%c48_428, %c0_429] : memref<96x224xf32, #tpu.memory_space<vmem>>, vector<16x16xf32>
    tpu.vector_store %arg8[%c48_428, %c0_429], %277 {strides = array<i32>} : memref<96x224xf32, #tpu.memory_space<vmem>>, vector<16x16xf32>,
    %c49_430 = arith.constant 49 : index
    %c0_431 = arith.constant 0 : index
    %279 = vector.load %arg7[%c49_430, %c0_431] : memref<96x16xf32, #tpu.memory_space<vmem>>, vector<16x16xf32>
    %c48_432 = arith.constant 48 : index
    %c16_433 = arith.constant 16 : index
    %280 = vector.load %arg8[%c48_432, %c16_433] : memref<96x224xf32, #tpu.memory_space<vmem>>, vector<16x16xf32>
    tpu.vector_store %arg8[%c48_432, %c16_433], %279 {strides = array<i32>} : memref<96x224xf32, #tpu.memory_space<vmem>>, vector<16x16xf32>,
    %c50_434 = arith.constant 50 : index
    %c0_435 = arith.constant 0 : index
    %281 = vector.load %arg7[%c50_434, %c0_435] : memref<96x16xf32, #tpu.memory_space<vmem>>, vector<16x16xf32>
    %c48_436 = arith.constant 48 : index
    %c32_437 = arith.constant 32 : index
    %282 = vector.load %arg8[%c48_436, %c32_437] : memref<96x224xf32, #tpu.memory_space<vmem>>, vector<16x16xf32>
    tpu.vector_store %arg8[%c48_436, %c32_437], %281 {strides = array<i32>} : memref<96x224xf32, #tpu.memory_space<vmem>>, vector<16x16xf32>,
    %c51_438 = arith.constant 51 : index
    %c0_439 = arith.constant 0 : index
    %283 = vector.load %arg7[%c51_438, %c0_439] : memref<96x16xf32, #tpu.memory_space<vmem>>, vector<16x16xf32>
    %c48_440 = arith.constant 48 : index
    %c48_441 = arith.constant 48 : index
    %284 = vector.load %arg8[%c48_440, %c48_441] : memref<96x224xf32, #tpu.memory_space<vmem>>, vector<16x16xf32>
    tpu.vector_store %arg8[%c48_440, %c48_441], %283 {strides = array<i32>} : memref<96x224xf32, #tpu.memory_space<vmem>>, vector<16x16xf32>,
    %c52_442 = arith.constant 52 : index
    %c0_443 = arith.constant 0 : index
    %285 = vector.load %arg7[%c52_442, %c0_443] : memref<96x16xf32, #tpu.memory_space<vmem>>, vector<16x16xf32>
    %c48_444 = arith.constant 48 : index
    %c64_445 = arith.constant 64 : index
    %286 = vector.load %arg8[%c48_444, %c64_445] : memref<96x224xf32, #tpu.memory_space<vmem>>, vector<16x16xf32>
    tpu.vector_store %arg8[%c48_444, %c64_445], %285 {strides = array<i32>} : memref<96x224xf32, #tpu.memory_space<vmem>>, vector<16x16xf32>,
    %c53_446 = arith.constant 53 : index
    %c0_447 = arith.constant 0 : index
    %287 = vector.load %arg7[%c53_446, %c0_447] : memref<96x16xf32, #tpu.memory_space<vmem>>, vector<16x16xf32>
    %c48_448 = arith.constant 48 : index
    %c80_449 = arith.constant 80 : index
    %288 = vector.load %arg8[%c48_448, %c80_449] : memref<96x224xf32, #tpu.memory_space<vmem>>, vector<16x16xf32>
    tpu.vector_store %arg8[%c48_448, %c80_449], %287 {strides = array<i32>} : memref<96x224xf32, #tpu.memory_space<vmem>>, vector<16x16xf32>,
    %c54_450 = arith.constant 54 : index
    %c0_451 = arith.constant 0 : index
    %289 = vector.load %arg7[%c54_450, %c0_451] : memref<96x16xf32, #tpu.memory_space<vmem>>, vector<16x16xf32>
    %c48_452 = arith.constant 48 : index
    %c96_453 = arith.constant 96 : index
    %290 = vector.load %arg8[%c48_452, %c96_453] : memref<96x224xf32, #tpu.memory_space<vmem>>, vector<16x16xf32>
    tpu.vector_store %arg8[%c48_452, %c96_453], %289 {strides = array<i32>} : memref<96x224xf32, #tpu.memory_space<vmem>>, vector<16x16xf32>,
    %c48_454 = arith.constant 48 : index
    %c0_455 = arith.constant 0 : index
    %291 = vector.load %arg7[%c48_454, %c0_455] : memref<96x16xf32, #tpu.memory_space<vmem>>, vector<16x16xf32>
    %c48_456 = arith.constant 48 : index
    %c112_457 = arith.constant 112 : index
    %292 = vector.load %arg8[%c48_456, %c112_457] : memref<96x224xf32, #tpu.memory_space<vmem>>, vector<16x16xf32>
    tpu.vector_store %arg8[%c48_456, %c112_457], %291 {strides = array<i32>} : memref<96x224xf32, #tpu.memory_space<vmem>>, vector<16x16xf32>,
    %c49_458 = arith.constant 49 : index
    %c0_459 = arith.constant 0 : index
    %293 = vector.load %arg7[%c49_458, %c0_459] : memref<96x16xf32, #tpu.memory_space<vmem>>, vector<16x16xf32>
    %c48_460 = arith.constant 48 : index
    %c128_461 = arith.constant 128 : index
    %294 = vector.load %arg8[%c48_460, %c128_461] : memref<96x224xf32, #tpu.memory_space<vmem>>, vector<16x16xf32>
    tpu.vector_store %arg8[%c48_460, %c128_461], %293 {strides = array<i32>} : memref<96x224xf32, #tpu.memory_space<vmem>>, vector<16x16xf32>,
    %c50_462 = arith.constant 50 : index
    %c0_463 = arith.constant 0 : index
    %295 = vector.load %arg7[%c50_462, %c0_463] : memref<96x16xf32, #tpu.memory_space<vmem>>, vector<16x16xf32>
    %c48_464 = arith.constant 48 : index
    %c144_465 = arith.constant 144 : index
    %296 = vector.load %arg8[%c48_464, %c144_465] : memref<96x224xf32, #tpu.memory_space<vmem>>, vector<16x16xf32>
    tpu.vector_store %arg8[%c48_464, %c144_465], %295 {strides = array<i32>} : memref<96x224xf32, #tpu.memory_space<vmem>>, vector<16x16xf32>,
    %c51_466 = arith.constant 51 : index
    %c0_467 = arith.constant 0 : index
    %297 = vector.load %arg7[%c51_466, %c0_467] : memref<96x16xf32, #tpu.memory_space<vmem>>, vector<16x16xf32>
    %c48_468 = arith.constant 48 : index
    %c160_469 = arith.constant 160 : index
    %298 = vector.load %arg8[%c48_468, %c160_469] : memref<96x224xf32, #tpu.memory_space<vmem>>, vector<16x16xf32>
    tpu.vector_store %arg8[%c48_468, %c160_469], %297 {strides = array<i32>} : memref<96x224xf32, #tpu.memory_space<vmem>>, vector<16x16xf32>,
    %c52_470 = arith.constant 52 : index
    %c0_471 = arith.constant 0 : index
    %299 = vector.load %arg7[%c52_470, %c0_471] : memref<96x16xf32, #tpu.memory_space<vmem>>, vector<16x16xf32>
    %c48_472 = arith.constant 48 : index
    %c176_473 = arith.constant 176 : index
    %300 = vector.load %arg8[%c48_472, %c176_473] : memref<96x224xf32, #tpu.memory_space<vmem>>, vector<16x16xf32>
    tpu.vector_store %arg8[%c48_472, %c176_473], %299 {strides = array<i32>} : memref<96x224xf32, #tpu.memory_space<vmem>>, vector<16x16xf32>,
    %c53_474 = arith.constant 53 : index
    %c0_475 = arith.constant 0 : index
    %301 = vector.load %arg7[%c53_474, %c0_475] : memref<96x16xf32, #tpu.memory_space<vmem>>, vector<16x16xf32>
    %c48_476 = arith.constant 48 : index
    %c192_477 = arith.constant 192 : index
    %302 = vector.load %arg8[%c48_476, %c192_477] : memref<96x224xf32, #tpu.memory_space<vmem>>, vector<16x16xf32>
    tpu.vector_store %arg8[%c48_476, %c192_477], %301 {strides = array<i32>} : memref<96x224xf32, #tpu.memory_space<vmem>>, vector<16x16xf32>,
    %c54_478 = arith.constant 54 : index
    %c0_479 = arith.constant 0 : index
    %303 = vector.load %arg7[%c54_478, %c0_479] : memref<96x16xf32, #tpu.memory_space<vmem>>, vector<16x16xf32>
    %c48_480 = arith.constant 48 : index
    %c208_481 = arith.constant 208 : index
    %304 = vector.load %arg8[%c48_480, %c208_481] : memref<96x224xf32, #tpu.memory_space<vmem>>, vector<16x16xf32>
    tpu.vector_store %arg8[%c48_480, %c208_481], %303 {strides = array<i32>} : memref<96x224xf32, #tpu.memory_space<vmem>>, vector<16x16xf32>,
    %c24_482 = arith.constant 24 : index
    %c0_483 = arith.constant 0 : index
    %305 = vector.load %arg7[%c24_482, %c0_483] : memref<96x16xf32, #tpu.memory_space<vmem>>, vector<16x16xf32>
    %c64_484 = arith.constant 64 : index
    %c0_485 = arith.constant 0 : index
    %306 = vector.load %arg8[%c64_484, %c0_485] : memref<96x224xf32, #tpu.memory_space<vmem>>, vector<16x16xf32>
    tpu.vector_store %arg8[%c64_484, %c0_485], %305 {strides = array<i32>} : memref<96x224xf32, #tpu.memory_space<vmem>>, vector<16x16xf32>,
    %c25_486 = arith.constant 25 : index
    %c0_487 = arith.constant 0 : index
    %307 = vector.load %arg7[%c25_486, %c0_487] : memref<96x16xf32, #tpu.memory_space<vmem>>, vector<16x16xf32>
    %c64_488 = arith.constant 64 : index
    %c16_489 = arith.constant 16 : index
    %308 = vector.load %arg8[%c64_488, %c16_489] : memref<96x224xf32, #tpu.memory_space<vmem>>, vector<16x16xf32>
    tpu.vector_store %arg8[%c64_488, %c16_489], %307 {strides = array<i32>} : memref<96x224xf32, #tpu.memory_space<vmem>>, vector<16x16xf32>,
    %c26_490 = arith.constant 26 : index
    %c0_491 = arith.constant 0 : index
    %309 = vector.load %arg7[%c26_490, %c0_491] : memref<96x16xf32, #tpu.memory_space<vmem>>, vector<16x16xf32>
    %c64_492 = arith.constant 64 : index
    %c32_493 = arith.constant 32 : index
    %310 = vector.load %arg8[%c64_492, %c32_493] : memref<96x224xf32, #tpu.memory_space<vmem>>, vector<16x16xf32>
    tpu.vector_store %arg8[%c64_492, %c32_493], %309 {strides = array<i32>} : memref<96x224xf32, #tpu.memory_space<vmem>>, vector<16x16xf32>,
    %c27_494 = arith.constant 27 : index
    %c0_495 = arith.constant 0 : index
    %311 = vector.load %arg7[%c27_494, %c0_495] : memref<96x16xf32, #tpu.memory_space<vmem>>, vector<16x16xf32>
    %c64_496 = arith.constant 64 : index
    %c48_497 = arith.constant 48 : index
    %312 = vector.load %arg8[%c64_496, %c48_497] : memref<96x224xf32, #tpu.memory_space<vmem>>, vector<16x16xf32>
    tpu.vector_store %arg8[%c64_496, %c48_497], %311 {strides = array<i32>} : memref<96x224xf32, #tpu.memory_space<vmem>>, vector<16x16xf32>,
    %c28_498 = arith.constant 28 : index
    %c0_499 = arith.constant 0 : index
    %313 = vector.load %arg7[%c28_498, %c0_499] : memref<96x16xf32, #tpu.memory_space<vmem>>, vector<16x16xf32>
    %c64_500 = arith.constant 64 : index
    %c64_501 = arith.constant 64 : index
    %314 = vector.load %arg8[%c64_500, %c64_501] : memref<96x224xf32, #tpu.memory_space<vmem>>, vector<16x16xf32>
    tpu.vector_store %arg8[%c64_500, %c64_501], %313 {strides = array<i32>} : memref<96x224xf32, #tpu.memory_space<vmem>>, vector<16x16xf32>,
    %c29_502 = arith.constant 29 : index
    %c0_503 = arith.constant 0 : index
    %315 = vector.load %arg7[%c29_502, %c0_503] : memref<96x16xf32, #tpu.memory_space<vmem>>, vector<16x16xf32>
    %c64_504 = arith.constant 64 : index
    %c80_505 = arith.constant 80 : index
    %316 = vector.load %arg8[%c64_504, %c80_505] : memref<96x224xf32, #tpu.memory_space<vmem>>, vector<16x16xf32>
    tpu.vector_store %arg8[%c64_504, %c80_505], %315 {strides = array<i32>} : memref<96x224xf32, #tpu.memory_space<vmem>>, vector<16x16xf32>,
    %c30_506 = arith.constant 30 : index
    %c0_507 = arith.constant 0 : index
    %317 = vector.load %arg7[%c30_506, %c0_507] : memref<96x16xf32, #tpu.memory_space<vmem>>, vector<16x16xf32>
    %c64_508 = arith.constant 64 : index
    %c96_509 = arith.constant 96 : index
    %318 = vector.load %arg8[%c64_508, %c96_509] : memref<96x224xf32, #tpu.memory_space<vmem>>, vector<16x16xf32>
    tpu.vector_store %arg8[%c64_508, %c96_509], %317 {strides = array<i32>} : memref<96x224xf32, #tpu.memory_space<vmem>>, vector<16x16xf32>,
    %c24_510 = arith.constant 24 : index
    %c0_511 = arith.constant 0 : index
    %319 = vector.load %arg7[%c24_510, %c0_511] : memref<96x16xf32, #tpu.memory_space<vmem>>, vector<16x16xf32>
    %c64_512 = arith.constant 64 : index
    %c112_513 = arith.constant 112 : index
    %320 = vector.load %arg8[%c64_512, %c112_513] : memref<96x224xf32, #tpu.memory_space<vmem>>, vector<16x16xf32>
    tpu.vector_store %arg8[%c64_512, %c112_513], %319 {strides = array<i32>} : memref<96x224xf32, #tpu.memory_space<vmem>>, vector<16x16xf32>,
    %c25_514 = arith.constant 25 : index
    %c0_515 = arith.constant 0 : index
    %321 = vector.load %arg7[%c25_514, %c0_515] : memref<96x16xf32, #tpu.memory_space<vmem>>, vector<16x16xf32>
    %c64_516 = arith.constant 64 : index
    %c128_517 = arith.constant 128 : index
    %322 = vector.load %arg8[%c64_516, %c128_517] : memref<96x224xf32, #tpu.memory_space<vmem>>, vector<16x16xf32>
    tpu.vector_store %arg8[%c64_516, %c128_517], %321 {strides = array<i32>} : memref<96x224xf32, #tpu.memory_space<vmem>>, vector<16x16xf32>,
    %c26_518 = arith.constant 26 : index
    %c0_519 = arith.constant 0 : index
    %323 = vector.load %arg7[%c26_518, %c0_519] : memref<96x16xf32, #tpu.memory_space<vmem>>, vector<16x16xf32>
    %c64_520 = arith.constant 64 : index
    %c144_521 = arith.constant 144 : index
    %324 = vector.load %arg8[%c64_520, %c144_521] : memref<96x224xf32, #tpu.memory_space<vmem>>, vector<16x16xf32>
    tpu.vector_store %arg8[%c64_520, %c144_521], %323 {strides = array<i32>} : memref<96x224xf32, #tpu.memory_space<vmem>>, vector<16x16xf32>,
    %c27_522 = arith.constant 27 : index
    %c0_523 = arith.constant 0 : index
    %325 = vector.load %arg7[%c27_522, %c0_523] : memref<96x16xf32, #tpu.memory_space<vmem>>, vector<16x16xf32>
    %c64_524 = arith.constant 64 : index
    %c160_525 = arith.constant 160 : index
    %326 = vector.load %arg8[%c64_524, %c160_525] : memref<96x224xf32, #tpu.memory_space<vmem>>, vector<16x16xf32>
    tpu.vector_store %arg8[%c64_524, %c160_525], %325 {strides = array<i32>} : memref<96x224xf32, #tpu.memory_space<vmem>>, vector<16x16xf32>,
    %c28_526 = arith.constant 28 : index
    %c0_527 = arith.constant 0 : index
    %327 = vector.load %arg7[%c28_526, %c0_527] : memref<96x16xf32, #tpu.memory_space<vmem>>, vector<16x16xf32>
    %c64_528 = arith.constant 64 : index
    %c176_529 = arith.constant 176 : index
    %328 = vector.load %arg8[%c64_528, %c176_529] : memref<96x224xf32, #tpu.memory_space<vmem>>, vector<16x16xf32>
    tpu.vector_store %arg8[%c64_528, %c176_529], %327 {strides = array<i32>} : memref<96x224xf32, #tpu.memory_space<vmem>>, vector<16x16xf32>,
    %c29_530 = arith.constant 29 : index
    %c0_531 = arith.constant 0 : index
    %329 = vector.load %arg7[%c29_530, %c0_531] : memref<96x16xf32, #tpu.memory_space<vmem>>, vector<16x16xf32>
    %c64_532 = arith.constant 64 : index
    %c192_533 = arith.constant 192 : index
    %330 = vector.load %arg8[%c64_532, %c192_533] : memref<96x224xf32, #tpu.memory_space<vmem>>, vector<16x16xf32>
    tpu.vector_store %arg8[%c64_532, %c192_533], %329 {strides = array<i32>} : memref<96x224xf32, #tpu.memory_space<vmem>>, vector<16x16xf32>,
    %c30_534 = arith.constant 30 : index
    %c0_535 = arith.constant 0 : index
    %331 = vector.load %arg7[%c30_534, %c0_535] : memref<96x16xf32, #tpu.memory_space<vmem>>, vector<16x16xf32>
    %c64_536 = arith.constant 64 : index
    %c208_537 = arith.constant 208 : index
    %332 = vector.load %arg8[%c64_536, %c208_537] : memref<96x224xf32, #tpu.memory_space<vmem>>, vector<16x16xf32>
    tpu.vector_store %arg8[%c64_536, %c208_537], %331 {strides = array<i32>} : memref<96x224xf32, #tpu.memory_space<vmem>>, vector<16x16xf32>,
    %c72_538 = arith.constant 72 : index
    %c0_539 = arith.constant 0 : index
    %333 = vector.load %arg7[%c72_538, %c0_539] : memref<96x16xf32, #tpu.memory_space<vmem>>, vector<16x16xf32>
    %c80_540 = arith.constant 80 : index
    %c0_541 = arith.constant 0 : index
    %334 = vector.load %arg8[%c80_540, %c0_541] : memref<96x224xf32, #tpu.memory_space<vmem>>, vector<16x16xf32>
    tpu.vector_store %arg8[%c80_540, %c0_541], %333 {strides = array<i32>} : memref<96x224xf32, #tpu.memory_space<vmem>>, vector<16x16xf32>,
    %c73_542 = arith.constant 73 : index
    %c0_543 = arith.constant 0 : index
    %335 = vector.load %arg7[%c73_542, %c0_543] : memref<96x16xf32, #tpu.memory_space<vmem>>, vector<16x16xf32>
    %c80_544 = arith.constant 80 : index
    %c16_545 = arith.constant 16 : index
    %336 = vector.load %arg8[%c80_544, %c16_545] : memref<96x224xf32, #tpu.memory_space<vmem>>, vector<16x16xf32>
    tpu.vector_store %arg8[%c80_544, %c16_545], %335 {strides = array<i32>} : memref<96x224xf32, #tpu.memory_space<vmem>>, vector<16x16xf32>,
    %c74_546 = arith.constant 74 : index
    %c0_547 = arith.constant 0 : index
    %337 = vector.load %arg7[%c74_546, %c0_547] : memref<96x16xf32, #tpu.memory_space<vmem>>, vector<16x16xf32>
    %c80_548 = arith.constant 80 : index
    %c32_549 = arith.constant 32 : index
    %338 = vector.load %arg8[%c80_548, %c32_549] : memref<96x224xf32, #tpu.memory_space<vmem>>, vector<16x16xf32>
    tpu.vector_store %arg8[%c80_548, %c32_549], %337 {strides = array<i32>} : memref<96x224xf32, #tpu.memory_space<vmem>>, vector<16x16xf32>,
    %c75_550 = arith.constant 75 : index
    %c0_551 = arith.constant 0 : index
    %339 = vector.load %arg7[%c75_550, %c0_551] : memref<96x16xf32, #tpu.memory_space<vmem>>, vector<16x16xf32>
    %c80_552 = arith.constant 80 : index
    %c48_553 = arith.constant 48 : index
    %340 = vector.load %arg8[%c80_552, %c48_553] : memref<96x224xf32, #tpu.memory_space<vmem>>, vector<16x16xf32>
    tpu.vector_store %arg8[%c80_552, %c48_553], %339 {strides = array<i32>} : memref<96x224xf32, #tpu.memory_space<vmem>>, vector<16x16xf32>,
    %c76_554 = arith.constant 76 : index
    %c0_555 = arith.constant 0 : index
    %341 = vector.load %arg7[%c76_554, %c0_555] : memref<96x16xf32, #tpu.memory_space<vmem>>, vector<16x16xf32>
    %c80_556 = arith.constant 80 : index
    %c64_557 = arith.constant 64 : index
    %342 = vector.load %arg8[%c80_556, %c64_557] : memref<96x224xf32, #tpu.memory_space<vmem>>, vector<16x16xf32>
    tpu.vector_store %arg8[%c80_556, %c64_557], %341 {strides = array<i32>} : memref<96x224xf32, #tpu.memory_space<vmem>>, vector<16x16xf32>,
    %c77_558 = arith.constant 77 : index
    %c0_559 = arith.constant 0 : index
    %343 = vector.load %arg7[%c77_558, %c0_559] : memref<96x16xf32, #tpu.memory_space<vmem>>, vector<16x16xf32>
    %c80_560 = arith.constant 80 : index
    %c80_561 = arith.constant 80 : index
    %344 = vector.load %arg8[%c80_560, %c80_561] : memref<96x224xf32, #tpu.memory_space<vmem>>, vector<16x16xf32>
    tpu.vector_store %arg8[%c80_560, %c80_561], %343 {strides = array<i32>} : memref<96x224xf32, #tpu.memory_space<vmem>>, vector<16x16xf32>,
    %c78_562 = arith.constant 78 : index
    %c0_563 = arith.constant 0 : index
    %345 = vector.load %arg7[%c78_562, %c0_563] : memref<96x16xf32, #tpu.memory_space<vmem>>, vector<16x16xf32>
    %c80_564 = arith.constant 80 : index
    %c96_565 = arith.constant 96 : index
    %346 = vector.load %arg8[%c80_564, %c96_565] : memref<96x224xf32, #tpu.memory_space<vmem>>, vector<16x16xf32>
    tpu.vector_store %arg8[%c80_564, %c96_565], %345 {strides = array<i32>} : memref<96x224xf32, #tpu.memory_space<vmem>>, vector<16x16xf32>,
    %c72_566 = arith.constant 72 : index
    %c0_567 = arith.constant 0 : index
    %347 = vector.load %arg7[%c72_566, %c0_567] : memref<96x16xf32, #tpu.memory_space<vmem>>, vector<16x16xf32>
    %c80_568 = arith.constant 80 : index
    %c112_569 = arith.constant 112 : index
    %348 = vector.load %arg8[%c80_568, %c112_569] : memref<96x224xf32, #tpu.memory_space<vmem>>, vector<16x16xf32>
    tpu.vector_store %arg8[%c80_568, %c112_569], %347 {strides = array<i32>} : memref<96x224xf32, #tpu.memory_space<vmem>>, vector<16x16xf32>,
    %c73_570 = arith.constant 73 : index
    %c0_571 = arith.constant 0 : index
    %349 = vector.load %arg7[%c73_570, %c0_571] : memref<96x16xf32, #tpu.memory_space<vmem>>, vector<16x16xf32>
    %c80_572 = arith.constant 80 : index
    %c128_573 = arith.constant 128 : index
    %350 = vector.load %arg8[%c80_572, %c128_573] : memref<96x224xf32, #tpu.memory_space<vmem>>, vector<16x16xf32>
    tpu.vector_store %arg8[%c80_572, %c128_573], %349 {strides = array<i32>} : memref<96x224xf32, #tpu.memory_space<vmem>>, vector<16x16xf32>,
    %c74_574 = arith.constant 74 : index
    %c0_575 = arith.constant 0 : index
    %351 = vector.load %arg7[%c74_574, %c0_575] : memref<96x16xf32, #tpu.memory_space<vmem>>, vector<16x16xf32>
    %c80_576 = arith.constant 80 : index
    %c144_577 = arith.constant 144 : index
    %352 = vector.load %arg8[%c80_576, %c144_577] : memref<96x224xf32, #tpu.memory_space<vmem>>, vector<16x16xf32>
    tpu.vector_store %arg8[%c80_576, %c144_577], %351 {strides = array<i32>} : memref<96x224xf32, #tpu.memory_space<vmem>>, vector<16x16xf32>,
    %c75_578 = arith.constant 75 : index
    %c0_579 = arith.constant 0 : index
    %353 = vector.load %arg7[%c75_578, %c0_579] : memref<96x16xf32, #tpu.memory_space<vmem>>, vector<16x16xf32>
    %c80_580 = arith.constant 80 : index
    %c160_581 = arith.constant 160 : index
    %354 = vector.load %arg8[%c80_580, %c160_581] : memref<96x224xf32, #tpu.memory_space<vmem>>, vector<16x16xf32>
    tpu.vector_store %arg8[%c80_580, %c160_581], %353 {strides = array<i32>} : memref<96x224xf32, #tpu.memory_space<vmem>>, vector<16x16xf32>,
    %c76_582 = arith.constant 76 : index
    %c0_583 = arith.constant 0 : index
    %355 = vector.load %arg7[%c76_582, %c0_583] : memref<96x16xf32, #tpu.memory_space<vmem>>, vector<16x16xf32>
    %c80_584 = arith.constant 80 : index
    %c176_585 = arith.constant 176 : index
    %356 = vector.load %arg8[%c80_584, %c176_585] : memref<96x224xf32, #tpu.memory_space<vmem>>, vector<16x16xf32>
    tpu.vector_store %arg8[%c80_584, %c176_585], %355 {strides = array<i32>} : memref<96x224xf32, #tpu.memory_space<vmem>>, vector<16x16xf32>,
    %c77_586 = arith.constant 77 : index
    %c0_587 = arith.constant 0 : index
    %357 = vector.load %arg7[%c77_586, %c0_587] : memref<96x16xf32, #tpu.memory_space<vmem>>, vector<16x16xf32>
    %c80_588 = arith.constant 80 : index
    %c192_589 = arith.constant 192 : index
    %358 = vector.load %arg8[%c80_588, %c192_589] : memref<96x224xf32, #tpu.memory_space<vmem>>, vector<16x16xf32>
    tpu.vector_store %arg8[%c80_588, %c192_589], %357 {strides = array<i32>} : memref<96x224xf32, #tpu.memory_space<vmem>>, vector<16x16xf32>,
    %c78_590 = arith.constant 78 : index
    %c0_591 = arith.constant 0 : index
    %359 = vector.load %arg7[%c78_590, %c0_591] : memref<96x16xf32, #tpu.memory_space<vmem>>, vector<16x16xf32>
    %c80_592 = arith.constant 80 : index
    %c208_593 = arith.constant 208 : index
    %360 = vector.load %arg8[%c80_592, %c208_593] : memref<96x224xf32, #tpu.memory_space<vmem>>, vector<16x16xf32>
    tpu.vector_store %arg8[%c80_592, %c208_593], %359 {strides = array<i32>} : memref<96x224xf32, #tpu.memory_space<vmem>>, vector<16x16xf32>,
    %c0_594 = arith.constant 0 : index
    %c0_595 = arith.constant 0 : index
    %361 = vector.load %arg8[%c0_594, %c0_595] : memref<96x224xf32, #tpu.memory_space<vmem>>, vector<96x224xf32>
    %cst_596 = arith.constant dense<0.000000e+00> : vector<96x16xf32>
    %362 = tpu.matmul %361, %2, %cst_596 {dimension_numbers = #tpu.dot_dimension_numbers<[1], [0], [0], [1], [0, 0, 1, 1], [], []>} : vector<96x224xf32>, vector<224x16xf32>, vector<96x16xf32> -> vector<96x16xf32>
    %363 = vector.extract_strided_slice %362 {offsets = [0, 0], sizes = [96, 8], strides = [1, 1]} : vector<96x16xf32> to vector<96x8xf32>
    %364 = vector.extract_strided_slice %362 {offsets = [0, 8], sizes = [96, 8], strides = [1, 1]} : vector<96x16xf32> to vector<96x8xf32>
    %365 = arith.maximumf %363, %364 : vector<96x8xf32>
    %366 = vector.extract_strided_slice %365 {offsets = [0, 0], sizes = [8, 8], strides = [1, 1]} : vector<96x8xf32> to vector<8x8xf32>
    %cst_597 = arith.constant dense<0xFF800000> : vector<8xf32>
    %367 = vector.multi_reduction <maximumf>, %366, %cst_597 [0] : vector<8x8xf32> to vector<8xf32>
    %368 = vector.shape_cast %367 : vector<8xf32> to vector<1x8xf32>
    %369 = vector.extract_strided_slice %365 {offsets = [16, 0], sizes = [8, 8], strides = [1, 1]} : vector<96x8xf32> to vector<8x8xf32>
    %cst_598 = arith.constant dense<0xFF800000> : vector<8xf32>
    %370 = vector.multi_reduction <maximumf>, %369, %cst_598 [0] : vector<8x8xf32> to vector<8xf32>
    %371 = vector.shape_cast %370 : vector<8xf32> to vector<1x8xf32>
    %372 = vector.extract_strided_slice %365 {offsets = [32, 0], sizes = [8, 8], strides = [1, 1]} : vector<96x8xf32> to vector<8x8xf32>
    %cst_599 = arith.constant dense<0xFF800000> : vector<8xf32>
    %373 = vector.multi_reduction <maximumf>, %372, %cst_599 [0] : vector<8x8xf32> to vector<8xf32>
    %374 = vector.shape_cast %373 : vector<8xf32> to vector<1x8xf32>
    %375 = vector.extract_strided_slice %365 {offsets = [48, 0], sizes = [8, 8], strides = [1, 1]} : vector<96x8xf32> to vector<8x8xf32>
    %cst_600 = arith.constant dense<0xFF800000> : vector<8xf32>
    %376 = vector.multi_reduction <maximumf>, %375, %cst_600 [0] : vector<8x8xf32> to vector<8xf32>
    %377 = vector.shape_cast %376 : vector<8xf32> to vector<1x8xf32>
    %378 = vector.extract_strided_slice %365 {offsets = [64, 0], sizes = [8, 8], strides = [1, 1]} : vector<96x8xf32> to vector<8x8xf32>
    %cst_601 = arith.constant dense<0xFF800000> : vector<8xf32>
    %379 = vector.multi_reduction <maximumf>, %378, %cst_601 [0] : vector<8x8xf32> to vector<8xf32>
    %380 = vector.shape_cast %379 : vector<8xf32> to vector<1x8xf32>
    %381 = vector.extract_strided_slice %365 {offsets = [80, 0], sizes = [8, 8], strides = [1, 1]} : vector<96x8xf32> to vector<8x8xf32>
    %cst_602 = arith.constant dense<0xFF800000> : vector<8xf32>
    %382 = vector.multi_reduction <maximumf>, %381, %cst_602 [0] : vector<8x8xf32> to vector<8xf32>
    %383 = vector.shape_cast %382 : vector<8xf32> to vector<1x8xf32>
    %384 = tpu.concatenate %368, %371, %374, %377, %380, %383 in 0 : vector<1x8xf32>, vector<1x8xf32>, vector<1x8xf32>, vector<1x8xf32>, vector<1x8xf32>, vector<1x8xf32> -> vector<6x8xf32>
    %385 = vector.broadcast %8 : vector<1x8xf32> to vector<6x8xf32>
    %386 = arith.addf %384, %385 : vector<6x8xf32>
    %387 = vector.extract_strided_slice %365 {offsets = [8, 0], sizes = [8, 8], strides = [1, 1]} : vector<96x8xf32> to vector<8x8xf32>
    %cst_603 = arith.constant dense<0xFF800000> : vector<8xf32>
    %388 = vector.multi_reduction <maximumf>, %387, %cst_603 [0] : vector<8x8xf32> to vector<8xf32>
    %389 = vector.shape_cast %388 : vector<8xf32> to vector<1x8xf32>
    %390 = vector.extract_strided_slice %365 {offsets = [24, 0], sizes = [8, 8], strides = [1, 1]} : vector<96x8xf32> to vector<8x8xf32>
    %cst_604 = arith.constant dense<0xFF800000> : vector<8xf32>
    %391 = vector.multi_reduction <maximumf>, %390, %cst_604 [0] : vector<8x8xf32> to vector<8xf32>
    %392 = vector.shape_cast %391 : vector<8xf32> to vector<1x8xf32>
    %393 = vector.extract_strided_slice %365 {offsets = [40, 0], sizes = [8, 8], strides = [1, 1]} : vector<96x8xf32> to vector<8x8xf32>
    %cst_605 = arith.constant dense<0xFF800000> : vector<8xf32>
    %394 = vector.multi_reduction <maximumf>, %393, %cst_605 [0] : vector<8x8xf32> to vector<8xf32>
    %395 = vector.shape_cast %394 : vector<8xf32> to vector<1x8xf32>
    %396 = vector.extract_strided_slice %365 {offsets = [56, 0], sizes = [8, 8], strides = [1, 1]} : vector<96x8xf32> to vector<8x8xf32>
    %cst_606 = arith.constant dense<0xFF800000> : vector<8xf32>
    %397 = vector.multi_reduction <maximumf>, %396, %cst_606 [0] : vector<8x8xf32> to vector<8xf32>
    %398 = vector.shape_cast %397 : vector<8xf32> to vector<1x8xf32>
    %399 = vector.extract_strided_slice %365 {offsets = [72, 0], sizes = [8, 8], strides = [1, 1]} : vector<96x8xf32> to vector<8x8xf32>
    %cst_607 = arith.constant dense<0xFF800000> : vector<8xf32>
    %400 = vector.multi_reduction <maximumf>, %399, %cst_607 [0] : vector<8x8xf32> to vector<8xf32>
    %401 = vector.shape_cast %400 : vector<8xf32> to vector<1x8xf32>
    %402 = vector.extract_strided_slice %365 {offsets = [88, 0], sizes = [8, 8], strides = [1, 1]} : vector<96x8xf32> to vector<8x8xf32>
    %cst_608 = arith.constant dense<0xFF800000> : vector<8xf32>
    %403 = vector.multi_reduction <maximumf>, %402, %cst_608 [0] : vector<8x8xf32> to vector<8xf32>
    %404 = vector.shape_cast %403 : vector<8xf32> to vector<1x8xf32>
    %405 = tpu.concatenate %389, %392, %395, %398, %401, %404 in 0 : vector<1x8xf32>, vector<1x8xf32>, vector<1x8xf32>, vector<1x8xf32>, vector<1x8xf32>, vector<1x8xf32> -> vector<6x8xf32>
    %406 = vector.broadcast %8 : vector<1x8xf32> to vector<6x8xf32>
    %407 = arith.addf %405, %406 : vector<6x8xf32>
    %408 = tpu.concatenate %386, %407 in 1 : vector<6x8xf32>, vector<6x8xf32> -> vector<6x16xf32>
    %cst_609 = arith.constant dense<0.000000e+00> : vector<6x8xf32>
    %409 = tpu.matmul %408, %3, %cst_609 {dimension_numbers = #tpu.dot_dimension_numbers<[1], [0], [0], [1], [0, 0, 1, 1], [], []>} : vector<6x16xf32>, vector<16x8xf32>, vector<6x8xf32> -> vector<6x8xf32>
    %410 = vector.broadcast %9 : vector<1x8xf32> to vector<6x8xf32>
    %411 = arith.addf %409, %410 : vector<6x8xf32>
    %cst_610 = arith.constant 0.000000e+00 : f32
    %412 = vector.broadcast %cst_610 : f32 to vector<6x8xf32>
    %413 = arith.maximumf %411, %412 : vector<6x8xf32>
    %cst_611 = arith.constant dense<0.000000e+00> : vector<6x8xf32>
    %414 = tpu.matmul %413, %4, %cst_611 {dimension_numbers = #tpu.dot_dimension_numbers<[1], [0], [0], [1], [0, 0, 1, 1], [], []>} : vector<6x8xf32>, vector<8x8xf32>, vector<6x8xf32> -> vector<6x8xf32>
    %415 = vector.broadcast %10 : vector<1x8xf32> to vector<6x8xf32>
    %416 = arith.addf %414, %415 : vector<6x8xf32>
    %cst_612 = arith.constant 0.000000e+00 : f32
    %417 = vector.broadcast %cst_612 : f32 to vector<6x8xf32>
    %418 = arith.maximumf %416, %417 : vector<6x8xf32>
    %cst_613 = arith.constant dense<0.000000e+00> : vector<6x4xf32>
    %419 = tpu.matmul %418, %5, %cst_613 {dimension_numbers = #tpu.dot_dimension_numbers<[1], [0], [0], [1], [0, 0, 1, 1], [], []>} : vector<6x8xf32>, vector<8x4xf32>, vector<6x4xf32> -> vector<6x4xf32>
    %420 = vector.broadcast %11 : vector<1x4xf32> to vector<6x4xf32>
    %421 = arith.addf %419, %420 : vector<6x4xf32>
    %422 = vector.extract_strided_slice %421 {offsets = [0, 0], sizes = [2, 4], strides = [1, 1]} : vector<6x4xf32> to vector<2x4xf32>
    %c0_614 = arith.constant 0 : index
    %c0_615 = arith.constant 0 : index
    %c0_616 = arith.constant 0 : index
    %423 = vector.load %arg3[%c0_614, %c0_615, %c0_616] : memref<3x2x4xf32, #tpu.memory_space<vmem>>, vector<1x2x4xf32>
    %424 = vector.shape_cast %423 : vector<1x2x4xf32> to vector<2x4xf32>
    %425 = vector.shape_cast %422 : vector<2x4xf32> to vector<1x2x4xf32>
    tpu.vector_store %arg3[%c0_614, %c0_615, %c0_616], %425 {strides = array<i32>} : memref<3x2x4xf32, #tpu.memory_space<vmem>>, vector<1x2x4xf32>,
    %426 = vector.extract_strided_slice %421 {offsets = [2, 0], sizes = [2, 4], strides = [1, 1]} : vector<6x4xf32> to vector<2x4xf32>
    %c1_617 = arith.constant 1 : index
    %c0_618 = arith.constant 0 : index
    %c0_619 = arith.constant 0 : index
    %427 = vector.load %arg3[%c1_617, %c0_618, %c0_619] : memref<3x2x4xf32, #tpu.memory_space<vmem>>, vector<1x2x4xf32>
    %428 = vector.shape_cast %427 : vector<1x2x4xf32> to vector<2x4xf32>
    %429 = vector.shape_cast %426 : vector<2x4xf32> to vector<1x2x4xf32>
    tpu.vector_store %arg3[%c1_617, %c0_618, %c0_619], %429 {strides = array<i32>} : memref<3x2x4xf32, #tpu.memory_space<vmem>>, vector<1x2x4xf32>,
    %430 = vector.extract_strided_slice %421 {offsets = [4, 0], sizes = [2, 4], strides = [1, 1]} : vector<6x4xf32> to vector<2x4xf32>
    %c2_620 = arith.constant 2 : index
    %c0_621 = arith.constant 0 : index
    %c0_622 = arith.constant 0 : index
    %431 = vector.load %arg3[%c2_620, %c0_621, %c0_622] : memref<3x2x4xf32, #tpu.memory_space<vmem>>, vector<1x2x4xf32>
    %432 = vector.shape_cast %431 : vector<1x2x4xf32> to vector<2x4xf32>
    %433 = vector.shape_cast %430 : vector<2x4xf32> to vector<1x2x4xf32>
    tpu.vector_store %arg3[%c2_620, %c0_621, %c0_622], %433 {strides = array<i32>} : memref<3x2x4xf32, #tpu.memory_space<vmem>>, vector<1x2x4xf32>,
    return
  }
  func.func @transform_0(%arg0: i32) -> (i32, i32, i32) {
    %c0_i32 = arith.constant 0 : i32
    %c0_i32_0 = arith.constant 0 : i32
    %c0_i32_1 = arith.constant 0 : i32
    return %arg0, %c0_i32, %c0_i32_0 : i32, i32, i32
  }
  func.func @transform_1(%arg0: i32) -> (i32, i32) {
    %c0_i32 = arith.constant 0 : i32
    %c0_i32_0 = arith.constant 0 : i32
    %c0_i32_1 = arith.constant 0 : i32
    return %c0_i32, %c0_i32_0 : i32, i32
  }
  func.func @transform_2(%arg0: i32) -> (i32, i32, i32) {
    %c0_i32 = arith.constant 0 : i32
    %c0_i32_0 = arith.constant 0 : i32
    %c0_i32_1 = arith.constant 0 : i32
    return %c0_i32, %arg0, %c0_i32_0 : i32, i32, i32
  }
}

</mosaic_0001>

<llo_original>
// kernel: tile.6
$region0: #{tile.6}
  #allocation0 [shape = 's32[1]{0}', space=sflag, size = 0x4, scoped, tag = 'scoped memory for tile.6']
  %s0 = inlined_call_operand.vmem [shape: f32[8], index: 0, kind: input, shape index: {}]
  %s1 = inlined_call_operand.vmem [shape: f32[4,8], index: 1, kind: output, shape index: {}]
  // Predicated region
  $region2: #{tile.6} parent=0 // pred_check
    _
  $region3: #{tile.6} parent=0 // pred_check_branch
    %3 = sbr.rel (0) target = $region5
  $region4: #{tile.6} parent=0 // pred_region
    _
  $region5: #{tile.6} parent=0 // pred_fallthru
    _
  %v4 = vld [vmem:[%s0] ss:$0 sm:$0xff]
  %5 = vst [vmem:[%s1] sm:$0xf] %v4

// kernel: reactify_forward.1
$region0: #{reactify_forward.1}
  #allocation0 [shape = 'u32[]', space=smem, size = 0x4, offset = 0x4, fixed_abs, tag = 'smem constant byte address 0x4 - core index']
  #allocation1 [shape = 'u32[144,128]{1,0:T(1,128)}', space=vmem, size = 0x12000, scoped, tag = 'internal scratch']
  #allocation2 [shape = 'f32[72,80]{1,0:T(8,128)}', space=vmem, size = 0x9000, scoped, tag = 'scratch operand']
  #allocation3 [shape = 'f32[72,32]{1,0:T(8,128)}', space=vmem, size = 0x9000, scoped, tag = 'scratch operand']
  #allocation4 [shape = 'f32[64,88]{1,0:T(8,128)}', space=vmem, size = 0x8000, scoped, tag = 'scratch operand']
  #allocation5 [shape = 'f32[96,16]{1,0:T(8,128)}', space=vmem, size = 0xc000, scoped, tag = 'scratch operand']
  #allocation6 [shape = 'f32[96,224]{1,0:T(8,128)}', space=vmem, size = 0x18000, scoped, tag = 'scratch operand']
  %s0 = inlined_call_operand.vmem [shape: f32[4,22,16], index: 0, kind: input, shape index: {}]
  %s1 = inlined_call_operand.vmem [shape: f32[432,128], index: 1, kind: input, shape index: {}]
  %s2 = inlined_call_operand.vmem [shape: f32[3,2,4], index: 2, kind: output, shape index: {}]
  %s3 = sld [smem:[#allocation0]]
  $region18: #{reactify_forward.1} parent=0
    _
  %s5 = ssub.s32 1, %s3
  %s6 = scalar_select 0, %s5, %s3
  // Predicated region
  $region2: #{reactify_forward.1} parent=0 // pred_check
    _
  $region3: #{reactify_forward.1} parent=0 // pred_check_branch
    %8 = sbr.rel (0) target = $region5
  $region4: #{reactify_forward.1} parent=0 // pred_region
    _
  $region5: #{reactify_forward.1} parent=0 // pred_fallthru
    _
  // Predicated region
  $region6: #{reactify_forward.1} parent=0 // pred_check
    _
  $region7: #{reactify_forward.1} parent=0 // pred_check_branch
    %10 = sbr.rel (0) target = $region9
  $region8: #{reactify_forward.1} parent=0 // pred_region
    _
  $region9: #{reactify_forward.1} parent=0 // pred_fallthru
    _
  %v11 = vld [vmem:[%s1] sm:$0xff]
  %v12 = vld [vmem:[%s1 + $0x8] sm:$0xff]
  %v13 = vld [vmem:[%s1 + $0x10] sm:$0xff]
  %v14 = vld [vmem:[%s1 + $0x18] sm:$0xff]
  %v15 = vld [vmem:[%s1 + $0x20] sm:$0xff]
  %v16 = vld [vmem:[%s1 + $0x28] sm:$0xff]
  %v17 = vld [vmem:[%s1 + $0x30] sm:$0xff]
  %v18 = vld [vmem:[%s1 + $0x38] sm:$0xff]
  %v19 = vld [vmem:[%s1 + $0x40] sm:$0xff]
  %v20 = vld [vmem:[%s1 + $0x48] sm:$0xff]
  %v21 = vld [vmem:[%s1 + $0x50] sm:$0xff]
  %v22 = vld [vmem:[%s1 + $0x58] sm:$0xff]
  %v23 = vld [vmem:[%s1 + $0x60] sm:$0xff]
  %v24 = vld [vmem:[%s1 + $0x68] sm:$0xff]
  %v25 = vld [vmem:[%s1 + $0x70] sm:$0xff]
  %v26 = vld [vmem:[%s1 + $0x78] sm:$0xff]
  %v27 = vld [vmem:[%s1 + $0x80] sm:$0xff]
  %v28 = vld [vmem:[%s1 + $0x88] sm:$0xff]
  %v29 = vld [vmem:[%s1 + $0x90] sm:$0xff]
  %v30 = vld [vmem:[%s1 + $0x98] sm:$0xff]
  %v31 = vld [vmem:[%s1 + $0xa0] sm:$0xff]
  %v32 = vld [vmem:[%s1 + $0xa8] sm:$0xff]
  %v33 = vld [vmem:[%s1 + $0xb0] sm:$0xff]
  %v34 = vld [vmem:[%s1 + $0xb8] sm:$0xff]
  %v35 = vld [vmem:[%s1 + $0xc0] sm:$0xff]
  %v36 = vld [vmem:[%s1 + $0xc8] sm:$0xff]
  %v37 = vld [vmem:[%s1 + $0xd0] sm:$0xff]
  %v38 = vld [vmem:[%s1 + $0xd8] sm:$0xff]
  %v39 = vld [vmem:[%s1 + $0xe0] sm:$0xff]
  %v40 = vld [vmem:[%s1 + $0xe8] sm:$0xff]
  %v41 = vld [vmem:[%s1 + $0xf0] sm:$0xff]
  %v42 = vld [vmem:[%s1 + $0xf8] sm:$0xff]
  %v43 = vld [vmem:[%s1 + $0x100] sm:$0xff]
  %v44 = vld [vmem:[%s1 + $0x108] sm:$0xff]
  %v45 = vld [vmem:[%s1 + $0x110] sm:$0xff]
  %v46 = vld [vmem:[%s1 + $0x118] sm:$0xff]
  %v47 = vld [vmem:[%s1 + $0x120] sm:$0xff]
  %v48 = vld [vmem:[%s1 + $0x128] sm:$0xff]
  %v49 = vld [vmem:[%s1 + $0x130] sm:$0xff]
  %v50 = vld [vmem:[%s1 + $0x138] sm:$0xff]
  %v51 = vld [vmem:[%s1 + $0x140] sm:$0xff]
  %v52 = vld [vmem:[%s1 + $0x148] sm:$0xff]
  %v53 = vld [vmem:[%s1 + $0x150] sm:$0xff]
  %v54 = vld [vmem:[%s1 + $0x158] sm:$0xff]
  %v55 = vld [vmem:[%s1 + $0x160] sm:$0xff]
  %v56 = vld [vmem:[%s1 + $0x168] sm:$0xff]
  %v57 = vld [vmem:[%s1 + $0x170] sm:$0xff]
  %v58 = vld [vmem:[%s1 + $0x178] sm:$0xff]
  %v59 = vld [vmem:[%s1 + $0x180] sm:$0xff]
  %v60 = vld [vmem:[%s1 + $0x188] sm:$0xff]
  %v61 = vld [vmem:[%s1 + $0x190] sm:$0xff]
  %v62 = vld [vmem:[%s1 + $0x198] sm:$0xff]
  %v63 = vld [vmem:[%s1 + $0x1a0] sm:$0xff]
  %v64 = vld [vmem:[%s1 + $0x1a8] sm:$0x1]
  %v65 = vld [vmem:[%s1 + $0x1a9] sm:$0x1]
  %v66 = vld [vmem:[%s1 + $0x1aa] sm:$0x1]
  %v67 = vld [vmem:[%s1 + $0x1ab] sm:$0x1]
  %v68 = vld [vmem:[%s1 + $0x1ac] sm:$0x1]
  %v69 = vld [vmem:[%s1 + $0x1ad] sm:$0x1]
  %v70 = vld [vmem:[%s0] sm:$0xff]
  %v71 = vld [vmem:[%s0 + $0x8] sm:$0xff]
  %v72 = vld [vmem:[%s0 + $0x10] sm:$0x3]
  %vm73 = vcmask 130048
  %74 = vst.msk [vmem:[#allocation2] sm:$0xff] %vm73, %v70
  %75 = vst.msk [vmem:[#allocation2 + $0x8] sm:$0xff] %vm73, %v71
  %vm76 = vcmask 123904
  %77 = vst.msk [vmem:[#allocation2 + $0x10] sm:$0x3] %vm76, %v72
  %v78 = vld [vmem:[%s0 + $0x1] sm:$0xff]
  %v79 = vld [vmem:[%s0 + $0x9] sm:$0xff]
  %v80 = vld [vmem:[%s0 + $0x11] sm:$0x3]
  %84 = vrot.lane.b32.xlu0 %v78, 16
  %v85 = vpop.permute.xlu0 %84
  %86 = vrot.lane.b32.xlu0 %v79, 16
  %v87 = vpop.permute.xlu0 %86
  %88 = vrot.lane.b32.xlu0 %v80, 16
  %v89 = vpop.permute.xlu0 %88
  %vm93 = vcmask 261248
  %94 = vst.msk [vmem:[#allocation2] sm:$0xff] %vm93, %v85
  %95 = vst.msk [vmem:[#allocation2 + $0x8] sm:$0xff] %vm93, %v87
  %vm96 = vcmask 255104
  %97 = vst.msk [vmem:[#allocation2 + $0x10] sm:$0x3] %vm96, %v89
  %v98 = vld [vmem:[%s0 + $0x2] sm:$0xff]
  %v99 = vld [vmem:[%s0 + $0xa] sm:$0xff]
  %v100 = vld [vmem:[%s0 + $0x12] sm:$0x3]
  %104 = vrot.lane.b32.xlu0 %v98, 32
  %v105 = vpop.permute.xlu0 %104
  %106 = vrot.lane.b32.xlu0 %v99, 32
  %v107 = vpop.permute.xlu0 %106
  %108 = vrot.lane.b32.xlu0 %v100, 32
  %v109 = vpop.permute.xlu0 %108
  %vm113 = vcmask 392448
  %114 = vst.msk [vmem:[#allocation2] sm:$0xff] %vm113, %v105
  %115 = vst.msk [vmem:[#allocation2 + $0x8] sm:$0xff] %vm113, %v107
  %vm116 = vcmask 386304
  %117 = vst.msk [vmem:[#allocation2 + $0x10] sm:$0x3] %vm116, %v109
  %v118 = vld [vmem:[%s0 + $0x3] sm:$0xff]
  %v119 = vld [vmem:[%s0 + $0xb] sm:$0xff]
  %v120 = vld [vmem:[%s0 + $0x13] sm:$0x3]
  %124 = vrot.lane.b32.xlu0 %v118, 48
  %v125 = vpop.permute.xlu0 %124
  %126 = vrot.lane.b32.xlu0 %v119, 48
  %v127 = vpop.permute.xlu0 %126
  %128 = vrot.lane.b32.xlu0 %v120, 48
  %v129 = vpop.permute.xlu0 %128
  %vm133 = vcmask 523648
  %134 = vst.msk [vmem:[#allocation2] sm:$0xff] %vm133, %v125
  %135 = vst.msk [vmem:[#allocation2 + $0x8] sm:$0xff] %vm133, %v127
  %vm136 = vcmask 517504
  %137 = vst.msk [vmem:[#allocation2 + $0x10] sm:$0x3] %vm136, %v129
  %v138 = vld [vmem:[%s0 + $0x4] sm:$0xff]
  %v139 = vld [vmem:[%s0 + $0xc] sm:$0xff]
  %v140 = vld [vmem:[%s0 + $0x14] sm:$0x3]
  %144 = vrot.lane.b32.xlu0 %v138, 64
  %v145 = vpop.permute.xlu0 %144
  %146 = vrot.lane.b32.xlu0 %v139, 64
  %v147 = vpop.permute.xlu0 %146
  %148 = vrot.lane.b32.xlu0 %v140, 64
  %v149 = vpop.permute.xlu0 %148
  %vm153 = vcmask 654848
  %154 = vst.msk [vmem:[#allocation2] sm:$0xff] %vm153, %v145
  %155 = vst.msk [vmem:[#allocation2 + $0x8] sm:$0xff] %vm153, %v147
  %vm156 = vcmask 648704
  %157 = vst.msk [vmem:[#allocation2 + $0x10] sm:$0x3] %vm156, %v149
  %s158 = scalar_lea.vmem %s0, 24
  %v159 = vld [vmem:[%s158] sm:$0xff]
  %v160 = vld [vmem:[%s158 + $0x8] sm:$0xff]
  %v161 = vld [vmem:[%s158 + $0x10] sm:$0x3]
  %162 = vst.msk [vmem:[#allocation2 + $0x12] sm:$0xff] %vm73, %v159
  %163 = vst.msk [vmem:[#allocation2 + $0x1a] sm:$0xff] %vm73, %v160
  %164 = vst.msk [vmem:[#allocation2 + $0x22] sm:$0x3] %vm76, %v161
  %v165 = vld [vmem:[%s158 + $0x1] sm:$0xff]
  %v166 = vld [vmem:[%s158 + $0x9] sm:$0xff]
  %v167 = vld [vmem:[%s158 + $0x11] sm:$0x3]
  %171 = vrot.lane.b32.xlu0 %v165, 16
  %v172 = vpop.permute.xlu0 %171
  %173 = vrot.lane.b32.xlu0 %v166, 16
  %v174 = vpop.permute.xlu0 %173
  %175 = vrot.lane.b32.xlu0 %v167, 16
  %v176 = vpop.permute.xlu0 %175
  %180 = vst.msk [vmem:[#allocation2 + $0x12] sm:$0xff] %vm93, %v172
  %181 = vst.msk [vmem:[#allocation2 + $0x1a] sm:$0xff] %vm93, %v174
  %182 = vst.msk [vmem:[#allocation2 + $0x22] sm:$0x3] %vm96, %v176
  %v183 = vld [vmem:[%s158 + $0x2] sm:$0xff]
  %v184 = vld [vmem:[%s158 + $0xa] sm:$0xff]
  %v185 = vld [vmem:[%s158 + $0x12] sm:$0x3]
  %189 = vrot.lane.b32.xlu0 %v183, 32
  %v190 = vpop.permute.xlu0 %189
  %191 = vrot.lane.b32.xlu0 %v184, 32
  %v192 = vpop.permute.xlu0 %191
  %193 = vrot.lane.b32.xlu0 %v185, 32
  %v194 = vpop.permute.xlu0 %193
  %198 = vst.msk [vmem:[#allocation2 + $0x12] sm:$0xff] %vm113, %v190
  %199 = vst.msk [vmem:[#allocation2 + $0x1a] sm:$0xff] %vm113, %v192
  %200 = vst.msk [vmem:[#allocation2 + $0x22] sm:$0x3] %vm116, %v194
  %v201 = vld [vmem:[%s158 + $0x3] sm:$0xff]
  %v202 = vld [vmem:[%s158 + $0xb] sm:$0xff]
  %v203 = vld [vmem:[%s158 + $0x13] sm:$0x3]
  %207 = vrot.lane.b32.xlu0 %v201, 48
  %v208 = vpop.permute.xlu0 %207
  %209 = vrot.lane.b32.xlu0 %v202, 48
  %v210 = vpop.permute.xlu0 %209
  %211 = vrot.lane.b32.xlu0 %v203, 48
  %v212 = vpop.permute.xlu0 %211
  %216 = vst.msk [vmem:[#allocation2 + $0x12] sm:$0xff] %vm133, %v208
  %217 = vst.msk [vmem:[#allocation2 + $0x1a] sm:$0xff] %vm133, %v210
  %218 = vst.msk [vmem:[#allocation2 + $0x22] sm:$0x3] %vm136, %v212
  %v219 = vld [vmem:[%s158 + $0x4] sm:$0xff]
  %v220 = vld [vmem:[%s158 + $0xc] sm:$0xff]
  %v221 = vld [vmem:[%s158 + $0x14] sm:$0x3]
  %225 = vrot.lane.b32.xlu0 %v219, 64
  %v226 = vpop.permute.xlu0 %225
  %227 = vrot.lane.b32.xlu0 %v220, 64
  %v228 = vpop.permute.xlu0 %227
  %229 = vrot.lane.b32.xlu0 %v221, 64
  %v230 = vpop.permute.xlu0 %229
  %234 = vst.msk [vmem:[#allocation2 + $0x12] sm:$0xff] %vm153, %v226
  %235 = vst.msk [vmem:[#allocation2 + $0x1a] sm:$0xff] %vm153, %v228
  %236 = vst.msk [vmem:[#allocation2 + $0x22] sm:$0x3] %vm156, %v230
  %s237 = scalar_lea.vmem %s0, 48
  %v238 = vld [vmem:[%s237] sm:$0xff]
  %v239 = vld [vmem:[%s237 + $0x8] sm:$0xff]
  %v240 = vld [vmem:[%s237 + $0x10] sm:$0x3]
  %241 = vst.msk [vmem:[#allocation2 + $0x24] sm:$0xff] %vm73, %v238
  %242 = vst.msk [vmem:[#allocation2 + $0x2c] sm:$0xff] %vm73, %v239
  %243 = vst.msk [vmem:[#allocation2 + $0x34] sm:$0x3] %vm76, %v240
  %v244 = vld [vmem:[%s237 + $0x1] sm:$0xff]
  %v245 = vld [vmem:[%s237 + $0x9] sm:$0xff]
  %v246 = vld [vmem:[%s237 + $0x11] sm:$0x3]
  %250 = vrot.lane.b32.xlu0 %v244, 16
  %v251 = vpop.permute.xlu0 %250
  %252 = vrot.lane.b32.xlu0 %v245, 16
  %v253 = vpop.permute.xlu0 %252
  %254 = vrot.lane.b32.xlu0 %v246, 16
  %v255 = vpop.permute.xlu0 %254
  %259 = vst.msk [vmem:[#allocation2 + $0x24] sm:$0xff] %vm93, %v251
  %260 = vst.msk [vmem:[#allocation2 + $0x2c] sm:$0xff] %vm93, %v253
  %261 = vst.msk [vmem:[#allocation2 + $0x34] sm:$0x3] %vm96, %v255
  %v262 = vld [vmem:[%s237 + $0x2] sm:$0xff]
  %v263 = vld [vmem:[%s237 + $0xa] sm:$0xff]
  %v264 = vld [vmem:[%s237 + $0x12] sm:$0x3]
  %268 = vrot.lane.b32.xlu0 %v262, 32
  %v269 = vpop.permute.xlu0 %268
  %270 = vrot.lane.b32.xlu0 %v263, 32
  %v271 = vpop.permute.xlu0 %270
  %272 = vrot.lane.b32.xlu0 %v264, 32
  %v273 = vpop.permute.xlu0 %272
  %277 = vst.msk [vmem:[#allocation2 + $0x24] sm:$0xff] %vm113, %v269
  %278 = vst.msk [vmem:[#allocation2 + $0x2c] sm:$0xff] %vm113, %v271
  %279 = vst.msk [vmem:[#allocation2 + $0x34] sm:$0x3] %vm116, %v273
  %v280 = vld [vmem:[%s237 + $0x3] sm:$0xff]
  %v281 = vld [vmem:[%s237 + $0xb] sm:$0xff]
  %v282 = vld [vmem:[%s237 + $0x13] sm:$0x3]
  %286 = vrot.lane.b32.xlu0 %v280, 48
  %v287 = vpop.permute.xlu0 %286
  %288 = vrot.lane.b32.xlu0 %v281, 48
  %v289 = vpop.permute.xlu0 %288
  %290 = vrot.lane.b32.xlu0 %v282, 48
  %v291 = vpop.permute.xlu0 %290
  %295 = vst.msk [vmem:[#allocation2 + $0x24] sm:$0xff] %vm133, %v287
  %296 = vst.msk [vmem:[#allocation2 + $0x2c] sm:$0xff] %vm133, %v289
  %297 = vst.msk [vmem:[#allocation2 + $0x34] sm:$0x3] %vm136, %v291
  %v298 = vld [vmem:[%s237 + $0x4] sm:$0xff]
  %v299 = vld [vmem:[%s237 + $0xc] sm:$0xff]
  %v300 = vld [vmem:[%s237 + $0x14] sm:$0x3]
  %304 = vrot.lane.b32.xlu0 %v298, 64
  %v305 = vpop.permute.xlu0 %304
  %306 = vrot.lane.b32.xlu0 %v299, 64
  %v307 = vpop.permute.xlu0 %306
  %308 = vrot.lane.b32.xlu0 %v300, 64
  %v309 = vpop.permute.xlu0 %308
  %313 = vst.msk [vmem:[#allocation2 + $0x24] sm:$0xff] %vm153, %v305
  %314 = vst.msk [vmem:[#allocation2 + $0x2c] sm:$0xff] %vm153, %v307
  %315 = vst.msk [vmem:[#allocation2 + $0x34] sm:$0x3] %vm156, %v309
  %s316 = scalar_lea.vmem %s0, 72
  %v317 = vld [vmem:[%s316] sm:$0xff]
  %v318 = vld [vmem:[%s316 + $0x8] sm:$0xff]
  %v319 = vld [vmem:[%s316 + $0x10] sm:$0x3]
  %320 = vst.msk [vmem:[#allocation2 + $0x36] sm:$0xff] %vm73, %v317
  %321 = vst.msk [vmem:[#allocation2 + $0x3e] sm:$0xff] %vm73, %v318
  %322 = vst.msk [vmem:[#allocation2 + $0x46] sm:$0x3] %vm76, %v319
  %v323 = vld [vmem:[%s316 + $0x1] sm:$0xff]
  %v324 = vld [vmem:[%s316 + $0x9] sm:$0xff]
  %v325 = vld [vmem:[%s316 + $0x11] sm:$0x3]
  %329 = vrot.lane.b32.xlu0 %v323, 16
  %v330 = vpop.permute.xlu0 %329
  %331 = vrot.lane.b32.xlu0 %v324, 16
  %v332 = vpop.permute.xlu0 %331
  %333 = vrot.lane.b32.xlu0 %v325, 16
  %v334 = vpop.permute.xlu0 %333
  %338 = vst.msk [vmem:[#allocation2 + $0x36] sm:$0xff] %vm93, %v330
  %339 = vst.msk [vmem:[#allocation2 + $0x3e] sm:$0xff] %vm93, %v332
  %340 = vst.msk [vmem:[#allocation2 + $0x46] sm:$0x3] %vm96, %v334
  %v341 = vld [vmem:[%s316 + $0x2] sm:$0xff]
  %v342 = vld [vmem:[%s316 + $0xa] sm:$0xff]
  %v343 = vld [vmem:[%s316 + $0x12] sm:$0x3]
  %347 = vrot.lane.b32.xlu0 %v341, 32
  %v348 = vpop.permute.xlu0 %347
  %349 = vrot.lane.b32.xlu0 %v342, 32
  %v350 = vpop.permute.xlu0 %349
  %351 = vrot.lane.b32.xlu0 %v343, 32
  %v352 = vpop.permute.xlu0 %351
  %356 = vst.msk [vmem:[#allocation2 + $0x36] sm:$0xff] %vm113, %v348
  %357 = vst.msk [vmem:[#allocation2 + $0x3e] sm:$0xff] %vm113, %v350
  %358 = vst.msk [vmem:[#allocation2 + $0x46] sm:$0x3] %vm116, %v352
  %v359 = vld [vmem:[%s316 + $0x3] sm:$0xff]
  %v360 = vld [vmem:[%s316 + $0xb] sm:$0xff]
  %v361 = vld [vmem:[%s316 + $0x13] sm:$0x3]
  %365 = vrot.lane.b32.xlu0 %v359, 48
  %v366 = vpop.permute.xlu0 %365
  %367 = vrot.lane.b32.xlu0 %v360, 48
  %v368 = vpop.permute.xlu0 %367
  %369 = vrot.lane.b32.xlu0 %v361, 48
  %v370 = vpop.permute.xlu0 %369
  %374 = vst.msk [vmem:[#allocation2 + $0x36] sm:$0xff] %vm133, %v366
  %375 = vst.msk [vmem:[#allocation2 + $0x3e] sm:$0xff] %vm133, %v368
  %376 = vst.msk [vmem:[#allocation2 + $0x46] sm:$0x3] %vm136, %v370
  %v377 = vld [vmem:[%s316 + $0x4] sm:$0xff]
  %v378 = vld [vmem:[%s316 + $0xc] sm:$0xff]
  %v379 = vld [vmem:[%s316 + $0x14] sm:$0x3]
  %383 = vrot.lane.b32.xlu0 %v377, 64
  %v384 = vpop.permute.xlu0 %383
  %385 = vrot.lane.b32.xlu0 %v378, 64
  %v386 = vpop.permute.xlu0 %385
  %387 = vrot.lane.b32.xlu0 %v379, 64
  %v388 = vpop.permute.xlu0 %387
  %392 = vst.msk [vmem:[#allocation2 + $0x36] sm:$0xff] %vm153, %v384
  %393 = vst.msk [vmem:[#allocation2 + $0x3e] sm:$0xff] %vm153, %v386
  %394 = vst.msk [vmem:[#allocation2 + $0x46] sm:$0x3] %vm156, %v388
  %v395 = vld [vmem:[#allocation2] sm:$0xff]
  %v396 = vld [vmem:[#allocation2 + $0x8] sm:$0xff]
  %v397 = vld [vmem:[#allocation2 + $0x10] sm:$0xff]
  %v398 = vld [vmem:[#allocation2 + $0x18] sm:$0xff]
  %v399 = vld [vmem:[#allocation2 + $0x20] sm:$0xff]
  %v400 = vld [vmem:[#allocation2 + $0x28] sm:$0xff]
  %v401 = vld [vmem:[#allocation2 + $0x30] sm:$0xff]
  %v402 = vld [vmem:[#allocation2 + $0x38] sm:$0xff]
  %v403 = vld [vmem:[#allocation2 + $0x40] sm:$0xff]
  %vm404 = vcmask 654336
  %v406 = vsel %vm404, %v395, 0
  %v409 = vsel %vm404, %v396, 0
  %v412 = vsel %vm404, %v397, 0
  %v415 = vsel %vm404, %v398, 0
  %v418 = vsel %vm404, %v399, 0
  %v421 = vsel %vm404, %v400, 0
  %v424 = vsel %vm404, %v401, 0
  %v427 = vsel %vm404, %v402, 0
  %v430 = vsel %vm404, %v403, 0
  %432 = vmatprep.subr.mxu0 0.0
  %433 = vmatpush1.msra.mxu0 %v11
  %434 = vmatprep.subr.mxu0 0.0
  %435 = vmatpush1.msra.mxu0 %v12
  %436 = vmatprep.subr.mxu0 0.0
  %437 = vmatpush1.msra.mxu0 %v13
  %438 = vmatprep.subr.mxu0 0.0
  %439 = vmatpush1.msra.mxu0 %v14
  %440 = vmatprep.subr.mxu0 0.0
  %441 = vmatpush1.msra.mxu0 %v15
  %442 = vmatprep.subr.mxu0 0.0
  %443 = vmatpush1.msra.mxu0 %v16
  %444 = vmatprep.subr.mxu0 0.0
  %445 = vmatpush1.msra.mxu0 %v17
  %446 = vmatprep.subr.mxu0 0.0
  %447 = vmatpush1.msra.mxu0 %v18
  %448 = vmatprep.subr.mxu0 0.0
  %449 = vmatpush1.msra.mxu0 %v19
  %450 = vmatprep.subr.mxu0 0.0
  %451 = vmatpush1.msra.mxu0 %v20
  %452 = vmatprep.subr.mxu0 0.0
  %453 = vmatpush1.msra.mxu0 0.0
  %454 = vmatprep.subr.mxu0 0.0
  %455 = vmatpush1.msra.mxu0 0.0
  %456 = vmatprep.subr.mxu0 0.0
  %457 = vmatpush1.msra.mxu0 0.0
  %458 = vmatprep.subr.mxu0 0.0
  %459 = vmatpush1.msra.mxu0 0.0
  %460 = vmatprep.subr.mxu0 0.0
  %461 = vmatpush1.msra.mxu0 0.0
  %462 = vmatprep.subr.mxu0 0.0
  %463 = vmatpush1.msra.mxu0 0.0
  %464 = vmatprep.subr.mxu0 0.0
  %465 = vmatpush1.msra.mxu0 0.0
  %466 = vmatprep.subr.mxu0 0.0
  %467 = vmatpush1.msra.mxu0 0.0
  %468 = vmatprep.subr.mxu0 0.0
  %469 = vmatpush1.msra.mxu0 0.0
  %470 = vmatprep.subr.mxu0 0.0
  %471 = vmatpush1.msra.mxu0 0.0
  %472 = vmatprep.subr.mxu0 0.0
  %473 = vmatpush1.msra.mxu0 0.0
  %474 = vmatprep.subr.mxu0 0.0
  %475 = vmatpush1.msra.mxu0 0.0
  %476 = vmatprep.subr.mxu0 0.0
  %477 = vmatpush1.msra.mxu0 0.0
  %478 = vmatprep.subr.mxu0 0.0
  %479 = vmatpush1.msra.mxu0 0.0
  %480 = vmatprep.subr.mxu0 0.0
  %481 = vmatpush1.msra.mxu0 0.0
  %482 = vmatprep.subr.mxu0 0.0
  %483 = vmatpush1.msra.mxu0 0.0
  %484 = vmatprep.subr.mxu0 0.0
  %485 = vmatpush1.msra.mxu0 0.0
  %486 = vmatprep.subr.mxu0 0.0
  %487 = vmatpush1.msra.mxu0 0.0
  %488 = vmatprep.subr.mxu0 0.0
  %489 = vmatpush1.msra.mxu0 0.0
  %490 = vmatprep.subr.mxu0 0.0
  %491 = vmatpush1.msra.mxu0 0.0
  %492 = vmatprep.subr.mxu0 0.0
  %493 = vmatpush1.msra.mxu0 0.0
  %494 = vmatprep.subr.mxu0 0.0
  %495 = vmatpush1.msra.mxu0 0.0
  %496 = vmatprep.mubr.f32.mxu0 0.0
  %497 = vmatmul.mubr.f32.gmra.mrb[0].mxu0 %v406
  %v498 = vpop.f32.mrb[0].mxu0
  %v499 = vadd.f32 0.0, %v498
  %v500 = vpop.f32.mrb[0].mxu0
  %501 = vmatprep.mubr.f32.mxu0 0.0
  %502 = vmatmul.mubr.f32.gmra.mrb[0].mxu0 %v409
  %v503 = vpop.f32.mrb[0].mxu0
  %v504 = vadd.f32 0.0, %v503
  %v505 = vpop.f32.mrb[0].mxu0
  %506 = vmatprep.mubr.f32.mxu0 0.0
  %507 = vmatmul.mubr.f32.gmra.mrb[0].mxu0 %v412
  %v508 = vpop.f32.mrb[0].mxu0
  %v509 = vadd.f32 0.0, %v508
  %v510 = vpop.f32.mrb[0].mxu0
  %511 = vmatprep.mubr.f32.mxu0 0.0
  %512 = vmatmul.mubr.f32.gmra.mrb[0].mxu0 %v415
  %v513 = vpop.f32.mrb[0].mxu0
  %v514 = vadd.f32 0.0, %v513
  %v515 = vpop.f32.mrb[0].mxu0
  %516 = vmatprep.mubr.f32.mxu0 0.0
  %517 = vmatmul.mubr.f32.gmra.mrb[0].mxu0 %v418
  %v518 = vpop.f32.mrb[0].mxu0
  %v519 = vadd.f32 0.0, %v518
  %v520 = vpop.f32.mrb[0].mxu0
  %521 = vmatprep.mubr.f32.mxu0 0.0
  %522 = vmatmul.mubr.f32.gmra.mrb[0].mxu0 %v421
  %v523 = vpop.f32.mrb[0].mxu0
  %v524 = vadd.f32 0.0, %v523
  %v525 = vpop.f32.mrb[0].mxu0
  %526 = vmatprep.mubr.f32.mxu0 0.0
  %527 = vmatmul.mubr.f32.gmra.mrb[0].mxu0 %v424
  %v528 = vpop.f32.mrb[0].mxu0
  %v529 = vadd.f32 0.0, %v528
  %v530 = vpop.f32.mrb[0].mxu0
  %531 = vmatprep.mubr.f32.mxu0 0.0
  %532 = vmatmul.mubr.f32.gmra.mrb[0].mxu0 %v427
  %v533 = vpop.f32.mrb[0].mxu0
  %v534 = vadd.f32 0.0, %v533
  %v535 = vpop.f32.mrb[0].mxu0
  %536 = vmatprep.mubr.f32.mxu0 0.0
  %537 = vmatmul.mubr.f32.gmra.mrb[0].mxu0 %v430
  %v538 = vpop.f32.mrb[0].mxu0
  %v539 = vadd.f32 0.0, %v538
  %v540 = vpop.f32.mrb[0].mxu0
  %541 = vdwg.mxu0
  %551 = vrot.lane.b32.xlu0 %v499, 96
  %v552 = vpop.permute.xlu0 %551
  %553 = vrot.lane.b32.xlu0 %v504, 96
  %v554 = vpop.permute.xlu0 %553
  %555 = vrot.lane.b32.xlu0 %v509, 96
  %v556 = vpop.permute.xlu0 %555
  %557 = vrot.lane.b32.xlu0 %v514, 96
  %v558 = vpop.permute.xlu0 %557
  %559 = vrot.lane.b32.xlu0 %v519, 96
  %v560 = vpop.permute.xlu0 %559
  %561 = vrot.lane.b32.xlu0 %v524, 96
  %v562 = vpop.permute.xlu0 %561
  %563 = vrot.lane.b32.xlu0 %v529, 96
  %v564 = vpop.permute.xlu0 %563
  %565 = vrot.lane.b32.xlu0 %v534, 96
  %v566 = vpop.permute.xlu0 %565
  %567 = vrot.lane.b32.xlu0 %v539, 96
  %v568 = vpop.permute.xlu0 %567
  %v578 = vmax.f32 %v499, %v552
  %v579 = vmax.f32 %v504, %v554
  %v580 = vmax.f32 %v509, %v556
  %v581 = vmax.f32 %v514, %v558
  %v582 = vmax.f32 %v519, %v560
  %v583 = vmax.f32 %v524, %v562
  %v584 = vmax.f32 %v529, %v564
  %v585 = vmax.f32 %v534, %v566
  %v586 = vmax.f32 %v539, %v568
  %596 = vrot.lane.b32.xlu0 %v578, 64
  %v597 = vpop.permute.xlu0 %596
  %598 = vrot.lane.b32.xlu0 %v579, 64
  %v599 = vpop.permute.xlu0 %598
  %600 = vrot.lane.b32.xlu0 %v580, 64
  %v601 = vpop.permute.xlu0 %600
  %602 = vrot.lane.b32.xlu0 %v581, 64
  %v603 = vpop.permute.xlu0 %602
  %604 = vrot.lane.b32.xlu0 %v582, 64
  %v605 = vpop.permute.xlu0 %604
  %606 = vrot.lane.b32.xlu0 %v583, 64
  %v607 = vpop.permute.xlu0 %606
  %608 = vrot.lane.b32.xlu0 %v584, 64
  %v609 = vpop.permute.xlu0 %608
  %610 = vrot.lane.b32.xlu0 %v585, 64
  %v611 = vpop.permute.xlu0 %610
  %612 = vrot.lane.b32.xlu0 %v586, 64
  %v613 = vpop.permute.xlu0 %612
  %v623 = vmax.f32 %v578, %v597
  %v624 = vmax.f32 %v579, %v599
  %v625 = vmax.f32 %v580, %v601
  %v626 = vmax.f32 %v581, %v603
  %v627 = vmax.f32 %v582, %v605
  %v628 = vmax.f32 %v583, %v607
  %v629 = vmax.f32 %v584, %v609
  %v630 = vmax.f32 %v585, %v611
  %v631 = vmax.f32 %v586, %v613
  %v632 = vlaneseq
  %v633 = vshrl.u32 %v632, 7
  %v634 = vsub.s32 0, %v633
  %v635 = vrot.slane %v64, %v634
  %v636 = vadd.f32 %v623, %v635
  %v637 = vadd.f32 %v624, %v635
  %v638 = vadd.f32 %v625, %v635
  %v639 = vadd.f32 %v626, %v635
  %v640 = vadd.f32 %v627, %v635
  %v641 = vadd.f32 %v628, %v635
  %v642 = vadd.f32 %v629, %v635
  %v643 = vadd.f32 %v630, %v635
  %v644 = vadd.f32 %v631, %v635
  %vm645 = vcmask 261120
  %646 = vst.msk [vmem:[#allocation3] sm:$0xff] %vm645, %v636
  %647 = vst.msk [vmem:[#allocation3 + $0x8] sm:$0xff] %vm645, %v637
  %648 = vst.msk [vmem:[#allocation3 + $0x10] sm:$0xff] %vm645, %v638
  %649 = vst.msk [vmem:[#allocation3 + $0x18] sm:$0xff] %vm645, %v639
  %650 = vst.msk [vmem:[#allocation3 + $0x20] sm:$0xff] %vm645, %v640
  %651 = vst.msk [vmem:[#allocation3 + $0x28] sm:$0xff] %vm645, %v641
  %652 = vst.msk [vmem:[#allocation3 + $0x30] sm:$0xff] %vm645, %v642
  %653 = vst.msk [vmem:[#allocation3 + $0x38] sm:$0xff] %vm645, %v643
  %654 = vst.msk [vmem:[#allocation3 + $0x40] sm:$0xff] %vm645, %v644
  %v655 = vld [vmem:[#allocation3] sm:$0xff]
  %v656 = vld [vmem:[#allocation3 + $0x8] sm:$0xff]
  %vm657 = vcmask 64512
  %658 = vst.msk [vmem:[#allocation4] sm:$0xff] %vm657, %v655
  %659 = vst.msk [vmem:[#allocation4 + $0x8] sm:$0xff] %vm657, %v656
  %v660 = vld [vmem:[#allocation3] sm:$0xff]
  %v661 = vld [vmem:[#allocation3 + $0x8] sm:$0xff]
  %vm662 = vcmask 130112
  %663 = vst.msk [vmem:[#allocation4] sm:$0xff] %vm662, %v660
  %664 = vst.msk [vmem:[#allocation4 + $0x8] sm:$0xff] %vm662, %v661
  %v665 = vld [vmem:[#allocation3] sm:$0xff]
  %v666 = vld [vmem:[#allocation3 + $0x8] sm:$0xff]
  %vm667 = vcmask 195712
  %668 = vst.msk [vmem:[#allocation4] sm:$0xff] %vm667, %v665
  %669 = vst.msk [vmem:[#allocation4 + $0x8] sm:$0xff] %vm667, %v666
  %v670 = vld [vmem:[#allocation3] sm:$0xff]
  %v671 = vld [vmem:[#allocation3 + $0x8] sm:$0xff]
  %vm672 = vcmask 261312
  %673 = vst.msk [vmem:[#allocation4] sm:$0xff] %vm672, %v670
  %674 = vst.msk [vmem:[#allocation4 + $0x8] sm:$0xff] %vm672, %v671
  %v675 = vld [vmem:[#allocation3 + $0x1] sm:$0xff]
  %v676 = vld [vmem:[#allocation3 + $0x9] sm:$0xff]
  %679 = vrot.lane.b32.xlu0 %v675, 32
  %v680 = vpop.permute.xlu0 %679
  %681 = vrot.lane.b32.xlu0 %v676, 32
  %v682 = vpop.permute.xlu0 %681
  %vm685 = vcmask 326912
  %686 = vst.msk [vmem:[#allocation4] sm:$0xff] %vm685, %v680
  %687 = vst.msk [vmem:[#allocation4 + $0x8] sm:$0xff] %vm685, %v682
  %v688 = vld [vmem:[#allocation3 + $0x1] sm:$0xff]
  %v689 = vld [vmem:[#allocation3 + $0x9] sm:$0xff]
  %692 = vrot.lane.b32.xlu0 %v688, 32
  %v693 = vpop.permute.xlu0 %692
  %694 = vrot.lane.b32.xlu0 %v689, 32
  %v695 = vpop.permute.xlu0 %694
  %vm698 = vcmask 392512
  %699 = vst.msk [vmem:[#allocation4] sm:$0xff] %vm698, %v693
  %700 = vst.msk [vmem:[#allocation4 + $0x8] sm:$0xff] %vm698, %v695
  %v701 = vld [vmem:[#allocation3 + $0x1] sm:$0xff]
  %v702 = vld [vmem:[#allocation3 + $0x9] sm:$0xff]
  %705 = vrot.lane.b32.xlu0 %v701, 32
  %v706 = vpop.permute.xlu0 %705
  %707 = vrot.lane.b32.xlu0 %v702, 32
  %v708 = vpop.permute.xlu0 %707
  %vm711 = vcmask 458112
  %712 = vst.msk [vmem:[#allocation4] sm:$0xff] %vm711, %v706
  %713 = vst.msk [vmem:[#allocation4 + $0x8] sm:$0xff] %vm711, %v708
  %v714 = vld [vmem:[#allocation3 + $0x1] sm:$0xff]
  %v715 = vld [vmem:[#allocation3 + $0x9] sm:$0xff]
  %718 = vrot.lane.b32.xlu0 %v714, 32
  %v719 = vpop.permute.xlu0 %718
  %720 = vrot.lane.b32.xlu0 %v715, 32
  %v721 = vpop.permute.xlu0 %720
  %vm724 = vcmask 523712
  %725 = vst.msk [vmem:[#allocation4] sm:$0xff] %vm724, %v719
  %726 = vst.msk [vmem:[#allocation4 + $0x8] sm:$0xff] %vm724, %v721
  %v727 = vld [vmem:[#allocation3 + $0x2] sm:$0xff]
  %v728 = vld [vmem:[#allocation3 + $0xa] sm:$0xff]
  %731 = vrot.lane.b32.xlu0 %v727, 64
  %v732 = vpop.permute.xlu0 %731
  %733 = vrot.lane.b32.xlu0 %v728, 64
  %v734 = vpop.permute.xlu0 %733
  %vm737 = vcmask 589312
  %738 = vst.msk [vmem:[#allocation4] sm:$0xff] %vm737, %v732
  %739 = vst.msk [vmem:[#allocation4 + $0x8] sm:$0xff] %vm737, %v734
  %v740 = vld [vmem:[#allocation3 + $0x2] sm:$0xff]
  %v741 = vld [vmem:[#allocation3 + $0xa] sm:$0xff]
  %744 = vrot.lane.b32.xlu0 %v740, 64
  %v745 = vpop.permute.xlu0 %744
  %746 = vrot.lane.b32.xlu0 %v741, 64
  %v747 = vpop.permute.xlu0 %746
  %vm750 = vcmask 654912
  %751 = vst.msk [vmem:[#allocation4] sm:$0xff] %vm750, %v745
  %752 = vst.msk [vmem:[#allocation4 + $0x8] sm:$0xff] %vm750, %v747
  %v753 = vld [vmem:[#allocation3 + $0x2] sm:$0xff]
  %v754 = vld [vmem:[#allocation3 + $0xa] sm:$0xff]
  %757 = vrot.lane.b32.xlu0 %v753, 64
  %v758 = vpop.permute.xlu0 %757
  %759 = vrot.lane.b32.xlu0 %v754, 64
  %v760 = vpop.permute.xlu0 %759
  %vm763 = vcmask 720512
  %764 = vst.msk [vmem:[#allocation4] sm:$0xff] %vm763, %v758
  %765 = vst.msk [vmem:[#allocation4 + $0x8] sm:$0xff] %vm763, %v760
  %v766 = vld [vmem:[#allocation3 + $0x12] sm:$0xff]
  %v767 = vld [vmem:[#allocation3 + $0x1a] sm:$0xff]
  %768 = vst.msk [vmem:[#allocation4 + $0x10] sm:$0xff] %vm657, %v766
  %769 = vst.msk [vmem:[#allocation4 + $0x18] sm:$0xff] %vm657, %v767
  %v770 = vld [vmem:[#allocation3 + $0x12] sm:$0xff]
  %v771 = vld [vmem:[#allocation3 + $0x1a] sm:$0xff]
  %772 = vst.msk [vmem:[#allocation4 + $0x10] sm:$0xff] %vm662, %v770
  %773 = vst.msk [vmem:[#allocation4 + $0x18] sm:$0xff] %vm662, %v771
  %v774 = vld [vmem:[#allocation3 + $0x12] sm:$0xff]
  %v775 = vld [vmem:[#allocation3 + $0x1a] sm:$0xff]
  %776 = vst.msk [vmem:[#allocation4 + $0x10] sm:$0xff] %vm667, %v774
  %777 = vst.msk [vmem:[#allocation4 + $0x18] sm:$0xff] %vm667, %v775
  %v778 = vld [vmem:[#allocation3 + $0x12] sm:$0xff]
  %v779 = vld [vmem:[#allocation3 + $0x1a] sm:$0xff]
  %780 = vst.msk [vmem:[#allocation4 + $0x10] sm:$0xff] %vm672, %v778
  %781 = vst.msk [vmem:[#allocation4 + $0x18] sm:$0xff] %vm672, %v779
  %v782 = vld [vmem:[#allocation3 + $0x13] sm:$0xff]
  %v783 = vld [vmem:[#allocation3 + $0x1b] sm:$0xff]
  %786 = vrot.lane.b32.xlu0 %v782, 32
  %v787 = vpop.permute.xlu0 %786
  %788 = vrot.lane.b32.xlu0 %v783, 32
  %v789 = vpop.permute.xlu0 %788
  %792 = vst.msk [vmem:[#allocation4 + $0x10] sm:$0xff] %vm685, %v787
  %793 = vst.msk [vmem:[#allocation4 + $0x18] sm:$0xff] %vm685, %v789
  %v794 = vld [vmem:[#allocation3 + $0x13] sm:$0xff]
  %v795 = vld [vmem:[#allocation3 + $0x1b] sm:$0xff]
  %798 = vrot.lane.b32.xlu0 %v794, 32
  %v799 = vpop.permute.xlu0 %798
  %800 = vrot.lane.b32.xlu0 %v795, 32
  %v801 = vpop.permute.xlu0 %800
  %804 = vst.msk [vmem:[#allocation4 + $0x10] sm:$0xff] %vm698, %v799
  %805 = vst.msk [vmem:[#allocation4 + $0x18] sm:$0xff] %vm698, %v801
  %v806 = vld [vmem:[#allocation3 + $0x13] sm:$0xff]
  %v807 = vld [vmem:[#allocation3 + $0x1b] sm:$0xff]
  %810 = vrot.lane.b32.xlu0 %v806, 32
  %v811 = vpop.permute.xlu0 %810
  %812 = vrot.lane.b32.xlu0 %v807, 32
  %v813 = vpop.permute.xlu0 %812
  %816 = vst.msk [vmem:[#allocation4 + $0x10] sm:$0xff] %vm711, %v811
  %817 = vst.msk [vmem:[#allocation4 + $0x18] sm:$0xff] %vm711, %v813
  %v818 = vld [vmem:[#allocation3 + $0x13] sm:$0xff]
  %v819 = vld [vmem:[#allocation3 + $0x1b] sm:$0xff]
  %822 = vrot.lane.b32.xlu0 %v818, 32
  %v823 = vpop.permute.xlu0 %822
  %824 = vrot.lane.b32.xlu0 %v819, 32
  %v825 = vpop.permute.xlu0 %824
  %828 = vst.msk [vmem:[#allocation4 + $0x10] sm:$0xff] %vm724, %v823
  %829 = vst.msk [vmem:[#allocation4 + $0x18] sm:$0xff] %vm724, %v825
  %v830 = vld [vmem:[#allocation3 + $0x14] sm:$0xff]
  %v831 = vld [vmem:[#allocation3 + $0x1c] sm:$0xff]
  %834 = vrot.lane.b32.xlu0 %v830, 64
  %v835 = vpop.permute.xlu0 %834
  %836 = vrot.lane.b32.xlu0 %v831, 64
  %v837 = vpop.permute.xlu0 %836
  %840 = vst.msk [vmem:[#allocation4 + $0x10] sm:$0xff] %vm737, %v835
  %841 = vst.msk [vmem:[#allocation4 + $0x18] sm:$0xff] %vm737, %v837
  %v842 = vld [vmem:[#allocation3 + $0x14] sm:$0xff]
  %v843 = vld [vmem:[#allocation3 + $0x1c] sm:$0xff]
  %846 = vrot.lane.b32.xlu0 %v842, 64
  %v847 = vpop.permute.xlu0 %846
  %848 = vrot.lane.b32.xlu0 %v843, 64
  %v849 = vpop.permute.xlu0 %848
  %852 = vst.msk [vmem:[#allocation4 + $0x10] sm:$0xff] %vm750, %v847
  %853 = vst.msk [vmem:[#allocation4 + $0x18] sm:$0xff] %vm750, %v849
  %v854 = vld [vmem:[#allocation3 + $0x14] sm:$0xff]
  %v855 = vld [vmem:[#allocation3 + $0x1c] sm:$0xff]
  %858 = vrot.lane.b32.xlu0 %v854, 64
  %v859 = vpop.permute.xlu0 %858
  %860 = vrot.lane.b32.xlu0 %v855, 64
  %v861 = vpop.permute.xlu0 %860
  %864 = vst.msk [vmem:[#allocation4 + $0x10] sm:$0xff] %vm763, %v859
  %865 = vst.msk [vmem:[#allocation4 + $0x18] sm:$0xff] %vm763, %v861
  %v866 = vld [vmem:[#allocation3 + $0x24] sm:$0xff]
  %v867 = vld [vmem:[#allocation3 + $0x2c] sm:$0xff]
  %868 = vst.msk [vmem:[#allocation4 + $0x20] sm:$0xff] %vm657, %v866
  %869 = vst.msk [vmem:[#allocation4 + $0x28] sm:$0xff] %vm657, %v867
  %v870 = vld [vmem:[#allocation3 + $0x24] sm:$0xff]
  %v871 = vld [vmem:[#allocation3 + $0x2c] sm:$0xff]
  %872 = vst.msk [vmem:[#allocation4 + $0x20] sm:$0xff] %vm662, %v870
  %873 = vst.msk [vmem:[#allocation4 + $0x28] sm:$0xff] %vm662, %v871
  %v874 = vld [vmem:[#allocation3 + $0x24] sm:$0xff]
  %v875 = vld [vmem:[#allocation3 + $0x2c] sm:$0xff]
  %876 = vst.msk [vmem:[#allocation4 + $0x20] sm:$0xff] %vm667, %v874
  %877 = vst.msk [vmem:[#allocation4 + $0x28] sm:$0xff] %vm667, %v875
  %v878 = vld [vmem:[#allocation3 + $0x24] sm:$0xff]
  %v879 = vld [vmem:[#allocation3 + $0x2c] sm:$0xff]
  %880 = vst.msk [vmem:[#allocation4 + $0x20] sm:$0xff] %vm672, %v878
  %881 = vst.msk [vmem:[#allocation4 + $0x28] sm:$0xff] %vm672, %v879
  %v882 = vld [vmem:[#allocation3 + $0x25] sm:$0xff]
  %v883 = vld [vmem:[#allocation3 + $0x2d] sm:$0xff]
  %886 = vrot.lane.b32.xlu0 %v882, 32
  %v887 = vpop.permute.xlu0 %886
  %888 = vrot.lane.b32.xlu0 %v883, 32
  %v889 = vpop.permute.xlu0 %888
  %892 = vst.msk [vmem:[#allocation4 + $0x20] sm:$0xff] %vm685, %v887
  %893 = vst.msk [vmem:[#allocation4 + $0x28] sm:$0xff] %vm685, %v889
  %v894 = vld [vmem:[#allocation3 + $0x25] sm:$0xff]
  %v895 = vld [vmem:[#allocation3 + $0x2d] sm:$0xff]
  %898 = vrot.lane.b32.xlu0 %v894, 32
  %v899 = vpop.permute.xlu0 %898
  %900 = vrot.lane.b32.xlu0 %v895, 32
  %v901 = vpop.permute.xlu0 %900
  %904 = vst.msk [vmem:[#allocation4 + $0x20] sm:$0xff] %vm698, %v899
  %905 = vst.msk [vmem:[#allocation4 + $0x28] sm:$0xff] %vm698, %v901
  %v906 = vld [vmem:[#allocation3 + $0x25] sm:$0xff]
  %v907 = vld [vmem:[#allocation3 + $0x2d] sm:$0xff]
  %910 = vrot.lane.b32.xlu0 %v906, 32
  %v911 = vpop.permute.xlu0 %910
  %912 = vrot.lane.b32.xlu0 %v907, 32
  %v913 = vpop.permute.xlu0 %912
  %916 = vst.msk [vmem:[#allocation4 + $0x20] sm:$0xff] %vm711, %v911
  %917 = vst.msk [vmem:[#allocation4 + $0x28] sm:$0xff] %vm711, %v913
  %v918 = vld [vmem:[#allocation3 + $0x25] sm:$0xff]
  %v919 = vld [vmem:[#allocation3 + $0x2d] sm:$0xff]
  %922 = vrot.lane.b32.xlu0 %v918, 32
  %v923 = vpop.permute.xlu0 %922
  %924 = vrot.lane.b32.xlu0 %v919, 32
  %v925 = vpop.permute.xlu0 %924
  %928 = vst.msk [vmem:[#allocation4 + $0x20] sm:$0xff] %vm724, %v923
  %929 = vst.msk [vmem:[#allocation4 + $0x28] sm:$0xff] %vm724, %v925
  %v930 = vld [vmem:[#allocation3 + $0x26] sm:$0xff]
  %v931 = vld [vmem:[#allocation3 + $0x2e] sm:$0xff]
  %934 = vrot.lane.b32.xlu0 %v930, 64
  %v935 = vpop.permute.xlu0 %934
  %936 = vrot.lane.b32.xlu0 %v931, 64
  %v937 = vpop.permute.xlu0 %936
  %940 = vst.msk [vmem:[#allocation4 + $0x20] sm:$0xff] %vm737, %v935
  %941 = vst.msk [vmem:[#allocation4 + $0x28] sm:$0xff] %vm737, %v937
  %v942 = vld [vmem:[#allocation3 + $0x26] sm:$0xff]
  %v943 = vld [vmem:[#allocation3 + $0x2e] sm:$0xff]
  %946 = vrot.lane.b32.xlu0 %v942, 64
  %v947 = vpop.permute.xlu0 %946
  %948 = vrot.lane.b32.xlu0 %v943, 64
  %v949 = vpop.permute.xlu0 %948
  %952 = vst.msk [vmem:[#allocation4 + $0x20] sm:$0xff] %vm750, %v947
  %953 = vst.msk [vmem:[#allocation4 + $0x28] sm:$0xff] %vm750, %v949
  %v954 = vld [vmem:[#allocation3 + $0x26] sm:$0xff]
  %v955 = vld [vmem:[#allocation3 + $0x2e] sm:$0xff]
  %958 = vrot.lane.b32.xlu0 %v954, 64
  %v959 = vpop.permute.xlu0 %958
  %960 = vrot.lane.b32.xlu0 %v955, 64
  %v961 = vpop.permute.xlu0 %960
  %964 = vst.msk [vmem:[#allocation4 + $0x20] sm:$0xff] %vm763, %v959
  %965 = vst.msk [vmem:[#allocation4 + $0x28] sm:$0xff] %vm763, %v961
  %v966 = vld [vmem:[#allocation3 + $0x36] sm:$0xff]
  %v967 = vld [vmem:[#allocation3 + $0x3e] sm:$0xff]
  %968 = vst.msk [vmem:[#allocation4 + $0x30] sm:$0xff] %vm657, %v966
  %969 = vst.msk [vmem:[#allocation4 + $0x38] sm:$0xff] %vm657, %v967
  %v970 = vld [vmem:[#allocation3 + $0x36] sm:$0xff]
  %v971 = vld [vmem:[#allocation3 + $0x3e] sm:$0xff]
  %972 = vst.msk [vmem:[#allocation4 + $0x30] sm:$0xff] %vm662, %v970
  %973 = vst.msk [vmem:[#allocation4 + $0x38] sm:$0xff] %vm662, %v971
  %v974 = vld [vmem:[#allocation3 + $0x36] sm:$0xff]
  %v975 = vld [vmem:[#allocation3 + $0x3e] sm:$0xff]
  %976 = vst.msk [vmem:[#allocation4 + $0x30] sm:$0xff] %vm667, %v974
  %977 = vst.msk [vmem:[#allocation4 + $0x38] sm:$0xff] %vm667, %v975
  %v978 = vld [vmem:[#allocation3 + $0x36] sm:$0xff]
  %v979 = vld [vmem:[#allocation3 + $0x3e] sm:$0xff]
  %980 = vst.msk [vmem:[#allocation4 + $0x30] sm:$0xff] %vm672, %v978
  %981 = vst.msk [vmem:[#allocation4 + $0x38] sm:$0xff] %vm672, %v979
  %v982 = vld [vmem:[#allocation3 + $0x37] sm:$0xff]
  %v983 = vld [vmem:[#allocation3 + $0x3f] sm:$0xff]
  %986 = vrot.lane.b32.xlu0 %v982, 32
  %v987 = vpop.permute.xlu0 %986
  %988 = vrot.lane.b32.xlu0 %v983, 32
  %v989 = vpop.permute.xlu0 %988
  %992 = vst.msk [vmem:[#allocation4 + $0x30] sm:$0xff] %vm685, %v987
  %993 = vst.msk [vmem:[#allocation4 + $0x38] sm:$0xff] %vm685, %v989
  %v994 = vld [vmem:[#allocation3 + $0x37] sm:$0xff]
  %v995 = vld [vmem:[#allocation3 + $0x3f] sm:$0xff]
  %998 = vrot.lane.b32.xlu0 %v994, 32
  %v999 = vpop.permute.xlu0 %998
  %1000 = vrot.lane.b32.xlu0 %v995, 32
  %v1001 = vpop.permute.xlu0 %1000
  %1004 = vst.msk [vmem:[#allocation4 + $0x30] sm:$0xff] %vm698, %v999
  %1005 = vst.msk [vmem:[#allocation4 + $0x38] sm:$0xff] %vm698, %v1001
  %v1006 = vld [vmem:[#allocation3 + $0x37] sm:$0xff]
  %v1007 = vld [vmem:[#allocation3 + $0x3f] sm:$0xff]
  %1010 = vrot.lane.b32.xlu0 %v1006, 32
  %v1011 = vpop.permute.xlu0 %1010
  %1012 = vrot.lane.b32.xlu0 %v1007, 32
  %v1013 = vpop.permute.xlu0 %1012
  %1016 = vst.msk [vmem:[#allocation4 + $0x30] sm:$0xff] %vm711, %v1011
  %1017 = vst.msk [vmem:[#allocation4 + $0x38] sm:$0xff] %vm711, %v1013
  %v1018 = vld [vmem:[#allocation3 + $0x37] sm:$0xff]
  %v1019 = vld [vmem:[#allocation3 + $0x3f] sm:$0xff]
  %1022 = vrot.lane.b32.xlu0 %v1018, 32
  %v1023 = vpop.permute.xlu0 %1022
  %1024 = vrot.lane.b32.xlu0 %v1019, 32
  %v1025 = vpop.permute.xlu0 %1024
  %1028 = vst.msk [vmem:[#allocation4 + $0x30] sm:$0xff] %vm724, %v1023
  %1029 = vst.msk [vmem:[#allocation4 + $0x38] sm:$0xff] %vm724, %v1025
  %v1030 = vld [vmem:[#allocation3 + $0x38] sm:$0xff]
  %v1031 = vld [vmem:[#allocation3 + $0x40] sm:$0xff]
  %1034 = vrot.lane.b32.xlu0 %v1030, 64
  %v1035 = vpop.permute.xlu0 %1034
  %1036 = vrot.lane.b32.xlu0 %v1031, 64
  %v1037 = vpop.permute.xlu0 %1036
  %1040 = vst.msk [vmem:[#allocation4 + $0x30] sm:$0xff] %vm737, %v1035
  %1041 = vst.msk [vmem:[#allocation4 + $0x38] sm:$0xff] %vm737, %v1037
  %v1042 = vld [vmem:[#allocation3 + $0x38] sm:$0xff]
  %v1043 = vld [vmem:[#allocation3 + $0x40] sm:$0xff]
  %1046 = vrot.lane.b32.xlu0 %v1042, 64
  %v1047 = vpop.permute.xlu0 %1046
  %1048 = vrot.lane.b32.xlu0 %v1043, 64
  %v1049 = vpop.permute.xlu0 %1048
  %1052 = vst.msk [vmem:[#allocation4 + $0x30] sm:$0xff] %vm750, %v1047
  %1053 = vst.msk [vmem:[#allocation4 + $0x38] sm:$0xff] %vm750, %v1049
  %v1054 = vld [vmem:[#allocation3 + $0x38] sm:$0xff]
  %v1055 = vld [vmem:[#allocation3 + $0x40] sm:$0xff]
  %1058 = vrot.lane.b32.xlu0 %v1054, 64
  %v1059 = vpop.permute.xlu0 %1058
  %1060 = vrot.lane.b32.xlu0 %v1055, 64
  %v1061 = vpop.permute.xlu0 %1060
  %1064 = vst.msk [vmem:[#allocation4 + $0x30] sm:$0xff] %vm763, %v1059
  %1065 = vst.msk [vmem:[#allocation4 + $0x38] sm:$0xff] %vm763, %v1061
  %v1066 = vld [vmem:[#allocation4] sm:$0xff]
  %v1067 = vld [vmem:[#allocation4 + $0x8] sm:$0xff]
  %v1068 = vld [vmem:[#allocation4 + $0x10] sm:$0xff]
  %v1069 = vld [vmem:[#allocation4 + $0x18] sm:$0xff]
  %v1070 = vld [vmem:[#allocation4 + $0x20] sm:$0xff]
  %v1071 = vld [vmem:[#allocation4 + $0x28] sm:$0xff]
  %v1072 = vld [vmem:[#allocation4 + $0x30] sm:$0xff]
  %v1073 = vld [vmem:[#allocation4 + $0x38] sm:$0xff]
  %vm1074 = vcmask 719872
  %v1076 = vsel %vm1074, %v1066, 0
  %v1079 = vsel %vm1074, %v1067, 0
  %v1082 = vsel %vm1074, %v1068, 0
  %v1085 = vsel %vm1074, %v1069, 0
  %v1088 = vsel %vm1074, %v1070, 0
  %v1091 = vsel %vm1074, %v1071, 0
  %v1094 = vsel %vm1074, %v1072, 0
  %v1097 = vsel %vm1074, %v1073, 0
  %1099 = vmatprep.subr.mxu0 0.0
  %1100 = vmatpush1.msra.mxu0 %v21
  %1101 = vmatprep.subr.mxu0 0.0
  %1102 = vmatpush1.msra.mxu0 %v22
  %1103 = vmatprep.subr.mxu0 0.0
  %1104 = vmatpush1.msra.mxu0 %v23
  %1105 = vmatprep.subr.mxu0 0.0
  %1106 = vmatpush1.msra.mxu0 %v24
  %1107 = vmatprep.subr.mxu0 0.0
  %1108 = vmatpush1.msra.mxu0 %v25
  %1109 = vmatprep.subr.mxu0 0.0
  %1110 = vmatpush1.msra.mxu0 %v26
  %1111 = vmatprep.subr.mxu0 0.0
  %1112 = vmatpush1.msra.mxu0 %v27
  %1113 = vmatprep.subr.mxu0 0.0
  %1114 = vmatpush1.msra.mxu0 %v28
  %1115 = vmatprep.subr.mxu0 0.0
  %1116 = vmatpush1.msra.mxu0 %v29
  %1117 = vmatprep.subr.mxu0 0.0
  %1118 = vmatpush1.msra.mxu0 %v30
  %1119 = vmatprep.subr.mxu0 0.0
  %1120 = vmatpush1.msra.mxu0 %v31
  %1121 = vmatprep.subr.mxu0 0.0
  %1122 = vmatpush1.msra.mxu0 0.0
  %1123 = vmatprep.subr.mxu0 0.0
  %1124 = vmatpush1.msra.mxu0 0.0
  %1125 = vmatprep.subr.mxu0 0.0
  %1126 = vmatpush1.msra.mxu0 0.0
  %1127 = vmatprep.subr.mxu0 0.0
  %1128 = vmatpush1.msra.mxu0 0.0
  %1129 = vmatprep.subr.mxu0 0.0
  %1130 = vmatpush1.msra.mxu0 0.0
  %1131 = vmatprep.subr.mxu0 0.0
  %1132 = vmatpush1.msra.mxu0 0.0
  %1133 = vmatprep.subr.mxu0 0.0
  %1134 = vmatpush1.msra.mxu0 0.0
  %1135 = vmatprep.subr.mxu0 0.0
  %1136 = vmatpush1.msra.mxu0 0.0
  %1137 = vmatprep.subr.mxu0 0.0
  %1138 = vmatpush1.msra.mxu0 0.0
  %1139 = vmatprep.subr.mxu0 0.0
  %1140 = vmatpush1.msra.mxu0 0.0
  %1141 = vmatprep.subr.mxu0 0.0
  %1142 = vmatpush1.msra.mxu0 0.0
  %1143 = vmatprep.subr.mxu0 0.0
  %1144 = vmatpush1.msra.mxu0 0.0
  %1145 = vmatprep.subr.mxu0 0.0
  %1146 = vmatpush1.msra.mxu0 0.0
  %1147 = vmatprep.subr.mxu0 0.0
  %1148 = vmatpush1.msra.mxu0 0.0
  %1149 = vmatprep.subr.mxu0 0.0
  %1150 = vmatpush1.msra.mxu0 0.0
  %1151 = vmatprep.subr.mxu0 0.0
  %1152 = vmatpush1.msra.mxu0 0.0
  %1153 = vmatprep.subr.mxu0 0.0
  %1154 = vmatpush1.msra.mxu0 0.0
  %1155 = vmatprep.subr.mxu0 0.0
  %1156 = vmatpush1.msra.mxu0 0.0
  %1157 = vmatprep.subr.mxu0 0.0
  %1158 = vmatpush1.msra.mxu0 0.0
  %1159 = vmatprep.subr.mxu0 0.0
  %1160 = vmatpush1.msra.mxu0 0.0
  %1161 = vmatprep.subr.mxu0 0.0
  %1162 = vmatpush1.msra.mxu0 0.0
  %1163 = vmatprep.mubr.f32.mxu0 0.0
  %1164 = vmatmul.mubr.f32.gmra.mrb[0].mxu0 %v1076
  %v1165 = vpop.f32.mrb[0].mxu0
  %v1166 = vadd.f32 0.0, %v1165
  %v1167 = vpop.f32.mrb[0].mxu0
  %1168 = vmatprep.mubr.f32.mxu0 0.0
  %1169 = vmatmul.mubr.f32.gmra.mrb[0].mxu0 %v1079
  %v1170 = vpop.f32.mrb[0].mxu0
  %v1171 = vadd.f32 0.0, %v1170
  %v1172 = vpop.f32.mrb[0].mxu0
  %1173 = vmatprep.mubr.f32.mxu0 0.0
  %1174 = vmatmul.mubr.f32.gmra.mrb[0].mxu0 %v1082
  %v1175 = vpop.f32.mrb[0].mxu0
  %v1176 = vadd.f32 0.0, %v1175
  %v1177 = vpop.f32.mrb[0].mxu0
  %1178 = vmatprep.mubr.f32.mxu0 0.0
  %1179 = vmatmul.mubr.f32.gmra.mrb[0].mxu0 %v1085
  %v1180 = vpop.f32.mrb[0].mxu0
  %v1181 = vadd.f32 0.0, %v1180
  %v1182 = vpop.f32.mrb[0].mxu0
  %1183 = vmatprep.mubr.f32.mxu0 0.0
  %1184 = vmatmul.mubr.f32.gmra.mrb[0].mxu0 %v1088
  %v1185 = vpop.f32.mrb[0].mxu0
  %v1186 = vadd.f32 0.0, %v1185
  %v1187 = vpop.f32.mrb[0].mxu0
  %1188 = vmatprep.mubr.f32.mxu0 0.0
  %1189 = vmatmul.mubr.f32.gmra.mrb[0].mxu0 %v1091
  %v1190 = vpop.f32.mrb[0].mxu0
  %v1191 = vadd.f32 0.0, %v1190
  %v1192 = vpop.f32.mrb[0].mxu0
  %1193 = vmatprep.mubr.f32.mxu0 0.0
  %1194 = vmatmul.mubr.f32.gmra.mrb[0].mxu0 %v1094
  %v1195 = vpop.f32.mrb[0].mxu0
  %v1196 = vadd.f32 0.0, %v1195
  %v1197 = vpop.f32.mrb[0].mxu0
  %1198 = vmatprep.mubr.f32.mxu0 0.0
  %1199 = vmatmul.mubr.f32.gmra.mrb[0].mxu0 %v1097
  %v1200 = vpop.f32.mrb[0].mxu0
  %v1201 = vadd.f32 0.0, %v1200
  %v1202 = vpop.f32.mrb[0].mxu0
  %1203 = vdwg.mxu0
  %1212 = vrot.lane.b32.xlu0 %v1166, 112
  %v1213 = vpop.permute.xlu0 %1212
  %1214 = vrot.lane.b32.xlu0 %v1171, 112
  %v1215 = vpop.permute.xlu0 %1214
  %1216 = vrot.lane.b32.xlu0 %v1176, 112
  %v1217 = vpop.permute.xlu0 %1216
  %1218 = vrot.lane.b32.xlu0 %v1181, 112
  %v1219 = vpop.permute.xlu0 %1218
  %1220 = vrot.lane.b32.xlu0 %v1186, 112
  %v1221 = vpop.permute.xlu0 %1220
  %1222 = vrot.lane.b32.xlu0 %v1191, 112
  %v1223 = vpop.permute.xlu0 %1222
  %1224 = vrot.lane.b32.xlu0 %v1196, 112
  %v1225 = vpop.permute.xlu0 %1224
  %1226 = vrot.lane.b32.xlu0 %v1201, 112
  %v1227 = vpop.permute.xlu0 %1226
  %v1236 = vmax.f32 %v1166, %v1213
  %v1237 = vmax.f32 %v1171, %v1215
  %v1238 = vmax.f32 %v1176, %v1217
  %v1239 = vmax.f32 %v1181, %v1219
  %v1240 = vmax.f32 %v1186, %v1221
  %v1241 = vmax.f32 %v1191, %v1223
  %v1242 = vmax.f32 %v1196, %v1225
  %v1243 = vmax.f32 %v1201, %v1227
  %1252 = vrot.lane.b32.xlu0 %v1236, 96
  %v1253 = vpop.permute.xlu0 %1252
  %1254 = vrot.lane.b32.xlu0 %v1237, 96
  %v1255 = vpop.permute.xlu0 %1254
  %1256 = vrot.lane.b32.xlu0 %v1238, 96
  %v1257 = vpop.permute.xlu0 %1256
  %1258 = vrot.lane.b32.xlu0 %v1239, 96
  %v1259 = vpop.permute.xlu0 %1258
  %1260 = vrot.lane.b32.xlu0 %v1240, 96
  %v1261 = vpop.permute.xlu0 %1260
  %1262 = vrot.lane.b32.xlu0 %v1241, 96
  %v1263 = vpop.permute.xlu0 %1262
  %1264 = vrot.lane.b32.xlu0 %v1242, 96
  %v1265 = vpop.permute.xlu0 %1264
  %1266 = vrot.lane.b32.xlu0 %v1243, 96
  %v1267 = vpop.permute.xlu0 %1266
  %v1276 = vmax.f32 %v1236, %v1253
  %v1277 = vmax.f32 %v1237, %v1255
  %v1278 = vmax.f32 %v1238, %v1257
  %v1279 = vmax.f32 %v1239, %v1259
  %v1280 = vmax.f32 %v1240, %v1261
  %v1281 = vmax.f32 %v1241, %v1263
  %v1282 = vmax.f32 %v1242, %v1265
  %v1283 = vmax.f32 %v1243, %v1267
  %v1284 = vlaneseq
  %v1285 = vshrl.u32 %v1284, 7
  %v1286 = vsub.s32 0, %v1285
  %v1287 = vrot.slane %v65, %v1286
  %v1288 = vadd.f32 %v1276, %v1287
  %v1289 = vadd.f32 %v1277, %v1287
  %v1290 = vadd.f32 %v1278, %v1287
  %v1291 = vadd.f32 %v1279, %v1287
  %v1292 = vadd.f32 %v1280, %v1287
  %v1293 = vadd.f32 %v1281, %v1287
  %v1294 = vadd.f32 %v1282, %v1287
  %v1295 = vadd.f32 %v1283, %v1287
  %1296 = vst.msk [vmem:[#allocation5] sm:$0xff] %vm73, 0.0
  %1297 = vst.msk [vmem:[#allocation5 + $0x8] sm:$0xff] %vm73, 0.0
  %1298 = vst.msk [vmem:[#allocation5 + $0x10] sm:$0xff] %vm73, 0.0
  %1299 = vst.msk [vmem:[#allocation5 + $0x18] sm:$0xff] %vm73, 0.0
  %1300 = vst.msk [vmem:[#allocation5 + $0x20] sm:$0xff] %vm73, 0.0
  %1301 = vst.msk [vmem:[#allocation5 + $0x28] sm:$0xff] %vm73, 0.0
  %1302 = vst.msk [vmem:[#allocation5 + $0x30] sm:$0xff] %vm73, 0.0
  %1303 = vst.msk [vmem:[#allocation5 + $0x38] sm:$0xff] %vm73, 0.0
  %1304 = vst.msk [vmem:[#allocation5 + $0x40] sm:$0xff] %vm73, 0.0
  %1305 = vst.msk [vmem:[#allocation5 + $0x48] sm:$0xff] %vm73, 0.0
  %1306 = vst.msk [vmem:[#allocation5 + $0x50] sm:$0xff] %vm73, 0.0
  %1307 = vst.msk [vmem:[#allocation5 + $0x58] sm:$0xff] %vm73, 0.0
  %1308 = vst.msk [vmem:[#allocation5 + $0x3] sm:$0xff] %vm73, %v1288
  %1309 = vst.msk [vmem:[#allocation5 + $0xb] sm:$0xff] %vm73, %v1289
  %1310 = vst.msk [vmem:[#allocation5 + $0x1b] sm:$0xff] %vm73, %v1290
  %1311 = vst.msk [vmem:[#allocation5 + $0x23] sm:$0xff] %vm73, %v1291
  %1312 = vst.msk [vmem:[#allocation5 + $0x33] sm:$0xff] %vm73, %v1292
  %1313 = vst.msk [vmem:[#allocation5 + $0x3b] sm:$0xff] %vm73, %v1293
  %1314 = vst.msk [vmem:[#allocation5 + $0x4b] sm:$0xff] %vm73, %v1294
  %1315 = vst.msk [vmem:[#allocation5 + $0x53] sm:$0xff] %vm73, %v1295
  %v1316 = vld [vmem:[#allocation5] sm:$0xff]
  %v1317 = vld [vmem:[#allocation5 + $0x8] sm:$0xff]
  %1318 = vst.msk [vmem:[#allocation6] sm:$0xff] %vm73, %v1316
  %1319 = vst.msk [vmem:[#allocation6 + $0x10] sm:$0xff] %vm73, %v1317
  %v1320 = vld [vmem:[#allocation5 + $0x1] sm:$0xff]
  %v1321 = vld [vmem:[#allocation5 + $0x9] sm:$0xff]
  %1324 = vrot.lane.b32.xlu0 %v1320, 16
  %v1325 = vpop.permute.xlu0 %1324
  %1326 = vrot.lane.b32.xlu0 %v1321, 16
  %v1327 = vpop.permute.xlu0 %1326
  %1330 = vst.msk [vmem:[#allocation6] sm:$0xff] %vm93, %v1325
  %1331 = vst.msk [vmem:[#allocation6 + $0x10] sm:$0xff] %vm93, %v1327
  %v1332 = vld [vmem:[#allocation5 + $0x2] sm:$0xff]
  %v1333 = vld [vmem:[#allocation5 + $0xa] sm:$0xff]
  %1336 = vrot.lane.b32.xlu0 %v1332, 32
  %v1337 = vpop.permute.xlu0 %1336
  %1338 = vrot.lane.b32.xlu0 %v1333, 32
  %v1339 = vpop.permute.xlu0 %1338
  %1342 = vst.msk [vmem:[#allocation6] sm:$0xff] %vm113, %v1337
  %1343 = vst.msk [vmem:[#allocation6 + $0x10] sm:$0xff] %vm113, %v1339
  %v1344 = vld [vmem:[#allocation5 + $0x3] sm:$0xff]
  %v1345 = vld [vmem:[#allocation5 + $0xb] sm:$0xff]
  %1348 = vrot.lane.b32.xlu0 %v1344, 48
  %v1349 = vpop.permute.xlu0 %1348
  %1350 = vrot.lane.b32.xlu0 %v1345, 48
  %v1351 = vpop.permute.xlu0 %1350
  %1354 = vst.msk [vmem:[#allocation6] sm:$0xff] %vm133, %v1349
  %1355 = vst.msk [vmem:[#allocation6 + $0x10] sm:$0xff] %vm133, %v1351
  %v1356 = vld [vmem:[#allocation5 + $0x4] sm:$0xff]
  %v1357 = vld [vmem:[#allocation5 + $0xc] sm:$0xff]
  %1360 = vrot.lane.b32.xlu0 %v1356, 64
  %v1361 = vpop.permute.xlu0 %1360
  %1362 = vrot.lane.b32.xlu0 %v1357, 64
  %v1363 = vpop.permute.xlu0 %1362
  %1366 = vst.msk [vmem:[#allocation6] sm:$0xff] %vm153, %v1361
  %1367 = vst.msk [vmem:[#allocation6 + $0x10] sm:$0xff] %vm153, %v1363
  %v1368 = vld [vmem:[#allocation5 + $0x5] sm:$0xff]
  %v1369 = vld [vmem:[#allocation5 + $0xd] sm:$0xff]
  %1372 = vrot.lane.b32.xlu0 %v1368, 80
  %v1373 = vpop.permute.xlu0 %1372
  %1374 = vrot.lane.b32.xlu0 %v1369, 80
  %v1375 = vpop.permute.xlu0 %1374
  %vm1378 = vcmask 786048
  %1379 = vst.msk [vmem:[#allocation6] sm:$0xff] %vm1378, %v1373
  %1380 = vst.msk [vmem:[#allocation6 + $0x10] sm:$0xff] %vm1378, %v1375
  %v1381 = vld [vmem:[#allocation5 + $0x6] sm:$0xff]
  %v1382 = vld [vmem:[#allocation5 + $0xe] sm:$0xff]
  %1385 = vrot.lane.b32.xlu0 %v1381, 96
  %v1386 = vpop.permute.xlu0 %1385
  %1387 = vrot.lane.b32.xlu0 %v1382, 96
  %v1388 = vpop.permute.xlu0 %1387
  %vm1391 = vcmask 917248
  %1392 = vst.msk [vmem:[#allocation6] sm:$0xff] %vm1391, %v1386
  %1393 = vst.msk [vmem:[#allocation6 + $0x10] sm:$0xff] %vm1391, %v1388
  %v1394 = vld [vmem:[#allocation5 + $0x18] sm:$0xff]
  %v1395 = vld [vmem:[#allocation5 + $0x20] sm:$0xff]
  %1398 = vrot.lane.b32.xlu0 %v1394, 112
  %v1399 = vpop.permute.xlu0 %1398
  %1400 = vrot.lane.b32.xlu0 %v1395, 112
  %v1401 = vpop.permute.xlu0 %1400
  %vm1404 = vcmask 1048448
  %1405 = vst.msk [vmem:[#allocation6] sm:$0xff] %vm1404, %v1399
  %1406 = vst.msk [vmem:[#allocation6 + $0x10] sm:$0xff] %vm1404, %v1401
  %v1407 = vld [vmem:[#allocation5 + $0x19] sm:$0xff]
  %v1408 = vld [vmem:[#allocation5 + $0x21] sm:$0xff]
  %1409 = vst.msk [vmem:[#allocation6 + $0x8] sm:$0xff] %vm73, %v1407
  %1410 = vst.msk [vmem:[#allocation6 + $0x18] sm:$0xff] %vm73, %v1408
  %v1411 = vld [vmem:[#allocation5 + $0x1a] sm:$0xff]
  %v1412 = vld [vmem:[#allocation5 + $0x22] sm:$0xff]
  %1415 = vrot.lane.b32.xlu0 %v1411, 16
  %v1416 = vpop.permute.xlu0 %1415
  %1417 = vrot.lane.b32.xlu0 %v1412, 16
  %v1418 = vpop.permute.xlu0 %1417
  %1421 = vst.msk [vmem:[#allocation6 + $0x8] sm:$0xff] %vm93, %v1416
  %1422 = vst.msk [vmem:[#allocation6 + $0x18] sm:$0xff] %vm93, %v1418
  %v1423 = vld [vmem:[#allocation5 + $0x1b] sm:$0xff]
  %v1424 = vld [vmem:[#allocation5 + $0x23] sm:$0xff]
  %1427 = vrot.lane.b32.xlu0 %v1423, 32
  %v1428 = vpop.permute.xlu0 %1427
  %1429 = vrot.lane.b32.xlu0 %v1424, 32
  %v1430 = vpop.permute.xlu0 %1429
  %1433 = vst.msk [vmem:[#allocation6 + $0x8] sm:$0xff] %vm113, %v1428
  %1434 = vst.msk [vmem:[#allocation6 + $0x18] sm:$0xff] %vm113, %v1430
  %v1435 = vld [vmem:[#allocation5 + $0x1c] sm:$0xff]
  %v1436 = vld [vmem:[#allocation5 + $0x24] sm:$0xff]
  %1439 = vrot.lane.b32.xlu0 %v1435, 48
  %v1440 = vpop.permute.xlu0 %1439
  %1441 = vrot.lane.b32.xlu0 %v1436, 48
  %v1442 = vpop.permute.xlu0 %1441
  %1445 = vst.msk [vmem:[#allocation6 + $0x8] sm:$0xff] %vm133, %v1440
  %1446 = vst.msk [vmem:[#allocation6 + $0x18] sm:$0xff] %vm133, %v1442
  %v1447 = vld [vmem:[#allocation5 + $0x1d] sm:$0xff]
  %v1448 = vld [vmem:[#allocation5 + $0x25] sm:$0xff]
  %1451 = vrot.lane.b32.xlu0 %v1447, 64
  %v1452 = vpop.permute.xlu0 %1451
  %1453 = vrot.lane.b32.xlu0 %v1448, 64
  %v1454 = vpop.permute.xlu0 %1453
  %1457 = vst.msk [vmem:[#allocation6 + $0x8] sm:$0xff] %vm153, %v1452
  %1458 = vst.msk [vmem:[#allocation6 + $0x18] sm:$0xff] %vm153, %v1454
  %v1459 = vld [vmem:[#allocation5 + $0x1e] sm:$0xff]
  %v1460 = vld [vmem:[#allocation5 + $0x26] sm:$0xff]
  %1463 = vrot.lane.b32.xlu0 %v1459, 80
  %v1464 = vpop.permute.xlu0 %1463
  %1465 = vrot.lane.b32.xlu0 %v1460, 80
  %v1466 = vpop.permute.xlu0 %1465
  %1469 = vst.msk [vmem:[#allocation6 + $0x8] sm:$0xff] %vm1378, %v1464
  %1470 = vst.msk [vmem:[#allocation6 + $0x18] sm:$0xff] %vm1378, %v1466
  %v1471 = vld [vmem:[#allocation5 + $0x30] sm:$0xff]
  %v1472 = vld [vmem:[#allocation5 + $0x38] sm:$0xff]
  %1473 = vst.msk [vmem:[#allocation6 + $0x20] sm:$0xff] %vm73, %v1471
  %1474 = vst.msk [vmem:[#allocation6 + $0x30] sm:$0xff] %vm73, %v1472
  %v1475 = vld [vmem:[#allocation5 + $0x31] sm:$0xff]
  %v1476 = vld [vmem:[#allocation5 + $0x39] sm:$0xff]
  %1479 = vrot.lane.b32.xlu0 %v1475, 16
  %v1480 = vpop.permute.xlu0 %1479
  %1481 = vrot.lane.b32.xlu0 %v1476, 16
  %v1482 = vpop.permute.xlu0 %1481
  %1485 = vst.msk [vmem:[#allocation6 + $0x20] sm:$0xff] %vm93, %v1480
  %1486 = vst.msk [vmem:[#allocation6 + $0x30] sm:$0xff] %vm93, %v1482
  %v1487 = vld [vmem:[#allocation5 + $0x32] sm:$0xff]
  %v1488 = vld [vmem:[#allocation5 + $0x3a] sm:$0xff]
  %1491 = vrot.lane.b32.xlu0 %v1487, 32
  %v1492 = vpop.permute.xlu0 %1491
  %1493 = vrot.lane.b32.xlu0 %v1488, 32
  %v1494 = vpop.permute.xlu0 %1493
  %1497 = vst.msk [vmem:[#allocation6 + $0x20] sm:$0xff] %vm113, %v1492
  %1498 = vst.msk [vmem:[#allocation6 + $0x30] sm:$0xff] %vm113, %v1494
  %v1499 = vld [vmem:[#allocation5 + $0x33] sm:$0xff]
  %v1500 = vld [vmem:[#allocation5 + $0x3b] sm:$0xff]
  %1503 = vrot.lane.b32.xlu0 %v1499, 48
  %v1504 = vpop.permute.xlu0 %1503
  %1505 = vrot.lane.b32.xlu0 %v1500, 48
  %v1506 = vpop.permute.xlu0 %1505
  %1509 = vst.msk [vmem:[#allocation6 + $0x20] sm:$0xff] %vm133, %v1504
  %1510 = vst.msk [vmem:[#allocation6 + $0x30] sm:$0xff] %vm133, %v1506
  %v1511 = vld [vmem:[#allocation5 + $0x34] sm:$0xff]
  %v1512 = vld [vmem:[#allocation5 + $0x3c] sm:$0xff]
  %1515 = vrot.lane.b32.xlu0 %v1511, 64
  %v1516 = vpop.permute.xlu0 %1515
  %1517 = vrot.lane.b32.xlu0 %v1512, 64
  %v1518 = vpop.permute.xlu0 %1517
  %1521 = vst.msk [vmem:[#allocation6 + $0x20] sm:$0xff] %vm153, %v1516
  %1522 = vst.msk [vmem:[#allocation6 + $0x30] sm:$0xff] %vm153, %v1518
  %v1523 = vld [vmem:[#allocation5 + $0x35] sm:$0xff]
  %v1524 = vld [vmem:[#allocation5 + $0x3d] sm:$0xff]
  %1527 = vrot.lane.b32.xlu0 %v1523, 80
  %v1528 = vpop.permute.xlu0 %1527
  %1529 = vrot.lane.b32.xlu0 %v1524, 80
  %v1530 = vpop.permute.xlu0 %1529
  %1533 = vst.msk [vmem:[#allocation6 + $0x20] sm:$0xff] %vm1378, %v1528
  %1534 = vst.msk [vmem:[#allocation6 + $0x30] sm:$0xff] %vm1378, %v1530
  %v1535 = vld [vmem:[#allocation5 + $0x36] sm:$0xff]
  %v1536 = vld [vmem:[#allocation5 + $0x3e] sm:$0xff]
  %1539 = vrot.lane.b32.xlu0 %v1535, 96
  %v1540 = vpop.permute.xlu0 %1539
  %1541 = vrot.lane.b32.xlu0 %v1536, 96
  %v1542 = vpop.permute.xlu0 %1541
  %1545 = vst.msk [vmem:[#allocation6 + $0x20] sm:$0xff] %vm1391, %v1540
  %1546 = vst.msk [vmem:[#allocation6 + $0x30] sm:$0xff] %vm1391, %v1542
  %v1547 = vld [vmem:[#allocation5 + $0x48] sm:$0xff]
  %v1548 = vld [vmem:[#allocation5 + $0x50] sm:$0xff]
  %1551 = vrot.lane.b32.xlu0 %v1547, 112
  %v1552 = vpop.permute.xlu0 %1551
  %1553 = vrot.lane.b32.xlu0 %v1548, 112
  %v1554 = vpop.permute.xlu0 %1553
  %1557 = vst.msk [vmem:[#allocation6 + $0x20] sm:$0xff] %vm1404, %v1552
  %1558 = vst.msk [vmem:[#allocation6 + $0x30] sm:$0xff] %vm1404, %v1554
  %v1559 = vld [vmem:[#allocation5 + $0x49] sm:$0xff]
  %v1560 = vld [vmem:[#allocation5 + $0x51] sm:$0xff]
  %1561 = vst.msk [vmem:[#allocation6 + $0x28] sm:$0xff] %vm73, %v1559
  %1562 = vst.msk [vmem:[#allocation6 + $0x38] sm:$0xff] %vm73, %v1560
  %v1563 = vld [vmem:[#allocation5 + $0x4a] sm:$0xff]
  %v1564 = vld [vmem:[#allocation5 + $0x52] sm:$0xff]
  %1567 = vrot.lane.b32.xlu0 %v1563, 16
  %v1568 = vpop.permute.xlu0 %1567
  %1569 = vrot.lane.b32.xlu0 %v1564, 16
  %v1570 = vpop.permute.xlu0 %1569
  %1573 = vst.msk [vmem:[#allocation6 + $0x28] sm:$0xff] %vm93, %v1568
  %1574 = vst.msk [vmem:[#allocation6 + $0x38] sm:$0xff] %vm93, %v1570
  %v1575 = vld [vmem:[#allocation5 + $0x4b] sm:$0xff]
  %v1576 = vld [vmem:[#allocation5 + $0x53] sm:$0xff]
  %1579 = vrot.lane.b32.xlu0 %v1575, 32
  %v1580 = vpop.permute.xlu0 %1579
  %1581 = vrot.lane.b32.xlu0 %v1576, 32
  %v1582 = vpop.permute.xlu0 %1581
  %1585 = vst.msk [vmem:[#allocation6 + $0x28] sm:$0xff] %vm113, %v1580
  %1586 = vst.msk [vmem:[#allocation6 + $0x38] sm:$0xff] %vm113, %v1582
  %v1587 = vld [vmem:[#allocation5 + $0x4c] sm:$0xff]
  %v1588 = vld [vmem:[#allocation5 + $0x54] sm:$0xff]
  %1591 = vrot.lane.b32.xlu0 %v1587, 48
  %v1592 = vpop.permute.xlu0 %1591
  %1593 = vrot.lane.b32.xlu0 %v1588, 48
  %v1594 = vpop.permute.xlu0 %1593
  %1597 = vst.msk [vmem:[#allocation6 + $0x28] sm:$0xff] %vm133, %v1592
  %1598 = vst.msk [vmem:[#allocation6 + $0x38] sm:$0xff] %vm133, %v1594
  %v1599 = vld [vmem:[#allocation5 + $0x4d] sm:$0xff]
  %v1600 = vld [vmem:[#allocation5 + $0x55] sm:$0xff]
  %1603 = vrot.lane.b32.xlu0 %v1599, 64
  %v1604 = vpop.permute.xlu0 %1603
  %1605 = vrot.lane.b32.xlu0 %v1600, 64
  %v1606 = vpop.permute.xlu0 %1605
  %1609 = vst.msk [vmem:[#allocation6 + $0x28] sm:$0xff] %vm153, %v1604
  %1610 = vst.msk [vmem:[#allocation6 + $0x38] sm:$0xff] %vm153, %v1606
  %v1611 = vld [vmem:[#allocation5 + $0x4e] sm:$0xff]
  %v1612 = vld [vmem:[#allocation5 + $0x56] sm:$0xff]
  %1615 = vrot.lane.b32.xlu0 %v1611, 80
  %v1616 = vpop.permute.xlu0 %1615
  %1617 = vrot.lane.b32.xlu0 %v1612, 80
  %v1618 = vpop.permute.xlu0 %1617
  %1621 = vst.msk [vmem:[#allocation6 + $0x28] sm:$0xff] %vm1378, %v1616
  %1622 = vst.msk [vmem:[#allocation6 + $0x38] sm:$0xff] %vm1378, %v1618
  %v1623 = vld [vmem:[#allocation5] sm:$0xff]
  %v1624 = vld [vmem:[#allocation5 + $0x8] sm:$0xff]
  %1625 = vst.msk [vmem:[#allocation6 + $0x40] sm:$0xff] %vm73, %v1623
  %1626 = vst.msk [vmem:[#allocation6 + $0x50] sm:$0xff] %vm73, %v1624
  %v1627 = vld [vmem:[#allocation5 + $0x1] sm:$0xff]
  %v1628 = vld [vmem:[#allocation5 + $0x9] sm:$0xff]
  %1631 = vrot.lane.b32.xlu0 %v1627, 16
  %v1632 = vpop.permute.xlu0 %1631
  %1633 = vrot.lane.b32.xlu0 %v1628, 16
  %v1634 = vpop.permute.xlu0 %1633
  %1637 = vst.msk [vmem:[#allocation6 + $0x40] sm:$0xff] %vm93, %v1632
  %1638 = vst.msk [vmem:[#allocation6 + $0x50] sm:$0xff] %vm93, %v1634
  %v1639 = vld [vmem:[#allocation5 + $0x2] sm:$0xff]
  %v1640 = vld [vmem:[#allocation5 + $0xa] sm:$0xff]
  %1643 = vrot.lane.b32.xlu0 %v1639, 32
  %v1644 = vpop.permute.xlu0 %1643
  %1645 = vrot.lane.b32.xlu0 %v1640, 32
  %v1646 = vpop.permute.xlu0 %1645
  %1649 = vst.msk [vmem:[#allocation6 + $0x40] sm:$0xff] %vm113, %v1644
  %1650 = vst.msk [vmem:[#allocation6 + $0x50] sm:$0xff] %vm113, %v1646
  %v1651 = vld [vmem:[#allocation5 + $0x3] sm:$0xff]
  %v1652 = vld [vmem:[#allocation5 + $0xb] sm:$0xff]
  %1655 = vrot.lane.b32.xlu0 %v1651, 48
  %v1656 = vpop.permute.xlu0 %1655
  %1657 = vrot.lane.b32.xlu0 %v1652, 48
  %v1658 = vpop.permute.xlu0 %1657
  %1661 = vst.msk [vmem:[#allocation6 + $0x40] sm:$0xff] %vm133, %v1656
  %1662 = vst.msk [vmem:[#allocation6 + $0x50] sm:$0xff] %vm133, %v1658
  %v1663 = vld [vmem:[#allocation5 + $0x4] sm:$0xff]
  %v1664 = vld [vmem:[#allocation5 + $0xc] sm:$0xff]
  %1667 = vrot.lane.b32.xlu0 %v1663, 64
  %v1668 = vpop.permute.xlu0 %1667
  %1669 = vrot.lane.b32.xlu0 %v1664, 64
  %v1670 = vpop.permute.xlu0 %1669
  %1673 = vst.msk [vmem:[#allocation6 + $0x40] sm:$0xff] %vm153, %v1668
  %1674 = vst.msk [vmem:[#allocation6 + $0x50] sm:$0xff] %vm153, %v1670
  %v1675 = vld [vmem:[#allocation5 + $0x5] sm:$0xff]
  %v1676 = vld [vmem:[#allocation5 + $0xd] sm:$0xff]
  %1679 = vrot.lane.b32.xlu0 %v1675, 80
  %v1680 = vpop.permute.xlu0 %1679
  %1681 = vrot.lane.b32.xlu0 %v1676, 80
  %v1682 = vpop.permute.xlu0 %1681
  %1685 = vst.msk [vmem:[#allocation6 + $0x40] sm:$0xff] %vm1378, %v1680
  %1686 = vst.msk [vmem:[#allocation6 + $0x50] sm:$0xff] %vm1378, %v1682
  %v1687 = vld [vmem:[#allocation5 + $0x6] sm:$0xff]
  %v1688 = vld [vmem:[#allocation5 + $0xe] sm:$0xff]
  %1691 = vrot.lane.b32.xlu0 %v1687, 96
  %v1692 = vpop.permute.xlu0 %1691
  %1693 = vrot.lane.b32.xlu0 %v1688, 96
  %v1694 = vpop.permute.xlu0 %1693
  %1697 = vst.msk [vmem:[#allocation6 + $0x40] sm:$0xff] %vm1391, %v1692
  %1698 = vst.msk [vmem:[#allocation6 + $0x50] sm:$0xff] %vm1391, %v1694
  %v1699 = vld [vmem:[#allocation5] sm:$0xff]
  %v1700 = vld [vmem:[#allocation5 + $0x8] sm:$0xff]
  %1703 = vrot.lane.b32.xlu0 %v1699, 112
  %v1704 = vpop.permute.xlu0 %1703
  %1705 = vrot.lane.b32.xlu0 %v1700, 112
  %v1706 = vpop.permute.xlu0 %1705
  %1709 = vst.msk [vmem:[#allocation6 + $0x40] sm:$0xff] %vm1404, %v1704
  %1710 = vst.msk [vmem:[#allocation6 + $0x50] sm:$0xff] %vm1404, %v1706
  %v1711 = vld [vmem:[#allocation5 + $0x1] sm:$0xff]
  %v1712 = vld [vmem:[#allocation5 + $0x9] sm:$0xff]
  %1713 = vst.msk [vmem:[#allocation6 + $0x48] sm:$0xff] %vm73, %v1711
  %1714 = vst.msk [vmem:[#allocation6 + $0x58] sm:$0xff] %vm73, %v1712
  %v1715 = vld [vmem:[#allocation5 + $0x2] sm:$0xff]
  %v1716 = vld [vmem:[#allocation5 + $0xa] sm:$0xff]
  %1719 = vrot.lane.b32.xlu0 %v1715, 16
  %v1720 = vpop.permute.xlu0 %1719
  %1721 = vrot.lane.b32.xlu0 %v1716, 16
  %v1722 = vpop.permute.xlu0 %1721
  %1725 = vst.msk [vmem:[#allocation6 + $0x48] sm:$0xff] %vm93, %v1720
  %1726 = vst.msk [vmem:[#allocation6 + $0x58] sm:$0xff] %vm93, %v1722
  %v1727 = vld [vmem:[#allocation5 + $0x3] sm:$0xff]
  %v1728 = vld [vmem:[#allocation5 + $0xb] sm:$0xff]
  %1731 = vrot.lane.b32.xlu0 %v1727, 32
  %v1732 = vpop.permute.xlu0 %1731
  %1733 = vrot.lane.b32.xlu0 %v1728, 32
  %v1734 = vpop.permute.xlu0 %1733
  %1737 = vst.msk [vmem:[#allocation6 + $0x48] sm:$0xff] %vm113, %v1732
  %1738 = vst.msk [vmem:[#allocation6 + $0x58] sm:$0xff] %vm113, %v1734
  %v1739 = vld [vmem:[#allocation5 + $0x4] sm:$0xff]
  %v1740 = vld [vmem:[#allocation5 + $0xc] sm:$0xff]
  %1743 = vrot.lane.b32.xlu0 %v1739, 48
  %v1744 = vpop.permute.xlu0 %1743
  %1745 = vrot.lane.b32.xlu0 %v1740, 48
  %v1746 = vpop.permute.xlu0 %1745
  %1749 = vst.msk [vmem:[#allocation6 + $0x48] sm:$0xff] %vm133, %v1744
  %1750 = vst.msk [vmem:[#allocation6 + $0x58] sm:$0xff] %vm133, %v1746
  %v1751 = vld [vmem:[#allocation5 + $0x5] sm:$0xff]
  %v1752 = vld [vmem:[#allocation5 + $0xd] sm:$0xff]
  %1755 = vrot.lane.b32.xlu0 %v1751, 64
  %v1756 = vpop.permute.xlu0 %1755
  %1757 = vrot.lane.b32.xlu0 %v1752, 64
  %v1758 = vpop.permute.xlu0 %1757
  %1761 = vst.msk [vmem:[#allocation6 + $0x48] sm:$0xff] %vm153, %v1756
  %1762 = vst.msk [vmem:[#allocation6 + $0x58] sm:$0xff] %vm153, %v1758
  %v1763 = vld [vmem:[#allocation5 + $0x6] sm:$0xff]
  %v1764 = vld [vmem:[#allocation5 + $0xe] sm:$0xff]
  %1767 = vrot.lane.b32.xlu0 %v1763, 80
  %v1768 = vpop.permute.xlu0 %1767
  %1769 = vrot.lane.b32.xlu0 %v1764, 80
  %v1770 = vpop.permute.xlu0 %1769
  %1773 = vst.msk [vmem:[#allocation6 + $0x48] sm:$0xff] %vm1378, %v1768
  %1774 = vst.msk [vmem:[#allocation6 + $0x58] sm:$0xff] %vm1378, %v1770
  %v1775 = vld [vmem:[#allocation5 + $0x30] sm:$0xff]
  %v1776 = vld [vmem:[#allocation5 + $0x38] sm:$0xff]
  %1777 = vst.msk [vmem:[#allocation6 + $0x60] sm:$0xff] %vm73, %v1775
  %1778 = vst.msk [vmem:[#allocation6 + $0x70] sm:$0xff] %vm73, %v1776
  %v1779 = vld [vmem:[#allocation5 + $0x31] sm:$0xff]
  %v1780 = vld [vmem:[#allocation5 + $0x39] sm:$0xff]
  %1783 = vrot.lane.b32.xlu0 %v1779, 16
  %v1784 = vpop.permute.xlu0 %1783
  %1785 = vrot.lane.b32.xlu0 %v1780, 16
  %v1786 = vpop.permute.xlu0 %1785
  %1789 = vst.msk [vmem:[#allocation6 + $0x60] sm:$0xff] %vm93, %v1784
  %1790 = vst.msk [vmem:[#allocation6 + $0x70] sm:$0xff] %vm93, %v1786
  %v1791 = vld [vmem:[#allocation5 + $0x32] sm:$0xff]
  %v1792 = vld [vmem:[#allocation5 + $0x3a] sm:$0xff]
  %1795 = vrot.lane.b32.xlu0 %v1791, 32
  %v1796 = vpop.permute.xlu0 %1795
  %1797 = vrot.lane.b32.xlu0 %v1792, 32
  %v1798 = vpop.permute.xlu0 %1797
  %1801 = vst.msk [vmem:[#allocation6 + $0x60] sm:$0xff] %vm113, %v1796
  %1802 = vst.msk [vmem:[#allocation6 + $0x70] sm:$0xff] %vm113, %v1798
  %v1803 = vld [vmem:[#allocation5 + $0x33] sm:$0xff]
  %v1804 = vld [vmem:[#allocation5 + $0x3b] sm:$0xff]
  %1807 = vrot.lane.b32.xlu0 %v1803, 48
  %v1808 = vpop.permute.xlu0 %1807
  %1809 = vrot.lane.b32.xlu0 %v1804, 48
  %v1810 = vpop.permute.xlu0 %1809
  %1813 = vst.msk [vmem:[#allocation6 + $0x60] sm:$0xff] %vm133, %v1808
  %1814 = vst.msk [vmem:[#allocation6 + $0x70] sm:$0xff] %vm133, %v1810
  %v1815 = vld [vmem:[#allocation5 + $0x34] sm:$0xff]
  %v1816 = vld [vmem:[#allocation5 + $0x3c] sm:$0xff]
  %1819 = vrot.lane.b32.xlu0 %v1815, 64
  %v1820 = vpop.permute.xlu0 %1819
  %1821 = vrot.lane.b32.xlu0 %v1816, 64
  %v1822 = vpop.permute.xlu0 %1821
  %1825 = vst.msk [vmem:[#allocation6 + $0x60] sm:$0xff] %vm153, %v1820
  %1826 = vst.msk [vmem:[#allocation6 + $0x70] sm:$0xff] %vm153, %v1822
  %v1827 = vld [vmem:[#allocation5 + $0x35] sm:$0xff]
  %v1828 = vld [vmem:[#allocation5 + $0x3d] sm:$0xff]
  %1831 = vrot.lane.b32.xlu0 %v1827, 80
  %v1832 = vpop.permute.xlu0 %1831
  %1833 = vrot.lane.b32.xlu0 %v1828, 80
  %v1834 = vpop.permute.xlu0 %1833
  %1837 = vst.msk [vmem:[#allocation6 + $0x60] sm:$0xff] %vm1378, %v1832
  %1838 = vst.msk [vmem:[#allocation6 + $0x70] sm:$0xff] %vm1378, %v1834
  %v1839 = vld [vmem:[#allocation5 + $0x36] sm:$0xff]
  %v1840 = vld [vmem:[#allocation5 + $0x3e] sm:$0xff]
  %1843 = vrot.lane.b32.xlu0 %v1839, 96
  %v1844 = vpop.permute.xlu0 %1843
  %1845 = vrot.lane.b32.xlu0 %v1840, 96
  %v1846 = vpop.permute.xlu0 %1845
  %1849 = vst.msk [vmem:[#allocation6 + $0x60] sm:$0xff] %vm1391, %v1844
  %1850 = vst.msk [vmem:[#allocation6 + $0x70] sm:$0xff] %vm1391, %v1846
  %v1851 = vld [vmem:[#allocation5 + $0x30] sm:$0xff]
  %v1852 = vld [vmem:[#allocation5 + $0x38] sm:$0xff]
  %1855 = vrot.lane.b32.xlu0 %v1851, 112
  %v1856 = vpop.permute.xlu0 %1855
  %1857 = vrot.lane.b32.xlu0 %v1852, 112
  %v1858 = vpop.permute.xlu0 %1857
  %1861 = vst.msk [vmem:[#allocation6 + $0x60] sm:$0xff] %vm1404, %v1856
  %1862 = vst.msk [vmem:[#allocation6 + $0x70] sm:$0xff] %vm1404, %v1858
  %v1863 = vld [vmem:[#allocation5 + $0x31] sm:$0xff]
  %v1864 = vld [vmem:[#allocation5 + $0x39] sm:$0xff]
  %1865 = vst.msk [vmem:[#allocation6 + $0x68] sm:$0xff] %vm73, %v1863
  %1866 = vst.msk [vmem:[#allocation6 + $0x78] sm:$0xff] %vm73, %v1864
  %v1867 = vld [vmem:[#allocation5 + $0x32] sm:$0xff]
  %v1868 = vld [vmem:[#allocation5 + $0x3a] sm:$0xff]
  %1871 = vrot.lane.b32.xlu0 %v1867, 16
  %v1872 = vpop.permute.xlu0 %1871
  %1873 = vrot.lane.b32.xlu0 %v1868, 16
  %v1874 = vpop.permute.xlu0 %1873
  %1877 = vst.msk [vmem:[#allocation6 + $0x68] sm:$0xff] %vm93, %v1872
  %1878 = vst.msk [vmem:[#allocation6 + $0x78] sm:$0xff] %vm93, %v1874
  %v1879 = vld [vmem:[#allocation5 + $0x33] sm:$0xff]
  %v1880 = vld [vmem:[#allocation5 + $0x3b] sm:$0xff]
  %1883 = vrot.lane.b32.xlu0 %v1879, 32
  %v1884 = vpop.permute.xlu0 %1883
  %1885 = vrot.lane.b32.xlu0 %v1880, 32
  %v1886 = vpop.permute.xlu0 %1885
  %1889 = vst.msk [vmem:[#allocation6 + $0x68] sm:$0xff] %vm113, %v1884
  %1890 = vst.msk [vmem:[#allocation6 + $0x78] sm:$0xff] %vm113, %v1886
  %v1891 = vld [vmem:[#allocation5 + $0x34] sm:$0xff]
  %v1892 = vld [vmem:[#allocation5 + $0x3c] sm:$0xff]
  %1895 = vrot.lane.b32.xlu0 %v1891, 48
  %v1896 = vpop.permute.xlu0 %1895
  %1897 = vrot.lane.b32.xlu0 %v1892, 48
  %v1898 = vpop.permute.xlu0 %1897
  %1901 = vst.msk [vmem:[#allocation6 + $0x68] sm:$0xff] %vm133, %v1896
  %1902 = vst.msk [vmem:[#allocation6 + $0x78] sm:$0xff] %vm133, %v1898
  %v1903 = vld [vmem:[#allocation5 + $0x35] sm:$0xff]
  %v1904 = vld [vmem:[#allocation5 + $0x3d] sm:$0xff]
  %1907 = vrot.lane.b32.xlu0 %v1903, 64
  %v1908 = vpop.permute.xlu0 %1907
  %1909 = vrot.lane.b32.xlu0 %v1904, 64
  %v1910 = vpop.permute.xlu0 %1909
  %1913 = vst.msk [vmem:[#allocation6 + $0x68] sm:$0xff] %vm153, %v1908
  %1914 = vst.msk [vmem:[#allocation6 + $0x78] sm:$0xff] %vm153, %v1910
  %v1915 = vld [vmem:[#allocation5 + $0x36] sm:$0xff]
  %v1916 = vld [vmem:[#allocation5 + $0x3e] sm:$0xff]
  %1919 = vrot.lane.b32.xlu0 %v1915, 80
  %v1920 = vpop.permute.xlu0 %1919
  %1921 = vrot.lane.b32.xlu0 %v1916, 80
  %v1922 = vpop.permute.xlu0 %1921
  %1925 = vst.msk [vmem:[#allocation6 + $0x68] sm:$0xff] %vm1378, %v1920
  %1926 = vst.msk [vmem:[#allocation6 + $0x78] sm:$0xff] %vm1378, %v1922
  %v1927 = vld [vmem:[#allocation5 + $0x18] sm:$0xff]
  %v1928 = vld [vmem:[#allocation5 + $0x20] sm:$0xff]
  %1929 = vst.msk [vmem:[#allocation6 + $0x80] sm:$0xff] %vm73, %v1927
  %1930 = vst.msk [vmem:[#allocation6 + $0x90] sm:$0xff] %vm73, %v1928
  %v1931 = vld [vmem:[#allocation5 + $0x19] sm:$0xff]
  %v1932 = vld [vmem:[#allocation5 + $0x21] sm:$0xff]
  %1935 = vrot.lane.b32.xlu0 %v1931, 16
  %v1936 = vpop.permute.xlu0 %1935
  %1937 = vrot.lane.b32.xlu0 %v1932, 16
  %v1938 = vpop.permute.xlu0 %1937
  %1941 = vst.msk [vmem:[#allocation6 + $0x80] sm:$0xff] %vm93, %v1936
  %1942 = vst.msk [vmem:[#allocation6 + $0x90] sm:$0xff] %vm93, %v1938
  %v1943 = vld [vmem:[#allocation5 + $0x1a] sm:$0xff]
  %v1944 = vld [vmem:[#allocation5 + $0x22] sm:$0xff]
  %1947 = vrot.lane.b32.xlu0 %v1943, 32
  %v1948 = vpop.permute.xlu0 %1947
  %1949 = vrot.lane.b32.xlu0 %v1944, 32
  %v1950 = vpop.permute.xlu0 %1949
  %1953 = vst.msk [vmem:[#allocation6 + $0x80] sm:$0xff] %vm113, %v1948
  %1954 = vst.msk [vmem:[#allocation6 + $0x90] sm:$0xff] %vm113, %v1950
  %v1955 = vld [vmem:[#allocation5 + $0x1b] sm:$0xff]
  %v1956 = vld [vmem:[#allocation5 + $0x23] sm:$0xff]
  %1959 = vrot.lane.b32.xlu0 %v1955, 48
  %v1960 = vpop.permute.xlu0 %1959
  %1961 = vrot.lane.b32.xlu0 %v1956, 48
  %v1962 = vpop.permute.xlu0 %1961
  %1965 = vst.msk [vmem:[#allocation6 + $0x80] sm:$0xff] %vm133, %v1960
  %1966 = vst.msk [vmem:[#allocation6 + $0x90] sm:$0xff] %vm133, %v1962
  %v1967 = vld [vmem:[#allocation5 + $0x1c] sm:$0xff]
  %v1968 = vld [vmem:[#allocation5 + $0x24] sm:$0xff]
  %1971 = vrot.lane.b32.xlu0 %v1967, 64
  %v1972 = vpop.permute.xlu0 %1971
  %1973 = vrot.lane.b32.xlu0 %v1968, 64
  %v1974 = vpop.permute.xlu0 %1973
  %1977 = vst.msk [vmem:[#allocation6 + $0x80] sm:$0xff] %vm153, %v1972
  %1978 = vst.msk [vmem:[#allocation6 + $0x90] sm:$0xff] %vm153, %v1974
  %v1979 = vld [vmem:[#allocation5 + $0x1d] sm:$0xff]
  %v1980 = vld [vmem:[#allocation5 + $0x25] sm:$0xff]
  %1983 = vrot.lane.b32.xlu0 %v1979, 80
  %v1984 = vpop.permute.xlu0 %1983
  %1985 = vrot.lane.b32.xlu0 %v1980, 80
  %v1986 = vpop.permute.xlu0 %1985
  %1989 = vst.msk [vmem:[#allocation6 + $0x80] sm:$0xff] %vm1378, %v1984
  %1990 = vst.msk [vmem:[#allocation6 + $0x90] sm:$0xff] %vm1378, %v1986
  %v1991 = vld [vmem:[#allocation5 + $0x1e] sm:$0xff]
  %v1992 = vld [vmem:[#allocation5 + $0x26] sm:$0xff]
  %1995 = vrot.lane.b32.xlu0 %v1991, 96
  %v1996 = vpop.permute.xlu0 %1995
  %1997 = vrot.lane.b32.xlu0 %v1992, 96
  %v1998 = vpop.permute.xlu0 %1997
  %2001 = vst.msk [vmem:[#allocation6 + $0x80] sm:$0xff] %vm1391, %v1996
  %2002 = vst.msk [vmem:[#allocation6 + $0x90] sm:$0xff] %vm1391, %v1998
  %v2003 = vld [vmem:[#allocation5 + $0x18] sm:$0xff]
  %v2004 = vld [vmem:[#allocation5 + $0x20] sm:$0xff]
  %2007 = vrot.lane.b32.xlu0 %v2003, 112
  %v2008 = vpop.permute.xlu0 %2007
  %2009 = vrot.lane.b32.xlu0 %v2004, 112
  %v2010 = vpop.permute.xlu0 %2009
  %2013 = vst.msk [vmem:[#allocation6 + $0x80] sm:$0xff] %vm1404, %v2008
  %2014 = vst.msk [vmem:[#allocation6 + $0x90] sm:$0xff] %vm1404, %v2010
  %v2015 = vld [vmem:[#allocation5 + $0x19] sm:$0xff]
  %v2016 = vld [vmem:[#allocation5 + $0x21] sm:$0xff]
  %2017 = vst.msk [vmem:[#allocation6 + $0x88] sm:$0xff] %vm73, %v2015
  %2018 = vst.msk [vmem:[#allocation6 + $0x98] sm:$0xff] %vm73, %v2016
  %v2019 = vld [vmem:[#allocation5 + $0x1a] sm:$0xff]
  %v2020 = vld [vmem:[#allocation5 + $0x22] sm:$0xff]
  %2023 = vrot.lane.b32.xlu0 %v2019, 16
  %v2024 = vpop.permute.xlu0 %2023
  %2025 = vrot.lane.b32.xlu0 %v2020, 16
  %v2026 = vpop.permute.xlu0 %2025
  %2029 = vst.msk [vmem:[#allocation6 + $0x88] sm:$0xff] %vm93, %v2024
  %2030 = vst.msk [vmem:[#allocation6 + $0x98] sm:$0xff] %vm93, %v2026
  %v2031 = vld [vmem:[#allocation5 + $0x1b] sm:$0xff]
  %v2032 = vld [vmem:[#allocation5 + $0x23] sm:$0xff]
  %2035 = vrot.lane.b32.xlu0 %v2031, 32
  %v2036 = vpop.permute.xlu0 %2035
  %2037 = vrot.lane.b32.xlu0 %v2032, 32
  %v2038 = vpop.permute.xlu0 %2037
  %2041 = vst.msk [vmem:[#allocation6 + $0x88] sm:$0xff] %vm113, %v2036
  %2042 = vst.msk [vmem:[#allocation6 + $0x98] sm:$0xff] %vm113, %v2038
  %v2043 = vld [vmem:[#allocation5 + $0x1c] sm:$0xff]
  %v2044 = vld [vmem:[#allocation5 + $0x24] sm:$0xff]
  %2047 = vrot.lane.b32.xlu0 %v2043, 48
  %v2048 = vpop.permute.xlu0 %2047
  %2049 = vrot.lane.b32.xlu0 %v2044, 48
  %v2050 = vpop.permute.xlu0 %2049
  %2053 = vst.msk [vmem:[#allocation6 + $0x88] sm:$0xff] %vm133, %v2048
  %2054 = vst.msk [vmem:[#allocation6 + $0x98] sm:$0xff] %vm133, %v2050
  %v2055 = vld [vmem:[#allocation5 + $0x1d] sm:$0xff]
  %v2056 = vld [vmem:[#allocation5 + $0x25] sm:$0xff]
  %2059 = vrot.lane.b32.xlu0 %v2055, 64
  %v2060 = vpop.permute.xlu0 %2059
  %2061 = vrot.lane.b32.xlu0 %v2056, 64
  %v2062 = vpop.permute.xlu0 %2061
  %2065 = vst.msk [vmem:[#allocation6 + $0x88] sm:$0xff] %vm153, %v2060
  %2066 = vst.msk [vmem:[#allocation6 + $0x98] sm:$0xff] %vm153, %v2062
  %v2067 = vld [vmem:[#allocation5 + $0x1e] sm:$0xff]
  %v2068 = vld [vmem:[#allocation5 + $0x26] sm:$0xff]
  %2071 = vrot.lane.b32.xlu0 %v2067, 80
  %v2072 = vpop.permute.xlu0 %2071
  %2073 = vrot.lane.b32.xlu0 %v2068, 80
  %v2074 = vpop.permute.xlu0 %2073
  %2077 = vst.msk [vmem:[#allocation6 + $0x88] sm:$0xff] %vm1378, %v2072
  %2078 = vst.msk [vmem:[#allocation6 + $0x98] sm:$0xff] %vm1378, %v2074
  %v2079 = vld [vmem:[#allocation5 + $0x48] sm:$0xff]
  %v2080 = vld [vmem:[#allocation5 + $0x50] sm:$0xff]
  %2081 = vst.msk [vmem:[#allocation6 + $0xa0] sm:$0xff] %vm73, %v2079
  %2082 = vst.msk [vmem:[#allocation6 + $0xb0] sm:$0xff] %vm73, %v2080
  %v2083 = vld [vmem:[#allocation5 + $0x49] sm:$0xff]
  %v2084 = vld [vmem:[#allocation5 + $0x51] sm:$0xff]
  %2087 = vrot.lane.b32.xlu0 %v2083, 16
  %v2088 = vpop.permute.xlu0 %2087
  %2089 = vrot.lane.b32.xlu0 %v2084, 16
  %v2090 = vpop.permute.xlu0 %2089
  %2093 = vst.msk [vmem:[#allocation6 + $0xa0] sm:$0xff] %vm93, %v2088
  %2094 = vst.msk [vmem:[#allocation6 + $0xb0] sm:$0xff] %vm93, %v2090
  %v2095 = vld [vmem:[#allocation5 + $0x4a] sm:$0xff]
  %v2096 = vld [vmem:[#allocation5 + $0x52] sm:$0xff]
  %2099 = vrot.lane.b32.xlu0 %v2095, 32
  %v2100 = vpop.permute.xlu0 %2099
  %2101 = vrot.lane.b32.xlu0 %v2096, 32
  %v2102 = vpop.permute.xlu0 %2101
  %2105 = vst.msk [vmem:[#allocation6 + $0xa0] sm:$0xff] %vm113, %v2100
  %2106 = vst.msk [vmem:[#allocation6 + $0xb0] sm:$0xff] %vm113, %v2102
  %v2107 = vld [vmem:[#allocation5 + $0x4b] sm:$0xff]
  %v2108 = vld [vmem:[#allocation5 + $0x53] sm:$0xff]
  %2111 = vrot.lane.b32.xlu0 %v2107, 48
  %v2112 = vpop.permute.xlu0 %2111
  %2113 = vrot.lane.b32.xlu0 %v2108, 48
  %v2114 = vpop.permute.xlu0 %2113
  %2117 = vst.msk [vmem:[#allocation6 + $0xa0] sm:$0xff] %vm133, %v2112
  %2118 = vst.msk [vmem:[#allocation6 + $0xb0] sm:$0xff] %vm133, %v2114
  %v2119 = vld [vmem:[#allocation5 + $0x4c] sm:$0xff]
  %v2120 = vld [vmem:[#allocation5 + $0x54] sm:$0xff]
  %2123 = vrot.lane.b32.xlu0 %v2119, 64
  %v2124 = vpop.permute.xlu0 %2123
  %2125 = vrot.lane.b32.xlu0 %v2120, 64
  %v2126 = vpop.permute.xlu0 %2125
  %2129 = vst.msk [vmem:[#allocation6 + $0xa0] sm:$0xff] %vm153, %v2124
  %2130 = vst.msk [vmem:[#allocation6 + $0xb0] sm:$0xff] %vm153, %v2126
  %v2131 = vld [vmem:[#allocation5 + $0x4d] sm:$0xff]
  %v2132 = vld [vmem:[#allocation5 + $0x55] sm:$0xff]
  %2135 = vrot.lane.b32.xlu0 %v2131, 80
  %v2136 = vpop.permute.xlu0 %2135
  %2137 = vrot.lane.b32.xlu0 %v2132, 80
  %v2138 = vpop.permute.xlu0 %2137
  %2141 = vst.msk [vmem:[#allocation6 + $0xa0] sm:$0xff] %vm1378, %v2136
  %2142 = vst.msk [vmem:[#allocation6 + $0xb0] sm:$0xff] %vm1378, %v2138
  %v2143 = vld [vmem:[#allocation5 + $0x4e] sm:$0xff]
  %v2144 = vld [vmem:[#allocation5 + $0x56] sm:$0xff]
  %2147 = vrot.lane.b32.xlu0 %v2143, 96
  %v2148 = vpop.permute.xlu0 %2147
  %2149 = vrot.lane.b32.xlu0 %v2144, 96
  %v2150 = vpop.permute.xlu0 %2149
  %2153 = vst.msk [vmem:[#allocation6 + $0xa0] sm:$0xff] %vm1391, %v2148
  %2154 = vst.msk [vmem:[#allocation6 + $0xb0] sm:$0xff] %vm1391, %v2150
  %v2155 = vld [vmem:[#allocation5 + $0x48] sm:$0xff]
  %v2156 = vld [vmem:[#allocation5 + $0x50] sm:$0xff]
  %2159 = vrot.lane.b32.xlu0 %v2155, 112
  %v2160 = vpop.permute.xlu0 %2159
  %2161 = vrot.lane.b32.xlu0 %v2156, 112
  %v2162 = vpop.permute.xlu0 %2161
  %2165 = vst.msk [vmem:[#allocation6 + $0xa0] sm:$0xff] %vm1404, %v2160
  %2166 = vst.msk [vmem:[#allocation6 + $0xb0] sm:$0xff] %vm1404, %v2162
  %v2167 = vld [vmem:[#allocation5 + $0x49] sm:$0xff]
  %v2168 = vld [vmem:[#allocation5 + $0x51] sm:$0xff]
  %2169 = vst.msk [vmem:[#allocation6 + $0xa8] sm:$0xff] %vm73, %v2167
  %2170 = vst.msk [vmem:[#allocation6 + $0xb8] sm:$0xff] %vm73, %v2168
  %v2171 = vld [vmem:[#allocation5 + $0x4a] sm:$0xff]
  %v2172 = vld [vmem:[#allocation5 + $0x52] sm:$0xff]
  %2175 = vrot.lane.b32.xlu0 %v2171, 16
  %v2176 = vpop.permute.xlu0 %2175
  %2177 = vrot.lane.b32.xlu0 %v2172, 16
  %v2178 = vpop.permute.xlu0 %2177
  %2181 = vst.msk [vmem:[#allocation6 + $0xa8] sm:$0xff] %vm93, %v2176
  %2182 = vst.msk [vmem:[#allocation6 + $0xb8] sm:$0xff] %vm93, %v2178
  %v2183 = vld [vmem:[#allocation5 + $0x4b] sm:$0xff]
  %v2184 = vld [vmem:[#allocation5 + $0x53] sm:$0xff]
  %2187 = vrot.lane.b32.xlu0 %v2183, 32
  %v2188 = vpop.permute.xlu0 %2187
  %2189 = vrot.lane.b32.xlu0 %v2184, 32
  %v2190 = vpop.permute.xlu0 %2189
  %2193 = vst.msk [vmem:[#allocation6 + $0xa8] sm:$0xff] %vm113, %v2188
  %2194 = vst.msk [vmem:[#allocation6 + $0xb8] sm:$0xff] %vm113, %v2190
  %v2195 = vld [vmem:[#allocation5 + $0x4c] sm:$0xff]
  %v2196 = vld [vmem:[#allocation5 + $0x54] sm:$0xff]
  %2199 = vrot.lane.b32.xlu0 %v2195, 48
  %v2200 = vpop.permute.xlu0 %2199
  %2201 = vrot.lane.b32.xlu0 %v2196, 48
  %v2202 = vpop.permute.xlu0 %2201
  %2205 = vst.msk [vmem:[#allocation6 + $0xa8] sm:$0xff] %vm133, %v2200
  %2206 = vst.msk [vmem:[#allocation6 + $0xb8] sm:$0xff] %vm133, %v2202
  %v2207 = vld [vmem:[#allocation5 + $0x4d] sm:$0xff]
  %v2208 = vld [vmem:[#allocation5 + $0x55] sm:$0xff]
  %2211 = vrot.lane.b32.xlu0 %v2207, 64
  %v2212 = vpop.permute.xlu0 %2211
  %2213 = vrot.lane.b32.xlu0 %v2208, 64
  %v2214 = vpop.permute.xlu0 %2213
  %2217 = vst.msk [vmem:[#allocation6 + $0xa8] sm:$0xff] %vm153, %v2212
  %2218 = vst.msk [vmem:[#allocation6 + $0xb8] sm:$0xff] %vm153, %v2214
  %v2219 = vld [vmem:[#allocation5 + $0x4e] sm:$0xff]
  %v2220 = vld [vmem:[#allocation5 + $0x56] sm:$0xff]
  %2223 = vrot.lane.b32.xlu0 %v2219, 80
  %v2224 = vpop.permute.xlu0 %2223
  %2225 = vrot.lane.b32.xlu0 %v2220, 80
  %v2226 = vpop.permute.xlu0 %2225
  %2229 = vst.msk [vmem:[#allocation6 + $0xa8] sm:$0xff] %vm1378, %v2224
  %2230 = vst.msk [vmem:[#allocation6 + $0xb8] sm:$0xff] %vm1378, %v2226
  %v2231 = vld [vmem:[#allocation6] sm:$0xff]
  %v2232 = vld [vmem:[#allocation6 + $0x8] sm:$0xff]
  %v2233 = vld [vmem:[#allocation6 + $0x10] sm:$0xff]
  %v2234 = vld [vmem:[#allocation6 + $0x18] sm:$0xff]
  %v2235 = vld [vmem:[#allocation6 + $0x20] sm:$0xff]
  %v2236 = vld [vmem:[#allocation6 + $0x28] sm:$0xff]
  %v2237 = vld [vmem:[#allocation6 + $0x30] sm:$0xff]
  %v2238 = vld [vmem:[#allocation6 + $0x38] sm:$0xff]
  %v2239 = vld [vmem:[#allocation6 + $0x40] sm:$0xff]
  %v2240 = vld [vmem:[#allocation6 + $0x48] sm:$0xff]
  %v2241 = vld [vmem:[#allocation6 + $0x50] sm:$0xff]
  %v2242 = vld [vmem:[#allocation6 + $0x58] sm:$0xff]
  %v2243 = vld [vmem:[#allocation6 + $0x60] sm:$0xff]
  %v2244 = vld [vmem:[#allocation6 + $0x68] sm:$0xff]
  %v2245 = vld [vmem:[#allocation6 + $0x70] sm:$0xff]
  %v2246 = vld [vmem:[#allocation6 + $0x78] sm:$0xff]
  %v2247 = vld [vmem:[#allocation6 + $0x80] sm:$0xff]
  %v2248 = vld [vmem:[#allocation6 + $0x88] sm:$0xff]
  %v2249 = vld [vmem:[#allocation6 + $0x90] sm:$0xff]
  %v2250 = vld [vmem:[#allocation6 + $0x98] sm:$0xff]
  %v2251 = vld [vmem:[#allocation6 + $0xa0] sm:$0xff]
  %v2252 = vld [vmem:[#allocation6 + $0xa8] sm:$0xff]
  %v2253 = vld [vmem:[#allocation6 + $0xb0] sm:$0xff]
  %v2254 = vld [vmem:[#allocation6 + $0xb8] sm:$0xff]
  %vm2255 = vcmask 785408
  %v2257 = vsel %vm2255, %v2232, 0
  %v2260 = vsel %vm2255, %v2234, 0
  %v2263 = vsel %vm2255, %v2236, 0
  %v2266 = vsel %vm2255, %v2238, 0
  %v2269 = vsel %vm2255, %v2240, 0
  %v2272 = vsel %vm2255, %v2242, 0
  %v2275 = vsel %vm2255, %v2244, 0
  %v2278 = vsel %vm2255, %v2246, 0
  %v2281 = vsel %vm2255, %v2248, 0
  %v2284 = vsel %vm2255, %v2250, 0
  %v2287 = vsel %vm2255, %v2252, 0
  %v2290 = vsel %vm2255, %v2254, 0
  %2292 = vmatprep.subr.mxu0 0.0
  %2293 = vmatpush1.msra.mxu0 %v32
  %2294 = vmatprep.subr.mxu0 0.0
  %2295 = vmatpush1.msra.mxu0 %v33
  %2296 = vmatprep.subr.mxu0 0.0
  %2297 = vmatpush1.msra.mxu0 %v34
  %2298 = vmatprep.subr.mxu0 0.0
  %2299 = vmatpush1.msra.mxu0 %v35
  %2300 = vmatprep.subr.mxu0 0.0
  %2301 = vmatpush1.msra.mxu0 %v36
  %2302 = vmatprep.subr.mxu0 0.0
  %2303 = vmatpush1.msra.mxu0 %v37
  %2304 = vmatprep.subr.mxu0 0.0
  %2305 = vmatpush1.msra.mxu0 %v38
  %2306 = vmatprep.subr.mxu0 0.0
  %2307 = vmatpush1.msra.mxu0 %v39
  %2308 = vmatprep.subr.mxu0 0.0
  %2309 = vmatpush1.msra.mxu0 %v40
  %2310 = vmatprep.subr.mxu0 0.0
  %2311 = vmatpush1.msra.mxu0 %v41
  %2312 = vmatprep.subr.mxu0 0.0
  %2313 = vmatpush1.msra.mxu0 %v42
  %2314 = vmatprep.subr.mxu0 0.0
  %2315 = vmatpush1.msra.mxu0 %v43
  %2316 = vmatprep.subr.mxu0 0.0
  %2317 = vmatpush1.msra.mxu0 %v44
  %2318 = vmatprep.subr.mxu0 0.0
  %2319 = vmatpush1.msra.mxu0 %v45
  %2320 = vmatprep.subr.mxu0 0.0
  %2321 = vmatpush1.msra.mxu0 %v46
  %2322 = vmatprep.subr.mxu0 0.0
  %2323 = vmatpush1.msra.mxu0 %v47
  %2324 = vmatprep.subr.mxu0 0.0
  %2325 = vmatpush1.msra.mxu0 %v48
  %2326 = vmatprep.subr.mxu0 0.0
  %2327 = vmatpush1.msra.mxu0 %v49
  %2328 = vmatprep.subr.mxu0 0.0
  %2329 = vmatpush1.msra.mxu0 %v50
  %2330 = vmatprep.subr.mxu0 0.0
  %2331 = vmatpush1.msra.mxu0 %v51
  %2332 = vmatprep.subr.mxu0 0.0
  %2333 = vmatpush1.msra.mxu0 %v52
  %2334 = vmatprep.subr.mxu0 0.0
  %2335 = vmatpush1.msra.mxu0 %v53
  %2336 = vmatprep.subr.mxu0 0.0
  %2337 = vmatpush1.msra.mxu0 %v54
  %2338 = vmatprep.subr.mxu0 0.0
  %2339 = vmatpush1.msra.mxu0 %v55
  %2340 = vmatprep.subr.mxu0 0.0
  %2341 = vmatpush1.msra.mxu0 %v56
  %2342 = vmatprep.subr.mxu0 0.0
  %2343 = vmatpush1.msra.mxu0 %v57
  %2344 = vmatprep.subr.mxu0 0.0
  %2345 = vmatpush1.msra.mxu0 %v58
  %2346 = vmatprep.subr.mxu0 0.0
  %2347 = vmatpush1.msra.mxu0 %v59
  %2348 = vmatprep.subr.mxu0 0.0
  %2349 = vmatpush1.msra.mxu0 0.0
  %2350 = vmatprep.subr.mxu0 0.0
  %2351 = vmatpush1.msra.mxu0 0.0
  %2352 = vmatprep.subr.mxu0 0.0
  %2353 = vmatpush1.msra.mxu0 0.0
  %2354 = vmatprep.subr.mxu0 0.0
  %2355 = vmatpush1.msra.mxu0 0.0
  %2356 = vmatprep.mubr.f32.mxu0 %v2257
  %2357 = vmatmul.mubr.f32.gmra.mrb[0].mxu0 %v2231
  %v2358 = vpop.f32.mrb[0].mxu0
  %v2359 = vadd.f32 0.0, %v2358
  %v2360 = vpop.f32.mrb[0].mxu0
  %2361 = vmatprep.mubr.f32.mxu0 %v2260
  %2362 = vmatmul.mubr.f32.gmra.mrb[0].mxu0 %v2233
  %v2363 = vpop.f32.mrb[0].mxu0
  %v2364 = vadd.f32 0.0, %v2363
  %v2365 = vpop.f32.mrb[0].mxu0
  %2366 = vmatprep.mubr.f32.mxu0 %v2263
  %2367 = vmatmul.mubr.f32.gmra.mrb[0].mxu0 %v2235
  %v2368 = vpop.f32.mrb[0].mxu0
  %v2369 = vadd.f32 0.0, %v2368
  %v2370 = vpop.f32.mrb[0].mxu0
  %2371 = vmatprep.mubr.f32.mxu0 %v2266
  %2372 = vmatmul.mubr.f32.gmra.mrb[0].mxu0 %v2237
  %v2373 = vpop.f32.mrb[0].mxu0
  %v2374 = vadd.f32 0.0, %v2373
  %v2375 = vpop.f32.mrb[0].mxu0
  %2376 = vmatprep.mubr.f32.mxu0 %v2269
  %2377 = vmatmul.mubr.f32.gmra.mrb[0].mxu0 %v2239
  %v2378 = vpop.f32.mrb[0].mxu0
  %v2379 = vadd.f32 0.0, %v2378
  %v2380 = vpop.f32.mrb[0].mxu0
  %2381 = vmatprep.mubr.f32.mxu0 %v2272
  %2382 = vmatmul.mubr.f32.gmra.mrb[0].mxu0 %v2241
  %v2383 = vpop.f32.mrb[0].mxu0
  %v2384 = vadd.f32 0.0, %v2383
  %v2385 = vpop.f32.mrb[0].mxu0
  %2386 = vmatprep.mubr.f32.mxu0 %v2275
  %2387 = vmatmul.mubr.f32.gmra.mrb[0].mxu0 %v2243
  %v2388 = vpop.f32.mrb[0].mxu0
  %v2389 = vadd.f32 0.0, %v2388
  %v2390 = vpop.f32.mrb[0].mxu0
  %2391 = vmatprep.mubr.f32.mxu0 %v2278
  %2392 = vmatmul.mubr.f32.gmra.mrb[0].mxu0 %v2245
  %v2393 = vpop.f32.mrb[0].mxu0
  %v2394 = vadd.f32 0.0, %v2393
  %v2395 = vpop.f32.mrb[0].mxu0
  %2396 = vmatprep.mubr.f32.mxu0 %v2281
  %2397 = vmatmul.mubr.f32.gmra.mrb[0].mxu0 %v2247
  %v2398 = vpop.f32.mrb[0].mxu0
  %v2399 = vadd.f32 0.0, %v2398
  %v2400 = vpop.f32.mrb[0].mxu0
  %2401 = vmatprep.mubr.f32.mxu0 %v2284
  %2402 = vmatmul.mubr.f32.gmra.mrb[0].mxu0 %v2249
  %v2403 = vpop.f32.mrb[0].mxu0
  %v2404 = vadd.f32 0.0, %v2403
  %v2405 = vpop.f32.mrb[0].mxu0
  %2406 = vmatprep.mubr.f32.mxu0 %v2287
  %2407 = vmatmul.mubr.f32.gmra.mrb[0].mxu0 %v2251
  %v2408 = vpop.f32.mrb[0].mxu0
  %v2409 = vadd.f32 0.0, %v2408
  %v2410 = vpop.f32.mrb[0].mxu0
  %2411 = vmatprep.mubr.f32.mxu0 %v2290
  %2412 = vmatmul.mubr.f32.gmra.mrb[0].mxu0 %v2253
  %v2413 = vpop.f32.mrb[0].mxu0
  %v2414 = vadd.f32 0.0, %v2413
  %v2415 = vpop.f32.mrb[0].mxu0
  %2416 = vdwg.mxu0
  %2429 = vrot.lane.b32.xlu0 %v2359, 120
  %v2430 = vpop.permute.xlu0 %2429
  %2431 = vrot.lane.b32.xlu0 %v2364, 120
  %v2432 = vpop.permute.xlu0 %2431
  %2433 = vrot.lane.b32.xlu0 %v2369, 120
  %v2434 = vpop.permute.xlu0 %2433
  %2435 = vrot.lane.b32.xlu0 %v2374, 120
  %v2436 = vpop.permute.xlu0 %2435
  %2437 = vrot.lane.b32.xlu0 %v2379, 120
  %v2438 = vpop.permute.xlu0 %2437
  %2439 = vrot.lane.b32.xlu0 %v2384, 120
  %v2440 = vpop.permute.xlu0 %2439
  %2441 = vrot.lane.b32.xlu0 %v2389, 120
  %v2442 = vpop.permute.xlu0 %2441
  %2443 = vrot.lane.b32.xlu0 %v2394, 120
  %v2444 = vpop.permute.xlu0 %2443
  %2445 = vrot.lane.b32.xlu0 %v2399, 120
  %v2446 = vpop.permute.xlu0 %2445
  %2447 = vrot.lane.b32.xlu0 %v2404, 120
  %v2448 = vpop.permute.xlu0 %2447
  %2449 = vrot.lane.b32.xlu0 %v2409, 120
  %v2450 = vpop.permute.xlu0 %2449
  %2451 = vrot.lane.b32.xlu0 %v2414, 120
  %v2452 = vpop.permute.xlu0 %2451
  %v2465 = vmax.f32 %v2359, %v2430
  %v2466 = vmax.f32 %v2364, %v2432
  %v2467 = vmax.f32 %v2369, %v2434
  %v2468 = vmax.f32 %v2374, %v2436
  %v2469 = vmax.f32 %v2379, %v2438
  %v2470 = vmax.f32 %v2384, %v2440
  %v2471 = vmax.f32 %v2389, %v2442
  %v2472 = vmax.f32 %v2394, %v2444
  %v2473 = vmax.f32 %v2399, %v2446
  %v2474 = vmax.f32 %v2404, %v2448
  %v2475 = vmax.f32 %v2409, %v2450
  %v2476 = vmax.f32 %v2414, %v2452
  %v2477 = vsel %vm657, %v2465, -inf
  %v2478 = vrot.slane %v2477, 4
  %v2479 = vmax.f32 %v2477, %v2478
  %v2480 = vrot.slane %v2479, 2
  %v2481 = vmax.f32 %v2479, %v2480
  %v2482 = vrot.slane %v2481, 1
  %v2483 = vmax.f32 %v2481, %v2482
  %v2484 = vsel %vm657, %v2467, -inf
  %v2485 = vrot.slane %v2484, 4
  %v2486 = vmax.f32 %v2484, %v2485
  %v2487 = vrot.slane %v2486, 2
  %v2488 = vmax.f32 %v2486, %v2487
  %v2489 = vrot.slane %v2488, 1
  %v2490 = vmax.f32 %v2488, %v2489
  %v2491 = vsel %vm657, %v2469, -inf
  %v2492 = vrot.slane %v2491, 4
  %v2493 = vmax.f32 %v2491, %v2492
  %v2494 = vrot.slane %v2493, 2
  %v2495 = vmax.f32 %v2493, %v2494
  %v2496 = vrot.slane %v2495, 1
  %v2497 = vmax.f32 %v2495, %v2496
  %v2498 = vsel %vm657, %v2471, -inf
  %v2499 = vrot.slane %v2498, 4
  %v2500 = vmax.f32 %v2498, %v2499
  %v2501 = vrot.slane %v2500, 2
  %v2502 = vmax.f32 %v2500, %v2501
  %v2503 = vrot.slane %v2502, 1
  %v2504 = vmax.f32 %v2502, %v2503
  %v2505 = vsel %vm657, %v2473, -inf
  %v2506 = vrot.slane %v2505, 4
  %v2507 = vmax.f32 %v2505, %v2506
  %v2508 = vrot.slane %v2507, 2
  %v2509 = vmax.f32 %v2507, %v2508
  %v2510 = vrot.slane %v2509, 1
  %v2511 = vmax.f32 %v2509, %v2510
  %v2512 = vsel %vm657, %v2475, -inf
  %v2513 = vrot.slane %v2512, 4
  %v2514 = vmax.f32 %v2512, %v2513
  %v2515 = vrot.slane %v2514, 2
  %v2516 = vmax.f32 %v2514, %v2515
  %v2517 = vrot.slane %v2516, 1
  %v2518 = vmax.f32 %v2516, %v2517
  %vm2519 = vcmask 1040384
  %v2520 = vsel %vm2519, %v2483, %v2490
  %vm2521 = vcmask 1041408
  %v2522 = vsel %vm2521, %v2520, %v2497
  %vm2523 = vcmask 1042432
  %v2524 = vsel %vm2523, %v2522, %v2504
  %vm2525 = vcmask 1043456
  %v2526 = vsel %vm2525, %v2524, %v2511
  %vm2527 = vcmask 1044480
  %v2528 = vsel %vm2527, %v2526, %v2518
  %v2529 = vlaneseq
  %v2530 = vshrl.u32 %v2529, 7
  %v2531 = vsub.s32 0, %v2530
  %v2532 = vrot.slane %v66, %v2531
  %v2533 = vadd.f32 %v2528, %v2532
  %v2534 = vsel %vm657, %v2466, -inf
  %v2535 = vrot.slane %v2534, 4
  %v2536 = vmax.f32 %v2534, %v2535
  %v2537 = vrot.slane %v2536, 2
  %v2538 = vmax.f32 %v2536, %v2537
  %v2539 = vrot.slane %v2538, 1
  %v2540 = vmax.f32 %v2538, %v2539
  %v2541 = vsel %vm657, %v2468, -inf
  %v2542 = vrot.slane %v2541, 4
  %v2543 = vmax.f32 %v2541, %v2542
  %v2544 = vrot.slane %v2543, 2
  %v2545 = vmax.f32 %v2543, %v2544
  %v2546 = vrot.slane %v2545, 1
  %v2547 = vmax.f32 %v2545, %v2546
  %v2548 = vsel %vm657, %v2470, -inf
  %v2549 = vrot.slane %v2548, 4
  %v2550 = vmax.f32 %v2548, %v2549
  %v2551 = vrot.slane %v2550, 2
  %v2552 = vmax.f32 %v2550, %v2551
  %v2553 = vrot.slane %v2552, 1
  %v2554 = vmax.f32 %v2552, %v2553
  %v2555 = vsel %vm657, %v2472, -inf
  %v2556 = vrot.slane %v2555, 4
  %v2557 = vmax.f32 %v2555, %v2556
  %v2558 = vrot.slane %v2557, 2
  %v2559 = vmax.f32 %v2557, %v2558
  %v2560 = vrot.slane %v2559, 1
  %v2561 = vmax.f32 %v2559, %v2560
  %v2562 = vsel %vm657, %v2474, -inf
  %v2563 = vrot.slane %v2562, 4
  %v2564 = vmax.f32 %v2562, %v2563
  %v2565 = vrot.slane %v2564, 2
  %v2566 = vmax.f32 %v2564, %v2565
  %v2567 = vrot.slane %v2566, 1
  %v2568 = vmax.f32 %v2566, %v2567
  %v2569 = vsel %vm657, %v2476, -inf
  %v2570 = vrot.slane %v2569, 4
  %v2571 = vmax.f32 %v2569, %v2570
  %v2572 = vrot.slane %v2571, 2
  %v2573 = vmax.f32 %v2571, %v2572
  %v2574 = vrot.slane %v2573, 1
  %v2575 = vmax.f32 %v2573, %v2574
  %v2576 = vsel %vm2519, %v2540, %v2547
  %v2577 = vsel %vm2521, %v2576, %v2554
  %v2578 = vsel %vm2523, %v2577, %v2561
  %v2579 = vsel %vm2525, %v2578, %v2568
  %v2580 = vsel %vm2527, %v2579, %v2575
  %v2581 = vadd.f32 %v2580, %v2532
  %2583 = vrot.lane.b32.xlu0 %v2581, 8
  %v2584 = vpop.permute.xlu0 %2583
  %v2586 = vsel %vm657, %v2533, %v2584
  %v2587 = vlaneseq
  %v2588 = vshrl.u32 %v2587, 7
  %v2589 = vsub.s32 0, %v2588
  %v2590 = vrot.slane %v67, %v2589
  %v2592 = vsel %vm73, %v2586, 0
  %2594 = vmatprep.subr.mxu0 0.0
  %2595 = vmatpush1.msra.mxu0 %v60
  %2596 = vmatprep.subr.mxu0 0.0
  %2597 = vmatpush1.msra.mxu0 %v61
  %2598 = vmatprep.subr.mxu0 0.0
  %2599 = vmatpush1.msra.mxu0 0.0
  %2600 = vmatprep.subr.mxu0 0.0
  %2601 = vmatpush1.msra.mxu0 0.0
  %2602 = vmatprep.subr.mxu0 0.0
  %2603 = vmatpush1.msra.mxu0 0.0
  %2604 = vmatprep.subr.mxu0 0.0
  %2605 = vmatpush1.msra.mxu0 0.0
  %2606 = vmatprep.subr.mxu0 0.0
  %2607 = vmatpush1.msra.mxu0 0.0
  %2608 = vmatprep.subr.mxu0 0.0
  %2609 = vmatpush1.msra.mxu0 0.0
  %2610 = vmatprep.subr.mxu0 0.0
  %2611 = vmatpush1.msra.mxu0 0.0
  %2612 = vmatprep.subr.mxu0 0.0
  %2613 = vmatpush1.msra.mxu0 0.0
  %2614 = vmatprep.subr.mxu0 0.0
  %2615 = vmatpush1.msra.mxu0 0.0
  %2616 = vmatprep.subr.mxu0 0.0
  %2617 = vmatpush1.msra.mxu0 0.0
  %2618 = vmatprep.subr.mxu0 0.0
  %2619 = vmatpush1.msra.mxu0 0.0
  %2620 = vmatprep.subr.mxu0 0.0
  %2621 = vmatpush1.msra.mxu0 0.0
  %2622 = vmatprep.subr.mxu0 0.0
  %2623 = vmatpush1.msra.mxu0 0.0
  %2624 = vmatprep.subr.mxu0 0.0
  %2625 = vmatpush1.msra.mxu0 0.0
  %2626 = vmatprep.subr.mxu0 0.0
  %2627 = vmatpush1.msra.mxu0 0.0
  %2628 = vmatprep.subr.mxu0 0.0
  %2629 = vmatpush1.msra.mxu0 0.0
  %2630 = vmatprep.subr.mxu0 0.0
  %2631 = vmatpush1.msra.mxu0 0.0
  %2632 = vmatprep.subr.mxu0 0.0
  %2633 = vmatpush1.msra.mxu0 0.0
  %2634 = vmatprep.subr.mxu0 0.0
  %2635 = vmatpush1.msra.mxu0 0.0
  %2636 = vmatprep.subr.mxu0 0.0
  %2637 = vmatpush1.msra.mxu0 0.0
  %2638 = vmatprep.subr.mxu0 0.0
  %2639 = vmatpush1.msra.mxu0 0.0
  %2640 = vmatprep.subr.mxu0 0.0
  %2641 = vmatpush1.msra.mxu0 0.0
  %2642 = vmatprep.subr.mxu0 0.0
  %2643 = vmatpush1.msra.mxu0 0.0
  %2644 = vmatprep.subr.mxu0 0.0
  %2645 = vmatpush1.msra.mxu0 0.0
  %2646 = vmatprep.subr.mxu0 0.0
  %2647 = vmatpush1.msra.mxu0 0.0
  %2648 = vmatprep.subr.mxu0 0.0
  %2649 = vmatpush1.msra.mxu0 0.0
  %2650 = vmatprep.subr.mxu0 0.0
  %2651 = vmatpush1.msra.mxu0 0.0
  %2652 = vmatprep.subr.mxu0 0.0
  %2653 = vmatpush1.msra.mxu0 0.0
  %2654 = vmatprep.subr.mxu0 0.0
  %2655 = vmatpush1.msra.mxu0 0.0
  %2656 = vmatprep.subr.mxu0 0.0
  %2657 = vmatpush1.msra.mxu0 0.0
  %2658 = vmatprep.mubr.f32.mxu0 0.0
  %2659 = vmatmul.mubr.f32.gmra.mrb[0].mxu0 %v2592
  %v2660 = vpop.f32.mrb[0].mxu0
  %v2661 = vadd.f32 %v2590, %v2660
  %v2662 = vpop.f32.mrb[0].mxu0
  %2663 = vdwg.mxu0
  %v2664 = vmax.f32 %v2661, 0.0
  %v2665 = vlaneseq
  %v2666 = vshrl.u32 %v2665, 7
  %v2667 = vsub.s32 0, %v2666
  %v2668 = vrot.slane %v68, %v2667
  %v2670 = vsel %vm657, %v2664, 0
  %2672 = vmatprep.subr.mxu0 0.0
  %2673 = vmatpush1.msra.mxu0 %v62
  %2674 = vmatprep.subr.mxu0 0.0
  %2675 = vmatpush1.msra.mxu0 0.0
  %2676 = vmatprep.subr.mxu0 0.0
  %2677 = vmatpush1.msra.mxu0 0.0
  %2678 = vmatprep.subr.mxu0 0.0
  %2679 = vmatpush1.msra.mxu0 0.0
  %2680 = vmatprep.subr.mxu0 0.0
  %2681 = vmatpush1.msra.mxu0 0.0
  %2682 = vmatprep.subr.mxu0 0.0
  %2683 = vmatpush1.msra.mxu0 0.0
  %2684 = vmatprep.subr.mxu0 0.0
  %2685 = vmatpush1.msra.mxu0 0.0
  %2686 = vmatprep.subr.mxu0 0.0
  %2687 = vmatpush1.msra.mxu0 0.0
  %2688 = vmatprep.subr.mxu0 0.0
  %2689 = vmatpush1.msra.mxu0 0.0
  %2690 = vmatprep.subr.mxu0 0.0
  %2691 = vmatpush1.msra.mxu0 0.0
  %2692 = vmatprep.subr.mxu0 0.0
  %2693 = vmatpush1.msra.mxu0 0.0
  %2694 = vmatprep.subr.mxu0 0.0
  %2695 = vmatpush1.msra.mxu0 0.0
  %2696 = vmatprep.subr.mxu0 0.0
  %2697 = vmatpush1.msra.mxu0 0.0
  %2698 = vmatprep.subr.mxu0 0.0
  %2699 = vmatpush1.msra.mxu0 0.0
  %2700 = vmatprep.subr.mxu0 0.0
  %2701 = vmatpush1.msra.mxu0 0.0
  %2702 = vmatprep.subr.mxu0 0.0
  %2703 = vmatpush1.msra.mxu0 0.0
  %2704 = vmatprep.subr.mxu0 0.0
  %2705 = vmatpush1.msra.mxu0 0.0
  %2706 = vmatprep.subr.mxu0 0.0
  %2707 = vmatpush1.msra.mxu0 0.0
  %2708 = vmatprep.subr.mxu0 0.0
  %2709 = vmatpush1.msra.mxu0 0.0
  %2710 = vmatprep.subr.mxu0 0.0
  %2711 = vmatpush1.msra.mxu0 0.0
  %2712 = vmatprep.subr.mxu0 0.0
  %2713 = vmatpush1.msra.mxu0 0.0
  %2714 = vmatprep.subr.mxu0 0.0
  %2715 = vmatpush1.msra.mxu0 0.0
  %2716 = vmatprep.subr.mxu0 0.0
  %2717 = vmatpush1.msra.mxu0 0.0
  %2718 = vmatprep.subr.mxu0 0.0
  %2719 = vmatpush1.msra.mxu0 0.0
  %2720 = vmatprep.subr.mxu0 0.0
  %2721 = vmatpush1.msra.mxu0 0.0
  %2722 = vmatprep.subr.mxu0 0.0
  %2723 = vmatpush1.msra.mxu0 0.0
  %2724 = vmatprep.subr.mxu0 0.0
  %2725 = vmatpush1.msra.mxu0 0.0
  %2726 = vmatprep.subr.mxu0 0.0
  %2727 = vmatpush1.msra.mxu0 0.0
  %2728 = vmatprep.subr.mxu0 0.0
  %2729 = vmatpush1.msra.mxu0 0.0
  %2730 = vmatprep.subr.mxu0 0.0
  %2731 = vmatpush1.msra.mxu0 0.0
  %2732 = vmatprep.subr.mxu0 0.0
  %2733 = vmatpush1.msra.mxu0 0.0
  %2734 = vmatprep.subr.mxu0 0.0
  %2735 = vmatpush1.msra.mxu0 0.0
  %2736 = vmatprep.mubr.f32.mxu0 0.0
  %2737 = vmatmul.mubr.f32.gmra.mrb[0].mxu0 %v2670
  %v2738 = vpop.f32.mrb[0].mxu0
  %v2739 = vadd.f32 %v2668, %v2738
  %v2740 = vpop.f32.mrb[0].mxu0
  %2741 = vdwg.mxu0
  %v2742 = vmax.f32 %v2739, 0.0
  %v2743 = vlaneseq
  %v2744 = vshrl.u32 %v2743, 7
  %v2745 = vsub.s32 0, %v2744
  %v2746 = vrot.slane %v69, %v2745
  %v2748 = vsel %vm657, %v2742, 0
  %2750 = vmatprep.subr.mxu0 0.0
  %2751 = vmatpush1.msra.mxu0 %v63
  %2752 = vmatprep.subr.mxu0 0.0
  %2753 = vmatpush1.msra.mxu0 0.0
  %2754 = vmatprep.subr.mxu0 0.0
  %2755 = vmatpush1.msra.mxu0 0.0
  %2756 = vmatprep.subr.mxu0 0.0
  %2757 = vmatpush1.msra.mxu0 0.0
  %2758 = vmatprep.subr.mxu0 0.0
  %2759 = vmatpush1.msra.mxu0 0.0
  %2760 = vmatprep.subr.mxu0 0.0
  %2761 = vmatpush1.msra.mxu0 0.0
  %2762 = vmatprep.subr.mxu0 0.0
  %2763 = vmatpush1.msra.mxu0 0.0
  %2764 = vmatprep.subr.mxu0 0.0
  %2765 = vmatpush1.msra.mxu0 0.0
  %2766 = vmatprep.subr.mxu0 0.0
  %2767 = vmatpush1.msra.mxu0 0.0
  %2768 = vmatprep.subr.mxu0 0.0
  %2769 = vmatpush1.msra.mxu0 0.0
  %2770 = vmatprep.subr.mxu0 0.0
  %2771 = vmatpush1.msra.mxu0 0.0
  %2772 = vmatprep.subr.mxu0 0.0
  %2773 = vmatpush1.msra.mxu0 0.0
  %2774 = vmatprep.subr.mxu0 0.0
  %2775 = vmatpush1.msra.mxu0 0.0
  %2776 = vmatprep.subr.mxu0 0.0
  %2777 = vmatpush1.msra.mxu0 0.0
  %2778 = vmatprep.subr.mxu0 0.0
  %2779 = vmatpush1.msra.mxu0 0.0
  %2780 = vmatprep.subr.mxu0 0.0
  %2781 = vmatpush1.msra.mxu0 0.0
  %2782 = vmatprep.subr.mxu0 0.0
  %2783 = vmatpush1.msra.mxu0 0.0
  %2784 = vmatprep.subr.mxu0 0.0
  %2785 = vmatpush1.msra.mxu0 0.0
  %2786 = vmatprep.subr.mxu0 0.0
  %2787 = vmatpush1.msra.mxu0 0.0
  %2788 = vmatprep.subr.mxu0 0.0
  %2789 = vmatpush1.msra.mxu0 0.0
  %2790 = vmatprep.subr.mxu0 0.0
  %2791 = vmatpush1.msra.mxu0 0.0
  %2792 = vmatprep.subr.mxu0 0.0
  %2793 = vmatpush1.msra.mxu0 0.0
  %2794 = vmatprep.subr.mxu0 0.0
  %2795 = vmatpush1.msra.mxu0 0.0
  %2796 = vmatprep.subr.mxu0 0.0
  %2797 = vmatpush1.msra.mxu0 0.0
  %2798 = vmatprep.subr.mxu0 0.0
  %2799 = vmatpush1.msra.mxu0 0.0
  %2800 = vmatprep.subr.mxu0 0.0
  %2801 = vmatpush1.msra.mxu0 0.0
  %2802 = vmatprep.subr.mxu0 0.0
  %2803 = vmatpush1.msra.mxu0 0.0
  %2804 = vmatprep.subr.mxu0 0.0
  %2805 = vmatpush1.msra.mxu0 0.0
  %2806 = vmatprep.subr.mxu0 0.0
  %2807 = vmatpush1.msra.mxu0 0.0
  %2808 = vmatprep.subr.mxu0 0.0
  %2809 = vmatpush1.msra.mxu0 0.0
  %2810 = vmatprep.subr.mxu0 0.0
  %2811 = vmatpush1.msra.mxu0 0.0
  %2812 = vmatprep.subr.mxu0 0.0
  %2813 = vmatpush1.msra.mxu0 0.0
  %2814 = vmatprep.mubr.f32.mxu0 0.0
  %2815 = vmatmul.mubr.f32.gmra.mrb[0].mxu0 %v2748
  %v2816 = vpop.f32.mrb[0].mxu0
  %v2817 = vadd.f32 %v2746, %v2816
  %v2818 = vpop.f32.mrb[0].mxu0
  %2819 = vdwg.mxu0
  %vm2820 = vcmask 25600
  %2821 = vst.msk [vmem:[%s2] sm:$0x3] %vm2820, %v2817
  %s2822 = scalar_lea.vmem %s2, 2
  %vm2823 = vcmask 27650
  %2824 = vst.msk [vmem:[%s2822 - $0x2] sm:$0xc] %vm2823, %v2817
  %s2825 = scalar_lea.vmem %s2, 4
  %vm2826 = vcmask 29700
  %2827 = vst.msk [vmem:[%s2825 - $0x4] sm:$0x30] %vm2826, %v2817
  // Predicated region
  $region10: #{reactify_forward.1} parent=0 // pred_check
    _
  $region11: #{reactify_forward.1} parent=0 // pred_check_branch
    %2829 = sbr.rel (0) target = $region13
  $region12: #{reactify_forward.1} parent=0 // pred_region
    _
  $region13: #{reactify_forward.1} parent=0 // pred_fallthru
    _
  // Predicated region
  $region14: #{reactify_forward.1} parent=0 // pred_check
    _
  $region15: #{reactify_forward.1} parent=0 // pred_check_branch
    %2831 = sbr.rel (0) target = $region17
  $region16: #{reactify_forward.1} parent=0 // pred_region
    _
  $region17: #{reactify_forward.1} parent=0 // pred_fallthru
    _

</llo_original>
